<compile_context>
chip_gen: v5e
topology: v5e:2x2
jax: 0.10.0
libtpu: 0.0.40
codegen_flags: <defaults>
</compile_context>

<pallas_src>
import functools

import jax
import jax.numpy as jnp
from jax.experimental import pallas as pl
from jax.experimental.pallas import tpu as pltpu


# ---------------------------------------------------------------------------
# helpers
# ---------------------------------------------------------------------------
def _round_up(x, m):
    return ((x + m - 1) // m) * m


def _choose_tm(M, max_tile=1024):
    """Row-tile: full-dim block if small, else the largest divisor of M that is
    a multiple of 8 and <= max_tile (even division -> no masking needed)."""
    if M <= max_tile:
        return M
    t = (max_tile // 8) * 8
    while t >= 8:
        if M % t == 0:
            return t
        t -= 8
    return M


def _choose_tn(N):
    for t in (2048, 1024, 512, 256, 128):
        if N % t == 0:
            return t
    return N  # small / odd N -> single full-dim block


# ---------------------------------------------------------------------------
# Pallas kernels
# ---------------------------------------------------------------------------
def _linear_kernel(x_ref, w_ref, b_ref, o_ref, *, act):
    acc = jnp.dot(x_ref[...], w_ref[...], preferred_element_type=jnp.float32)
    acc = acc + b_ref[...]
    if act == "leaky":
        acc = jnp.where(acc >= 0.0, acc, 0.2 * acc)
    o_ref[...] = acc


def pallas_linear(x, w, b, act="none"):
    """y = x @ w + b.  x:(M,K), w:(K,N), b:(1,N), all float32. No padding copies."""
    M, K = x.shape
    K2, N = w.shape
    assert K == K2, (K, K2)
    tm = _choose_tm(M)
    tn = _choose_tn(N)
    grid = (M // tm, N // tn)
    return pl.pallas_call(
        functools.partial(_linear_kernel, act=act),
        out_shape=jax.ShapeDtypeStruct((M, N), jnp.float32),
        grid=grid,
        in_specs=[
            pl.BlockSpec((tm, K), lambda i, j: (i, 0)),
            pl.BlockSpec((K, tn), lambda i, j: (0, j)),
            pl.BlockSpec((1, tn), lambda i, j: (0, j)),
        ],
        out_specs=pl.BlockSpec((tm, tn), lambda i, j: (i, j)),
        compiler_params=pltpu.CompilerParams(
            dimension_semantics=("parallel", "parallel")),
    )(x, w, b)


def _mlp3_kernel(ray_ref, w1_ref, b1_ref, w2_ref, b2_ref, w3_ref, b3_ref, f_ref):
    # Linear -> LeakyReLU(0.2) -> Linear -> LeakyReLU(0.2) -> Linear, all in VMEM.
    h = jnp.dot(ray_ref[...], w1_ref[...], preferred_element_type=jnp.float32) + b1_ref[...]
    h = jnp.where(h >= 0.0, h, 0.2 * h)
    h = jnp.dot(h, w2_ref[...], preferred_element_type=jnp.float32) + b2_ref[...]
    h = jnp.where(h >= 0.0, h, 0.2 * h)
    f_ref[...] = jnp.dot(h, w3_ref[...], preferred_element_type=jnp.float32) + b3_ref[...]


def _head_gen_kernel(f_ref, hw_ref, hb_ref, o_ref):
    # (1, hp) @ (hp, tn) + (1, tn)  — all 8 heads fused along the N axis.
    o_ref[...] = (jnp.dot(f_ref[...], hw_ref[...],
                          preferred_element_type=jnp.float32) + hb_ref[...])


def _target_head_kernel(h_ref, w1_ref, b1_ref, w2_ref, b2_ref, w3_ref, b3_ref, z_ref):
    # fc1 (leaky) -> fc2 (leaky) -> per-user local Linear, fused in one kernel.
    h = jnp.dot(h_ref[...], w1_ref[...], preferred_element_type=jnp.float32) + b1_ref[...]
    h = jnp.where(h >= 0.0, h, 0.2 * h)
    h = jnp.dot(h, w2_ref[...], preferred_element_type=jnp.float32) + b2_ref[...]
    h = jnp.where(h >= 0.0, h, 0.2 * h)
    z_ref[...] = jnp.dot(h, w3_ref[...], preferred_element_type=jnp.float32) + b3_ref[...]


def hyper_feature(p):
    _, hp = p["mlp_w1"].shape
    return pl.pallas_call(
        _mlp3_kernel,
        out_shape=jax.ShapeDtypeStruct((1, hp), jnp.float32),
    )(p["input_ray"], p["mlp_w1"], p["mlp_b1"], p["mlp_w2"], p["mlp_b2"],
      p["mlp_w3"], p["mlp_b3"])


def hyper_heads(p, feature):
    hp, npad = p["head_w"].shape
    tn = _choose_tn(npad)
    return pl.pallas_call(
        _head_gen_kernel,
        out_shape=jax.ShapeDtypeStruct((1, npad), jnp.float32),
        grid=(npad // tn,),
        in_specs=[
            pl.BlockSpec((1, hp), lambda j: (0, 0)),
            pl.BlockSpec((hp, tn), lambda j: (0, j)),
            pl.BlockSpec((1, tn), lambda j: (0, j)),
        ],
        out_specs=pl.BlockSpec((1, tn), lambda j: (0, j)),
        compiler_params=pltpu.CompilerParams(
            dimension_semantics=("parallel",)),
    )(feature, p["head_w"], p["head_b"])


def target_head(h, fc1w, fc1b, fc2w, fc2b, lw, lb):
    B = h.shape[0]
    n_out = lw.shape[1]
    return pl.pallas_call(
        _target_head_kernel,
        out_shape=jax.ShapeDtypeStruct((B, n_out), jnp.float32),
    )(h, fc1w, fc1b, fc2w, fc2b, lw, lb)


# ---------------------------------------------------------------------------
# conv (stride 3, 7x7, no padding) as NHWC im2col + Pallas matmul; 2x2 max pool
# ---------------------------------------------------------------------------
# TODO(synk): the strided 7x7 patch extraction stays in XLA (not expressible as
# a rectangular BlockSpec tile); it is built directly in NHWC so no big
# transpose / padded copy is materialized.
def conv2d_s3_nhwc(x, w_flat, b, stride=3, k=7):
    """x:(B,H,W,C) NHWC; w_flat:(k*k*C, OC) rows in (kh,kw,c) order; b:(1,OC)."""
    B, H, W, C = x.shape
    OC = w_flat.shape[1]
    OH = (H - k) // stride + 1
    OW = (W - k) // stride + 1
    cols = []
    for kh in range(k):
        for kw in range(k):
            cols.append(
                x[:, kh:kh + stride * (OH - 1) + 1:stride,
                     kw:kw + stride * (OW - 1) + 1:stride, :])
    p = jnp.concatenate(cols, axis=-1)            # (B, OH, OW, k*k*C), (kh,kw,c)
    p = p.reshape(B * OH * OW, k * k * C)
    y = pallas_linear(p, w_flat, b)               # (B*OH*OW, OC)
    return y.reshape(B, OH, OW, OC)


def max_pool2_nhwc(x):
    """2x2 max pool, stride 2, floor — PyTorch F.max_pool2d(x, 2) semantics."""
    B, H, W, C = x.shape
    H2, W2 = H // 2, W // 2
    x = x[:, :H2 * 2, :W2 * 2, :].reshape(B, H2, 2, W2, 2, C)
    return x.max(axis=(2, 4))


# ---------------------------------------------------------------------------
# Parameter init (deterministic, mimics PyTorch nn.Linear default init).
# All weights are stored pre-transposed / permuted / padded ONCE here so the
# per-forward path has zero layout work.
# ---------------------------------------------------------------------------
def init_linear(key, out_f, in_f):
    kw, kb = jax.random.split(key)
    bound = 1.0 / (in_f ** 0.5)
    w = jax.random.uniform(kw, (out_f, in_f), jnp.float32, -bound, bound)
    b = jax.random.uniform(kb, (out_f,), jnp.float32, -bound, bound)
    return w, b


def init_params(key, n_usrs, n_used, n_classes=10, in_channels=3,
                n_kernels=8, hidden_dim=100, head_tile=2048):
    keys = jax.random.split(key, 16)
    nk, ic, hd = n_kernels, in_channels, hidden_dim
    hp = _round_up(hd, 128)          # hidden dim padded to lane width
    up = _round_up(n_used, 8)        # ray dim padded to sublane width
    c2 = 2 * nk
    hw_side = int(round((400 // c2) ** 0.5))
    assert hw_side * hw_side * c2 == 400, "fc1 hard-codes a 400-dim flatten"

    p = {}
    p["input_ray"] = (jnp.zeros((1, up), jnp.float32)
                      .at[0, :n_used].set(1.0 / n_used))

    # hypernet MLP, pre-transposed to (in, out), zero-padded (padding is exact:
    # padded rows/cols/biases are zero so padded activations stay zero).
    w1, b1 = init_linear(keys[0], hd, n_used)
    w2, b2 = init_linear(keys[1], hd, hd)
    w3, b3 = init_linear(keys[2], hd, hd)
    p["mlp_w1"] = jnp.zeros((up, hp), jnp.float32).at[:n_used, :hd].set(w1.T)
    p["mlp_b1"] = jnp.zeros((1, hp), jnp.float32).at[0, :hd].set(b1)
    p["mlp_w2"] = jnp.zeros((hp, hp), jnp.float32).at[:hd, :hd].set(w2.T)
    p["mlp_b2"] = jnp.zeros((1, hp), jnp.float32).at[0, :hd].set(b2)
    p["mlp_w3"] = jnp.zeros((hp, hp), jnp.float32).at[:hd, :hd].set(w3.T)
    p["mlp_b3"] = jnp.zeros((1, hp), jnp.float32).at[0, :hd].set(b3)

    # weight-generating heads, first in PyTorch (out, in) orientation
    c1w_w, c1w_b = init_linear(keys[3], nk * ic * 49, hd)
    c1b_w, c1b_b = init_linear(keys[4], nk, hd)
    c2w_w, c2w_b = init_linear(keys[5], c2 * nk * 49, hd)
    c2b_w, c2b_b = init_linear(keys[6], c2, hd)
    l1w_w, l1w_b = init_linear(keys[7], 120 * 400, hd)
    l1b_w, l1b_b = init_linear(keys[8], 120, hd)
    l2w_w, l2w_b = init_linear(keys[9], 84 * 120, hd)
    l2b_w, l2b_b = init_linear(keys[10], 84, hd)

    # Permute head OUTPUT indices so generated flat segments reshape directly
    # into matmul-ready matrices (no runtime transposes):
    #   conv heads: (oc, c, kh, kw) -> (kh, kw, c, oc)   (matches NHWC im2col)
    #   fc1 head  : (out, c, h, w)  -> (h, w, c, out)    (matches NHWC flatten)
    #   fc2 head  : (out, in)       -> (in, out)
    def perm_conv(w, b, oc, c):
        w = w.reshape(oc, c, 7, 7, hd).transpose(2, 3, 1, 0, 4).reshape(-1, hd)
        b = b.reshape(oc, c, 7, 7).transpose(2, 3, 1, 0).reshape(-1)
        return w, b

    def perm_fc1(w, b):
        w = w.reshape(120, c2, hw_side, hw_side, hd).transpose(2, 3, 1, 0, 4).reshape(-1, hd)
        b = b.reshape(120, c2, hw_side, hw_side).transpose(2, 3, 1, 0).reshape(-1)
        return w, b

    def perm_fc2(w, b):
        w = w.reshape(84, 120, hd).transpose(1, 0, 2).reshape(-1, hd)
        b = b.reshape(84, 120).transpose(1, 0).reshape(-1)
        return w, b

    c1w_w, c1w_b = perm_conv(c1w_w, c1w_b, nk, ic)
    c2w_w, c2w_b = perm_conv(c2w_w, c2w_b, c2, nk)
    l1w_w, l1w_b = perm_fc1(l1w_w, l1w_b)
    l2w_w, l2w_b = perm_fc2(l2w_w, l2w_b)

    # Fuse all 8 heads into one (hp, Npad) weight + (1, Npad) bias.
    heads_w = [c1w_w, c1b_w, c2w_w, c2b_w, l1w_w, l1b_w, l2w_w, l2b_w]
    heads_b = [c1w_b, c1b_b, c2w_b, c2b_b, l1w_b, l1b_b, l2w_b, l2b_b]
    hw_all = jnp.concatenate(heads_w, axis=0)      # (total, hd)
    hb_all = jnp.concatenate(heads_b, axis=0)      # (total,)
    total = hw_all.shape[0]
    npad = _round_up(total, head_tile)
    p["head_w"] = jnp.zeros((hp, npad), jnp.float32).at[:hd, :total].set(hw_all.T)
    p["head_b"] = jnp.zeros((1, npad), jnp.float32).at[0, :total].set(hb_all)

    # per-user local output heads: Linear(84, n_classes), pre-transposed
    lkeys = jax.random.split(keys[11], n_usrs)
    lw_list, lb_list = [], []
    for i in range(n_usrs):
        w, b = init_linear(lkeys[i], n_classes, 84)
        lw_list.append(w.T)                        # (84, n_classes)
        lb_list.append(b.reshape(1, n_classes))
    p["local_w"] = jnp.stack(lw_list)              # (n_usrs, 84, n_classes)
    p["local_b"] = jnp.stack(lb_list)              # (n_usrs, 1, n_classes)
    return p


# ---------------------------------------------------------------------------
# SkinModel1 forward
# ---------------------------------------------------------------------------
def skin_model1_forward(params, x, y, usr_id, n_kernels=8, in_channels=3):
    nk, ic = n_kernels, in_channels
    c2 = 2 * nk

    # --- hypernetwork: MLP feature + all 8 heads fused (2 pallas_calls) ---
    feature = hyper_feature(params)                  # (1, hp)
    gen = hyper_heads(params, feature)[0]            # (Npad,)

    sizes = [49 * ic * nk, nk, 49 * nk * c2, c2, 400 * 120, 120, 120 * 84, 84]
    offs = [0]
    for s in sizes:
        offs.append(offs[-1] + s)
    c1w = gen[offs[0]:offs[1]].reshape(49 * ic, nk)       # rows (kh,kw,c), cols oc
    c1b = gen[offs[1]:offs[2]].reshape(1, nk)
    c2w = gen[offs[2]:offs[3]].reshape(49 * nk, c2)
    c2b = gen[offs[3]:offs[4]].reshape(1, c2)
    fc1w = gen[offs[4]:offs[5]].reshape(400, 120)         # rows (h,w,c), cols out
    fc1b = gen[offs[5]:offs[6]].reshape(1, 120)
    fc2w = gen[offs[6]:offs[7]].reshape(120, 84)          # rows in, cols out
    fc2b = gen[offs[7]:offs[8]].reshape(1, 84)

    # --- target CNN, NHWC end-to-end ---
    h = jnp.transpose(x, (0, 2, 3, 1))               # NCHW -> NHWC (once)
    h = conv2d_s3_nhwc(h, c1w, c1b)                  # conv1, stride 3
    h = max_pool2_nhwc(h)
    h = conv2d_s3_nhwc(h, c2w, c2b)                  # conv2, stride 3
    h = max_pool2_nhwc(h)
    h = h.reshape(h.shape[0], -1)                    # (B, 400), (h,w,c) order

    # --- fc1 -> fc2 -> per-user local head (1 pallas_call) ---
    lw = params["local_w"][usr_id]
    lb = params["local_b"][usr_id]
    z = target_head(h, fc1w, fc1b, fc2w, fc2b, lw, lb)   # (B, n_classes)

    pred = jax.nn.softmax(z, axis=1)
    # PyTorch LocalOutput: CrossEntropyLoss applied to the softmax output
    # (i.e. log_softmax of `pred`) — kept exactly as in the reference module.
    logp = pred - jax.scipy.special.logsumexp(pred, axis=1, keepdims=True)
    loss = -jnp.mean(logp[jnp.arange(y.shape[0]), y])
    return pred, loss


# ---------------------------------------------------------------------------
if __name__ == "__main__":
    B, C, H, W = 2, 3, 208, 208      # 208 forced by the hard-coded fc1 Linear(400,120)
    n_classes = 10
    n_kernels = 8
    hidden_dim = 100
    n_usrs = 4
    usr_used = [0, 1, 2, 3]
    usr_id = 1

    key = jax.random.PRNGKey(0)
    kp, kx, ky = jax.random.split(key, 3)
    params = init_params(kp, n_usrs, len(usr_used), n_classes=n_classes,
                         in_channels=C, n_kernels=n_kernels, hidden_dim=hidden_dim)
    x = jax.random.normal(kx, (B, C, H, W), jnp.float32)
    y = jax.random.randint(ky, (B,), 0, n_classes)

    fwd = jax.jit(functools.partial(skin_model1_forward,
                                    n_kernels=n_kernels, in_channels=C))
    pred, loss = fwd(params, x, y, usr_id)
    jax.block_until_ready((pred, loss))
    assert pred.shape == (B, n_classes)
    assert jnp.isfinite(loss)
    print("KERNEL_OK")
</pallas_src>

<mosaic_0001>
module attributes {stable_mosaic.version = 11 : i64} {
  func.func @_mlp3_kernel(%arg0: memref<1x8xf32, #tpu.memory_space<vmem>>, %arg1: memref<8x128xf32, #tpu.memory_space<vmem>>, %arg2: memref<1x128xf32, #tpu.memory_space<vmem>>, %arg3: memref<128x128xf32, #tpu.memory_space<vmem>>, %arg4: memref<1x128xf32, #tpu.memory_space<vmem>>, %arg5: memref<128x128xf32, #tpu.memory_space<vmem>>, %arg6: memref<1x128xf32, #tpu.memory_space<vmem>>, %arg7: memref<1x128xf32, #tpu.memory_space<vmem>>) attributes {dimension_semantics = [], scalar_prefetch = 0 : i64, scratch_operands = 0 : i64, tpu.core_type = #tpu.core_type<tc>} {
    %c0 = arith.constant 0 : index
    %c0_0 = arith.constant 0 : index
    %0 = vector.load %arg0[%c0, %c0_0] : memref<1x8xf32, #tpu.memory_space<vmem>>, vector<1x8xf32>
    %c0_1 = arith.constant 0 : index
    %c0_2 = arith.constant 0 : index
    %1 = vector.load %arg1[%c0_1, %c0_2] : memref<8x128xf32, #tpu.memory_space<vmem>>, vector<8x128xf32>
    %cst = arith.constant dense<0.000000e+00> : vector<1x128xf32>
    %2 = tpu.matmul %0, %1, %cst {dimension_numbers = #tpu.dot_dimension_numbers<[1], [0], [0], [1], [0, 0, 1, 1], [], []>} : vector<1x8xf32>, vector<8x128xf32>, vector<1x128xf32> -> vector<1x128xf32>
    %c0_3 = arith.constant 0 : index
    %c0_4 = arith.constant 0 : index
    %3 = vector.load %arg2[%c0_3, %c0_4] : memref<1x128xf32, #tpu.memory_space<vmem>>, vector<1x128xf32>
    %4 = arith.addf %2, %3 : vector<1x128xf32>
    %cst_5 = arith.constant 0.000000e+00 : f32
    %5 = vector.broadcast %cst_5 : f32 to vector<1x128xf32>
    %6 = arith.cmpf oge, %4, %5 : vector<1x128xf32>
    %cst_6 = arith.constant 2.000000e-01 : f32
    %7 = vector.broadcast %cst_6 : f32 to vector<1x128xf32>
    %8 = arith.mulf %7, %4 : vector<1x128xf32>
    %9 = arith.select %6, %4, %8 : vector<1x128xi1>, vector<1x128xf32>
    %c0_7 = arith.constant 0 : index
    %c0_8 = arith.constant 0 : index
    %10 = vector.load %arg3[%c0_7, %c0_8] : memref<128x128xf32, #tpu.memory_space<vmem>>, vector<128x128xf32>
    %cst_9 = arith.constant dense<0.000000e+00> : vector<1x128xf32>
    %11 = tpu.matmul %9, %10, %cst_9 {dimension_numbers = #tpu.dot_dimension_numbers<[1], [0], [0], [1], [0, 0, 1, 1], [], []>} : vector<1x128xf32>, vector<128x128xf32>, vector<1x128xf32> -> vector<1x128xf32>
    %c0_10 = arith.constant 0 : index
    %c0_11 = arith.constant 0 : index
    %12 = vector.load %arg4[%c0_10, %c0_11] : memref<1x128xf32, #tpu.memory_space<vmem>>, vector<1x128xf32>
    %13 = arith.addf %11, %12 : vector<1x128xf32>
    %cst_12 = arith.constant 0.000000e+00 : f32
    %14 = vector.broadcast %cst_12 : f32 to vector<1x128xf32>
    %15 = arith.cmpf oge, %13, %14 : vector<1x128xf32>
    %cst_13 = arith.constant 2.000000e-01 : f32
    %16 = vector.broadcast %cst_13 : f32 to vector<1x128xf32>
    %17 = arith.mulf %16, %13 : vector<1x128xf32>
    %18 = arith.select %15, %13, %17 : vector<1x128xi1>, vector<1x128xf32>
    %c0_14 = arith.constant 0 : index
    %c0_15 = arith.constant 0 : index
    %19 = vector.load %arg5[%c0_14, %c0_15] : memref<128x128xf32, #tpu.memory_space<vmem>>, vector<128x128xf32>
    %cst_16 = arith.constant dense<0.000000e+00> : vector<1x128xf32>
    %20 = tpu.matmul %18, %19, %cst_16 {dimension_numbers = #tpu.dot_dimension_numbers<[1], [0], [0], [1], [0, 0, 1, 1], [], []>} : vector<1x128xf32>, vector<128x128xf32>, vector<1x128xf32> -> vector<1x128xf32>
    %c0_17 = arith.constant 0 : index
    %c0_18 = arith.constant 0 : index
    %21 = vector.load %arg6[%c0_17, %c0_18] : memref<1x128xf32, #tpu.memory_space<vmem>>, vector<1x128xf32>
    %22 = arith.addf %20, %21 : vector<1x128xf32>
    %c0_19 = arith.constant 0 : index
    %c0_20 = arith.constant 0 : index
    %23 = vector.load %arg7[%c0_19, %c0_20] : memref<1x128xf32, #tpu.memory_space<vmem>>, vector<1x128xf32>
    tpu.vector_store %arg7[%c0_19, %c0_20], %22 {strides = array<i32>} : memref<1x128xf32, #tpu.memory_space<vmem>>, vector<1x128xf32>,
    return
  }
}

module attributes {stable_mosaic.version = 11 : i64} {
  func.func @_head_gen_kernel(%arg0: i32, %arg1: memref<1x128xf32, #tpu.memory_space<vmem>>, %arg2: memref<128x2048xf32, #tpu.memory_space<vmem>>, %arg3: memref<1x2048xf32, #tpu.memory_space<vmem>>, %arg4: memref<1x2048xf32, #tpu.memory_space<vmem>>) attributes {dimension_semantics = [#tpu.dimension_semantics<parallel>], iteration_bounds = array<i64: 33>, scalar_prefetch = 0 : i64, scratch_operands = 0 : i64, tpu.core_type = #tpu.core_type<tc>, window_params = [{pipeline_mode = #tpu.pipeline_mode<synchronous>, transform_indices = @transform_0, window_bounds = array<i64: 1, 128>}, {transform_indices = @transform_1, window_bounds = array<i64: 128, 2048>}, {transform_indices = @transform_2, window_bounds = array<i64: 1, 2048>}, {transform_indices = @transform_3, window_bounds = array<i64: 1, 2048>}]} {
    %c0 = arith.constant 0 : index
    %c0_0 = arith.constant 0 : index
    %0 = vector.load %arg1[%c0, %c0_0] : memref<1x128xf32, #tpu.memory_space<vmem>>, vector<1x128xf32>
    %c0_1 = arith.constant 0 : index
    %c0_2 = arith.constant 0 : index
    %1 = vector.load %arg2[%c0_1, %c0_2] : memref<128x2048xf32, #tpu.memory_space<vmem>>, vector<128x2048xf32>
    %cst = arith.constant dense<0.000000e+00> : vector<1x2048xf32>
    %2 = tpu.matmul %0, %1, %cst {dimension_numbers = #tpu.dot_dimension_numbers<[1], [0], [0], [1], [0, 0, 1, 1], [], []>} : vector<1x128xf32>, vector<128x2048xf32>, vector<1x2048xf32> -> vector<1x2048xf32>
    %c0_3 = arith.constant 0 : index
    %c0_4 = arith.constant 0 : index
    %3 = vector.load %arg3[%c0_3, %c0_4] : memref<1x2048xf32, #tpu.memory_space<vmem>>, vector<1x2048xf32>
    %4 = arith.addf %2, %3 : vector<1x2048xf32>
    %c0_5 = arith.constant 0 : index
    %c0_6 = arith.constant 0 : index
    %5 = vector.load %arg4[%c0_5, %c0_6] : memref<1x2048xf32, #tpu.memory_space<vmem>>, vector<1x2048xf32>
    tpu.vector_store %arg4[%c0_5, %c0_6], %4 {strides = array<i32>} : memref<1x2048xf32, #tpu.memory_space<vmem>>, vector<1x2048xf32>,
    return
  }
  func.func @transform_0(%arg0: i32) -> (i32, i32) {
    %c0_i32 = arith.constant 0 : i32
    %c0_i32_0 = arith.constant 0 : i32
    %c0_i32_1 = arith.constant 0 : i32
    return %c0_i32, %c0_i32_0 : i32, i32
  }
  func.func @transform_1(%arg0: i32) -> (i32, i32) {
    %c0_i32 = arith.constant 0 : i32
    %c0_i32_0 = arith.constant 0 : i32
    return %c0_i32, %arg0 : i32, i32
  }
  func.func @transform_2(%arg0: i32) -> (i32, i32) {
    %c0_i32 = arith.constant 0 : i32
    %c0_i32_0 = arith.constant 0 : i32
    return %c0_i32, %arg0 : i32, i32
  }
  func.func @transform_3(%arg0: i32) -> (i32, i32) {
    %c0_i32 = arith.constant 0 : i32
    %c0_i32_0 = arith.constant 0 : i32
    return %c0_i32, %arg0 : i32, i32
  }
}

module attributes {stable_mosaic.version = 11 : i64} {
  func.func @_linear_kernel(%arg0: i32, %arg1: i32, %arg2: memref<544x147xf32, #tpu.memory_space<vmem>>, %arg3: memref<147x8xf32, #tpu.memory_space<vmem>>, %arg4: memref<1x8xf32, #tpu.memory_space<vmem>>, %arg5: memref<544x8xf32, #tpu.memory_space<vmem>>) attributes {dimension_semantics = [#tpu.dimension_semantics<parallel>, #tpu.dimension_semantics<parallel>], iteration_bounds = array<i64: 17, 1>, scalar_prefetch = 0 : i64, scratch_operands = 0 : i64, tpu.core_type = #tpu.core_type<tc>, window_params = [{transform_indices = @transform_0, window_bounds = array<i64: 544, 147>}, {transform_indices = @transform_1, window_bounds = array<i64: 147, 8>}, {transform_indices = @transform_2, window_bounds = array<i64: 1, 8>}, {transform_indices = @transform_3, window_bounds = array<i64: 544, 8>}]} {
    %c0 = arith.constant 0 : index
    %c0_0 = arith.constant 0 : index
    %0 = vector.load %arg2[%c0, %c0_0] : memref<544x147xf32, #tpu.memory_space<vmem>>, vector<544x147xf32>
    %c0_1 = arith.constant 0 : index
    %c0_2 = arith.constant 0 : index
    %1 = vector.load %arg3[%c0_1, %c0_2] : memref<147x8xf32, #tpu.memory_space<vmem>>, vector<147x8xf32>
    %cst = arith.constant dense<0.000000e+00> : vector<544x8xf32>
    %2 = tpu.matmul %0, %1, %cst {dimension_numbers = #tpu.dot_dimension_numbers<[1], [0], [0], [1], [0, 0, 1, 1], [], []>} : vector<544x147xf32>, vector<147x8xf32>, vector<544x8xf32> -> vector<544x8xf32>
    %c0_3 = arith.constant 0 : index
    %c0_4 = arith.constant 0 : index
    %3 = vector.load %arg4[%c0_3, %c0_4] : memref<1x8xf32, #tpu.memory_space<vmem>>, vector<1x8xf32>
    %4 = vector.broadcast %3 : vector<1x8xf32> to vector<544x8xf32>
    %5 = arith.addf %2, %4 : vector<544x8xf32>
    %c0_5 = arith.constant 0 : index
    %c0_6 = arith.constant 0 : index
    %6 = vector.load %arg5[%c0_5, %c0_6] : memref<544x8xf32, #tpu.memory_space<vmem>>, vector<544x8xf32>
    tpu.vector_store %arg5[%c0_5, %c0_6], %5 {strides = array<i32>} : memref<544x8xf32, #tpu.memory_space<vmem>>, vector<544x8xf32>,
    return
  }
  func.func @transform_0(%arg0: i32, %arg1: i32) -> (i32, i32) {
    %c0_i32 = arith.constant 0 : i32
    %c0_i32_0 = arith.constant 0 : i32
    return %arg0, %c0_i32 : i32, i32
  }
  func.func @transform_1(%arg0: i32, %arg1: i32) -> (i32, i32) {
    %c0_i32 = arith.constant 0 : i32
    %c0_i32_0 = arith.constant 0 : i32
    return %c0_i32, %arg1 : i32, i32
  }
  func.func @transform_2(%arg0: i32, %arg1: i32) -> (i32, i32) {
    %c0_i32 = arith.constant 0 : i32
    %c0_i32_0 = arith.constant 0 : i32
    return %c0_i32, %arg1 : i32, i32
  }
  func.func @transform_3(%arg0: i32, %arg1: i32) -> (i32, i32) {
    %c0_i32 = arith.constant 0 : i32
    return %arg0, %arg1 : i32, i32
  }
}

module attributes {stable_mosaic.version = 11 : i64} {
  func.func @_linear_kernel(%arg0: i32, %arg1: i32, %arg2: memref<200x392xf32, #tpu.memory_space<vmem>>, %arg3: memref<392x16xf32, #tpu.memory_space<vmem>>, %arg4: memref<1x16xf32, #tpu.memory_space<vmem>>, %arg5: memref<200x16xf32, #tpu.memory_space<vmem>>) attributes {dimension_semantics = [#tpu.dimension_semantics<parallel>, #tpu.dimension_semantics<parallel>], iteration_bounds = array<i64: 1, 1>, scalar_prefetch = 0 : i64, scratch_operands = 0 : i64, tpu.core_type = #tpu.core_type<tc>, window_params = [{transform_indices = @transform_0, window_bounds = array<i64: 200, 392>}, {transform_indices = @transform_1, window_bounds = array<i64: 392, 16>}, {transform_indices = @transform_2, window_bounds = array<i64: 1, 16>}, {transform_indices = @transform_3, window_bounds = array<i64: 200, 16>}]} {
    %c0 = arith.constant 0 : index
    %c0_0 = arith.constant 0 : index
    %0 = vector.load %arg2[%c0, %c0_0] : memref<200x392xf32, #tpu.memory_space<vmem>>, vector<200x392xf32>
    %c0_1 = arith.constant 0 : index
    %c0_2 = arith.constant 0 : index
    %1 = vector.load %arg3[%c0_1, %c0_2] : memref<392x16xf32, #tpu.memory_space<vmem>>, vector<392x16xf32>
    %cst = arith.constant dense<0.000000e+00> : vector<200x16xf32>
    %2 = tpu.matmul %0, %1, %cst {dimension_numbers = #tpu.dot_dimension_numbers<[1], [0], [0], [1], [0, 0, 1, 1], [], []>} : vector<200x392xf32>, vector<392x16xf32>, vector<200x16xf32> -> vector<200x16xf32>
    %c0_3 = arith.constant 0 : index
    %c0_4 = arith.constant 0 : index
    %3 = vector.load %arg4[%c0_3, %c0_4] : memref<1x16xf32, #tpu.memory_space<vmem>>, vector<1x16xf32>
    %4 = vector.broadcast %3 : vector<1x16xf32> to vector<200x16xf32>
    %5 = arith.addf %2, %4 : vector<200x16xf32>
    %c0_5 = arith.constant 0 : index
    %c0_6 = arith.constant 0 : index
    %6 = vector.load %arg5[%c0_5, %c0_6] : memref<200x16xf32, #tpu.memory_space<vmem>>, vector<200x16xf32>
    tpu.vector_store %arg5[%c0_5, %c0_6], %5 {strides = array<i32>} : memref<200x16xf32, #tpu.memory_space<vmem>>, vector<200x16xf32>,
    return
  }
  func.func @transform_0(%arg0: i32, %arg1: i32) -> (i32, i32) {
    %c0_i32 = arith.constant 0 : i32
    %c0_i32_0 = arith.constant 0 : i32
    return %arg0, %c0_i32 : i32, i32
  }
  func.func @transform_1(%arg0: i32, %arg1: i32) -> (i32, i32) {
    %c0_i32 = arith.constant 0 : i32
    %c0_i32_0 = arith.constant 0 : i32
    return %c0_i32, %arg1 : i32, i32
  }
  func.func @transform_2(%arg0: i32, %arg1: i32) -> (i32, i32) {
    %c0_i32 = arith.constant 0 : i32
    %c0_i32_0 = arith.constant 0 : i32
    return %c0_i32, %arg1 : i32, i32
  }
  func.func @transform_3(%arg0: i32, %arg1: i32) -> (i32, i32) {
    %c0_i32 = arith.constant 0 : i32
    return %arg0, %arg1 : i32, i32
  }
}

module attributes {stable_mosaic.version = 11 : i64} {
  func.func @_target_head_kernel(%arg0: memref<2x400xf32, #tpu.memory_space<vmem>>, %arg1: memref<400x120xf32, #tpu.memory_space<vmem>>, %arg2: memref<1x120xf32, #tpu.memory_space<vmem>>, %arg3: memref<120x84xf32, #tpu.memory_space<vmem>>, %arg4: memref<1x84xf32, #tpu.memory_space<vmem>>, %arg5: memref<84x10xf32, #tpu.memory_space<vmem>>, %arg6: memref<1x10xf32, #tpu.memory_space<vmem>>, %arg7: memref<2x10xf32, #tpu.memory_space<vmem>>) attributes {dimension_semantics = [], scalar_prefetch = 0 : i64, scratch_operands = 0 : i64, tpu.core_type = #tpu.core_type<tc>} {
    %c0 = arith.constant 0 : index
    %c0_0 = arith.constant 0 : index
    %0 = vector.load %arg0[%c0, %c0_0] : memref<2x400xf32, #tpu.memory_space<vmem>>, vector<2x400xf32>
    %c0_1 = arith.constant 0 : index
    %c0_2 = arith.constant 0 : index
    %1 = vector.load %arg1[%c0_1, %c0_2] : memref<400x120xf32, #tpu.memory_space<vmem>>, vector<400x120xf32>
    %cst = arith.constant dense<0.000000e+00> : vector<2x120xf32>
    %2 = tpu.matmul %0, %1, %cst {dimension_numbers = #tpu.dot_dimension_numbers<[1], [0], [0], [1], [0, 0, 1, 1], [], []>} : vector<2x400xf32>, vector<400x120xf32>, vector<2x120xf32> -> vector<2x120xf32>
    %c0_3 = arith.constant 0 : index
    %c0_4 = arith.constant 0 : index
    %3 = vector.load %arg2[%c0_3, %c0_4] : memref<1x120xf32, #tpu.memory_space<vmem>>, vector<1x120xf32>
    %4 = vector.broadcast %3 : vector<1x120xf32> to vector<2x120xf32>
    %5 = arith.addf %2, %4 : vector<2x120xf32>
    %cst_5 = arith.constant 0.000000e+00 : f32
    %6 = vector.broadcast %cst_5 : f32 to vector<2x120xf32>
    %7 = arith.cmpf oge, %5, %6 : vector<2x120xf32>
    %cst_6 = arith.constant 2.000000e-01 : f32
    %8 = vector.broadcast %cst_6 : f32 to vector<2x120xf32>
    %9 = arith.mulf %8, %5 : vector<2x120xf32>
    %10 = arith.select %7, %5, %9 : vector<2x120xi1>, vector<2x120xf32>
    %c0_7 = arith.constant 0 : index
    %c0_8 = arith.constant 0 : index
    %11 = vector.load %arg3[%c0_7, %c0_8] : memref<120x84xf32, #tpu.memory_space<vmem>>, vector<120x84xf32>
    %cst_9 = arith.constant dense<0.000000e+00> : vector<2x84xf32>
    %12 = tpu.matmul %10, %11, %cst_9 {dimension_numbers = #tpu.dot_dimension_numbers<[1], [0], [0], [1], [0, 0, 1, 1], [], []>} : vector<2x120xf32>, vector<120x84xf32>, vector<2x84xf32> -> vector<2x84xf32>
    %c0_10 = arith.constant 0 : index
    %c0_11 = arith.constant 0 : index
    %13 = vector.load %arg4[%c0_10, %c0_11] : memref<1x84xf32, #tpu.memory_space<vmem>>, vector<1x84xf32>
    %14 = vector.broadcast %13 : vector<1x84xf32> to vector<2x84xf32>
    %15 = arith.addf %12, %14 : vector<2x84xf32>
    %cst_12 = arith.constant 0.000000e+00 : f32
    %16 = vector.broadcast %cst_12 : f32 to vector<2x84xf32>
    %17 = arith.cmpf oge, %15, %16 : vector<2x84xf32>
    %cst_13 = arith.constant 2.000000e-01 : f32
    %18 = vector.broadcast %cst_13 : f32 to vector<2x84xf32>
    %19 = arith.mulf %18, %15 : vector<2x84xf32>
    %20 = arith.select %17, %15, %19 : vector<2x84xi1>, vector<2x84xf32>
    %c0_14 = arith.constant 0 : index
    %c0_15 = arith.constant 0 : index
    %21 = vector.load %arg5[%c0_14, %c0_15] : memref<84x10xf32, #tpu.memory_space<vmem>>, vector<84x10xf32>
    %cst_16 = arith.constant dense<0.000000e+00> : vector<2x10xf32>
    %22 = tpu.matmul %20, %21, %cst_16 {dimension_numbers = #tpu.dot_dimension_numbers<[1], [0], [0], [1], [0, 0, 1, 1], [], []>} : vector<2x84xf32>, vector<84x10xf32>, vector<2x10xf32> -> vector<2x10xf32>
    %c0_17 = arith.constant 0 : index
    %c0_18 = arith.constant 0 : index
    %23 = vector.load %arg6[%c0_17, %c0_18] : memref<1x10xf32, #tpu.memory_space<vmem>>, vector<1x10xf32>
    %24 = vector.broadcast %23 : vector<1x10xf32> to vector<2x10xf32>
    %25 = arith.addf %22, %24 : vector<2x10xf32>
    %c0_19 = arith.constant 0 : index
    %c0_20 = arith.constant 0 : index
    %26 = vector.load %arg7[%c0_19, %c0_20] : memref<2x10xf32, #tpu.memory_space<vmem>>, vector<2x10xf32>
    tpu.vector_store %arg7[%c0_19, %c0_20], %25 {strides = array<i32>} : memref<2x10xf32, #tpu.memory_space<vmem>>, vector<2x10xf32>,
    return
  }
}

</mosaic_0001>

<llo_original>
// kernel: skin_model1_forward.5
$region0: #{skin_model1_forward.5}
  #allocation0 [shape = 'u32[]', space=smem, size = 0x4, offset = 0x4, fixed_abs, tag = 'smem constant byte address 0x4 - core index']
  #allocation1 [shape = 'u32[72,128]{1,0:T(1,128)}', space=vmem, size = 0x9000, scoped, tag = 'internal scratch']
  %s0 = inlined_call_operand.vmem [shape: f32[1,8], index: 0, kind: input, shape index: {}]
  %s1 = inlined_call_operand.vmem [shape: f32[8,128], index: 1, kind: input, shape index: {}]
  %s2 = inlined_call_operand.vmem [shape: f32[1,128], index: 2, kind: input, shape index: {}]
  %s3 = inlined_call_operand.vmem [shape: f32[128,128], index: 3, kind: input, shape index: {}]
  %s4 = inlined_call_operand.vmem [shape: f32[1,128], index: 4, kind: input, shape index: {}]
  %s5 = inlined_call_operand.vmem [shape: f32[128,128], index: 5, kind: input, shape index: {}]
  %s6 = inlined_call_operand.vmem [shape: f32[1,128], index: 6, kind: input, shape index: {}]
  %s7 = inlined_call_operand.vmem [shape: f32[1,128], index: 7, kind: output, shape index: {}]
  %s8 = sld [smem:[#allocation0]]
  $region38: #{skin_model1_forward.5} parent=0
    _
  %s10 = ssub.s32 1, %s8
  %s11 = scalar_select 0, %s10, %s8
  // Predicated region
  $region2: #{skin_model1_forward.5} parent=0 // pred_check
    _
  $region3: #{skin_model1_forward.5} parent=0 // pred_check_branch
    %13 = sbr.rel (0) target = $region5
  $region4: #{skin_model1_forward.5} parent=0 // pred_region
    _
  $region5: #{skin_model1_forward.5} parent=0 // pred_fallthru
    _
  // Predicated region
  $region6: #{skin_model1_forward.5} parent=0 // pred_check
    _
  $region7: #{skin_model1_forward.5} parent=0 // pred_check_branch
    %15 = sbr.rel (0) target = $region9
  $region8: #{skin_model1_forward.5} parent=0 // pred_region
    _
  $region9: #{skin_model1_forward.5} parent=0 // pred_fallthru
    _
  // Predicated region
  $region10: #{skin_model1_forward.5} parent=0 // pred_check
    _
  $region11: #{skin_model1_forward.5} parent=0 // pred_check_branch
    %17 = sbr.rel (0) target = $region13
  $region12: #{skin_model1_forward.5} parent=0 // pred_region
    _
  $region13: #{skin_model1_forward.5} parent=0 // pred_fallthru
    _
  // Predicated region
  $region14: #{skin_model1_forward.5} parent=0 // pred_check
    _
  $region15: #{skin_model1_forward.5} parent=0 // pred_check_branch
    %19 = sbr.rel (0) target = $region17
  $region16: #{skin_model1_forward.5} parent=0 // pred_region
    _
  $region17: #{skin_model1_forward.5} parent=0 // pred_fallthru
    _
  // Predicated region
  $region18: #{skin_model1_forward.5} parent=0 // pred_check
    _
  $region19: #{skin_model1_forward.5} parent=0 // pred_check_branch
    %21 = sbr.rel (0) target = $region21
  $region20: #{skin_model1_forward.5} parent=0 // pred_region
    _
  $region21: #{skin_model1_forward.5} parent=0 // pred_fallthru
    _
  // Predicated region
  $region22: #{skin_model1_forward.5} parent=0 // pred_check
    _
  $region23: #{skin_model1_forward.5} parent=0 // pred_check_branch
    %23 = sbr.rel (0) target = $region25
  $region24: #{skin_model1_forward.5} parent=0 // pred_region
    _
  $region25: #{skin_model1_forward.5} parent=0 // pred_fallthru
    _
  // Predicated region
  $region26: #{skin_model1_forward.5} parent=0 // pred_check
    _
  $region27: #{skin_model1_forward.5} parent=0 // pred_check_branch
    %25 = sbr.rel (0) target = $region29
  $region28: #{skin_model1_forward.5} parent=0 // pred_region
    _
  $region29: #{skin_model1_forward.5} parent=0 // pred_fallthru
    _
  %v26 = vld [vmem:[%s0] sm:$0x1]
  %v27 = vld [vmem:[%s1] sm:$0xff]
  %v28 = vld [vmem:[%s2] sm:$0x1]
  %vm29 = vcmask 64512
  %v31 = vsel %vm29, %v26, 0
  %33 = vmatpush.msra.mxu0 0.0
  %34 = vmatpush.msra.mxu0 0.0
  %35 = vmatpush.msra.mxu0 0.0
  %36 = vmatpush.msra.mxu0 0.0
  %37 = vmatpush.msra.mxu0 0.0
  %38 = vmatpush.msra.mxu0 0.0
  %39 = vmatpush.msra.mxu0 0.0
  %40 = vmatpush.msra.mxu0 0.0
  %41 = vmatpush.msra.mxu0 0.0
  %42 = vmatpush.msra.mxu0 0.0
  %43 = vmatpush.msra.mxu0 0.0
  %44 = vmatpush.msra.mxu0 0.0
  %45 = vmatpush.msra.mxu0 0.0
  %46 = vmatpush.msra.mxu0 0.0
  %47 = vmatpush.msra.mxu0 0.0
  %48 = vmatpush.msra.mxu0 %v27
  %49 = vmatmul.f32.gmra.mxu0 %v31
  %v50 = vpop.f32.mrf.mxu0
  %v51 = vadd.f32 %v28, %v50
  %52 = vdwg.mxu0
  %vm53 = vcmp.ge.f32.partialorder %v51, 0.0
  %v54 = vmul.f32 %v51, 0.2
  %v55 = vsel %vm53, %v51, %v54
  %v56 = vld [vmem:[%s3] sm:$0xff]
  %v57 = vld [vmem:[%s3 + $0x8] sm:$0xff]
  %v58 = vld [vmem:[%s3 + $0x10] sm:$0xff]
  %v59 = vld [vmem:[%s3 + $0x18] sm:$0xff]
  %v60 = vld [vmem:[%s3 + $0x20] sm:$0xff]
  %v61 = vld [vmem:[%s3 + $0x28] sm:$0xff]
  %v62 = vld [vmem:[%s3 + $0x30] sm:$0xff]
  %v63 = vld [vmem:[%s3 + $0x38] sm:$0xff]
  %v64 = vld [vmem:[%s3 + $0x40] sm:$0xff]
  %v65 = vld [vmem:[%s3 + $0x48] sm:$0xff]
  %v66 = vld [vmem:[%s3 + $0x50] sm:$0xff]
  %v67 = vld [vmem:[%s3 + $0x58] sm:$0xff]
  %v68 = vld [vmem:[%s3 + $0x60] sm:$0xff]
  %v69 = vld [vmem:[%s3 + $0x68] sm:$0xff]
  %v70 = vld [vmem:[%s3 + $0x70] sm:$0xff]
  %v71 = vld [vmem:[%s3 + $0x78] sm:$0xff]
  %v72 = vld [vmem:[%s4] sm:$0x1]
  %73 = vmatpush.msra.mxu0 %v71
  %74 = vmatpush.msra.mxu0 %v70
  %75 = vmatpush.msra.mxu0 %v69
  %76 = vmatpush.msra.mxu0 %v68
  %77 = vmatpush.msra.mxu0 %v67
  %78 = vmatpush.msra.mxu0 %v66
  %79 = vmatpush.msra.mxu0 %v65
  %80 = vmatpush.msra.mxu0 %v64
  %81 = vmatpush.msra.mxu0 %v63
  %82 = vmatpush.msra.mxu0 %v62
  %83 = vmatpush.msra.mxu0 %v61
  %84 = vmatpush.msra.mxu0 %v60
  %85 = vmatpush.msra.mxu0 %v59
  %86 = vmatpush.msra.mxu0 %v58
  %87 = vmatpush.msra.mxu0 %v57
  %88 = vmatpush.msra.mxu0 %v56
  %89 = vmatmul.f32.gmra.mxu0 %v55
  %v90 = vpop.f32.mrf.mxu0
  %v91 = vadd.f32 %v72, %v90
  %92 = vdwg.mxu0
  %vm93 = vcmp.ge.f32.partialorder %v91, 0.0
  %v94 = vmul.f32 %v91, 0.2
  %v95 = vsel %vm93, %v91, %v94
  %v96 = vld [vmem:[%s5] sm:$0xff]
  %v97 = vld [vmem:[%s5 + $0x8] sm:$0xff]
  %v98 = vld [vmem:[%s5 + $0x10] sm:$0xff]
  %v99 = vld [vmem:[%s5 + $0x18] sm:$0xff]
  %v100 = vld [vmem:[%s5 + $0x20] sm:$0xff]
  %v101 = vld [vmem:[%s5 + $0x28] sm:$0xff]
  %v102 = vld [vmem:[%s5 + $0x30] sm:$0xff]
  %v103 = vld [vmem:[%s5 + $0x38] sm:$0xff]
  %v104 = vld [vmem:[%s5 + $0x40] sm:$0xff]
  %v105 = vld [vmem:[%s5 + $0x48] sm:$0xff]
  %v106 = vld [vmem:[%s5 + $0x50] sm:$0xff]
  %v107 = vld [vmem:[%s5 + $0x58] sm:$0xff]
  %v108 = vld [vmem:[%s5 + $0x60] sm:$0xff]
  %v109 = vld [vmem:[%s5 + $0x68] sm:$0xff]
  %v110 = vld [vmem:[%s5 + $0x70] sm:$0xff]
  %v111 = vld [vmem:[%s5 + $0x78] sm:$0xff]
  %v112 = vld [vmem:[%s6] sm:$0x1]
  %113 = vmatpush.msra.mxu0 %v111
  %114 = vmatpush.msra.mxu0 %v110
  %115 = vmatpush.msra.mxu0 %v109
  %116 = vmatpush.msra.mxu0 %v108
  %117 = vmatpush.msra.mxu0 %v107
  %118 = vmatpush.msra.mxu0 %v106
  %119 = vmatpush.msra.mxu0 %v105
  %120 = vmatpush.msra.mxu0 %v104
  %121 = vmatpush.msra.mxu0 %v103
  %122 = vmatpush.msra.mxu0 %v102
  %123 = vmatpush.msra.mxu0 %v101
  %124 = vmatpush.msra.mxu0 %v100
  %125 = vmatpush.msra.mxu0 %v99
  %126 = vmatpush.msra.mxu0 %v98
  %127 = vmatpush.msra.mxu0 %v97
  %128 = vmatpush.msra.mxu0 %v96
  %129 = vmatmul.f32.gmra.mxu0 %v95
  %v130 = vpop.f32.mrf.mxu0
  %v131 = vadd.f32 %v112, %v130
  %132 = vdwg.mxu0
  %133 = vst [vmem:[%s7] sm:$0x1] %v131
  // Predicated region
  $region30: #{skin_model1_forward.5} parent=0 // pred_check
    _
  $region31: #{skin_model1_forward.5} parent=0 // pred_check_branch
    %135 = sbr.rel (0) target = $region33
  $region32: #{skin_model1_forward.5} parent=0 // pred_region
    _
  $region33: #{skin_model1_forward.5} parent=0 // pred_fallthru
    _
  // Predicated region
  $region34: #{skin_model1_forward.5} parent=0 // pred_check
    _
  $region35: #{skin_model1_forward.5} parent=0 // pred_check_branch
    %137 = sbr.rel (0) target = $region37
  $region36: #{skin_model1_forward.5} parent=0 // pred_region
    _
  $region37: #{skin_model1_forward.5} parent=0 // pred_fallthru
    _

// kernel: skin_model1_forward.6
$region0: #{skin_model1_forward.6}
  #allocation0 [shape = 'u32[]', space=smem, size = 0x4, offset = 0x4, fixed_abs, tag = 'smem constant byte address 0x4 - core index']
  #allocation1 [shape = 'u32[72,128]{1,0:T(1,128)}', space=vmem, size = 0x9000, scoped, tag = 'internal scratch']
  %s0 = inlined_call_operand.vmem [shape: f32[1,128], index: 0, kind: input, shape index: {}]
  %s1 = inlined_call_operand.vmem [shape: f32[128,67584], index: 1, kind: input, shape index: {}]
  %s2 = inlined_call_operand.vmem [shape: f32[1,67584], index: 2, kind: input, shape index: {}]
  %s3 = inlined_call_operand.vmem [shape: f32[1,67584], index: 3, kind: output, shape index: {}]
  %s4 = sld [smem:[#allocation0]]
  $region68: #{skin_model1_forward.6} parent=0
    _
  %s6 = ssub.s32 1, %s4
  %s7 = scalar_select 0, %s6, %s4
  $region1: #{skin_model1_forward.6} parent=0
    #allocation2 [shape = 'u8[2097152]{0}', space=vmem, size = 0x200000, scoped, tag = 'input window, operand 1']
    loop: start=0, step=1, limit=35
    $region2: #{skin_model1_forward.6} parent=1 // loop_pre_header
      _
    $region3: #{skin_model1_forward.6} parent=1 // loop_header
      %s9 = sphi 0, %s13
      %p10 = scmp.ge.s32.totalorder %s9, 35
      %s17 = sphi 0, %s17
      %s19 = sphi 0, %s17
      %s20 = sphi 0, %s19
      %s34 = sphi 0, %s20
      %s40 = sphi 0, %s42
      %s43 = sphi 0, %s40
      %s44 = sphi 0, %s43
      %s60 = sphi 0, %s44
      %s66 = sphi 0, %s68
      %s69 = sphi 0, %s66
      %s70 = sphi 0, %s69
      %s86 = sphi 0, %s70
      %s92 = sphi 0, %s94
      %s95 = sphi 0, %s92
      %s96 = sphi 0, %s95
      %s112 = sphi 0, %s96
    $region4: #{skin_model1_forward.6} parent=1 // loop_header_branch
      %12 = sbr.rel (%p10) target = $region8
    $region5: #{skin_model1_forward.6} parent=1 // loop_body
      %s14 = ssub.s32 %s9, 1
      %s15 = ssub.s32 %s9, 2
      %s16 = sadd.s32 %s9, 1
      %s18 = sadd.s32 %s17, 1
      %p21 = scmp.eq.s32.totalorder %s9, 32
      %p22 = scmp.ne.s32.totalorder %s17, %s19
      %p23 = scmp.eq.s32.totalorder %s9, 0
      %p24 = por %p22, %p23
      %p25 = scmp.ne.s32.totalorder %s17, %s19
      %p26 = scmp.eq.s32.totalorder %s14, 32
      %p27 = por %p25, %p26
      %p28 = scmp.ne.s32.totalorder %s19, %s20
      %p29 = scmp.eq.s32.totalorder %s14, 0
      %p30 = por %p28, %p29
      %p31 = scmp.ne.s32.totalorder %s19, %s20
      %p32 = scmp.eq.s32.totalorder %s15, 32
      %p33 = por %p31, %p32
      %p35 = scmp.ne.s32.totalorder %s20, %s34
      %p36 = scmp.eq.s32.totalorder %s15, 0
      %p37 = por %p35, %p36
      %s38 = ssub.s32 %s9, %s16
      %p39 = scmp.eq.s32.totalorder %s38, 0
      %s41 = sadd.s32 %s40, 1
      %s42 = scalar_select %p39, %s40, %s41
      %p45 = pneg %p39
      %p46 = scmp.eq.s32.totalorder %s9, 32
      %p47 = por %p45, %p46
      %p48 = scmp.ne.s32.totalorder %s40, %s43
      %p49 = scmp.eq.s32.totalorder %s9, 0
      %p50 = por %p48, %p49
      %p51 = scmp.ne.s32.totalorder %s40, %s43
      %p52 = scmp.eq.s32.totalorder %s14, 32
      %p53 = por %p51, %p52
      %p54 = scmp.ne.s32.totalorder %s43, %s44
      %p55 = scmp.eq.s32.totalorder %s14, 0
      %p56 = por %p54, %p55
      %p57 = scmp.ne.s32.totalorder %s43, %s44
      %p58 = scmp.eq.s32.totalorder %s15, 32
      %p59 = por %p57, %p58
      %p61 = scmp.ne.s32.totalorder %s44, %s60
      %p62 = scmp.eq.s32.totalorder %s15, 0
      %p63 = por %p61, %p62
      %s64 = ssub.s32 %s9, %s16
      %p65 = scmp.eq.s32.totalorder %s64, 0
      %s67 = sadd.s32 %s66, 1
      %s68 = scalar_select %p65, %s66, %s67
      %p71 = pneg %p65
      %p72 = scmp.eq.s32.totalorder %s9, 32
      %p73 = por %p71, %p72
      %p74 = scmp.ne.s32.totalorder %s66, %s69
      %p75 = scmp.eq.s32.totalorder %s9, 0
      %p76 = por %p74, %p75
      %p77 = scmp.ne.s32.totalorder %s66, %s69
      %p78 = scmp.eq.s32.totalorder %s14, 32
      %p79 = por %p77, %p78
      %p80 = scmp.ne.s32.totalorder %s69, %s70
      %p81 = scmp.eq.s32.totalorder %s14, 0
      %p82 = por %p80, %p81
      %p83 = scmp.ne.s32.totalorder %s69, %s70
      %p84 = scmp.eq.s32.totalorder %s15, 32
      %p85 = por %p83, %p84
      %p87 = scmp.ne.s32.totalorder %s70, %s86
      %p88 = scmp.eq.s32.totalorder %s15, 0
      %p89 = por %p87, %p88
      %s90 = ssub.s32 %s9, %s16
      %p91 = scmp.eq.s32.totalorder %s90, 0
      %s93 = sadd.s32 %s92, 1
      %s94 = scalar_select %p91, %s92, %s93
      %p97 = pneg %p91
      %p98 = scmp.eq.s32.totalorder %s9, 32
      %p99 = por %p97, %p98
      %p100 = scmp.ne.s32.totalorder %s92, %s95
      %p101 = scmp.eq.s32.totalorder %s9, 0
      %p102 = por %p100, %p101
      %p103 = scmp.ne.s32.totalorder %s92, %s95
      %p104 = scmp.eq.s32.totalorder %s14, 32
      %p105 = por %p103, %p104
      %p106 = scmp.ne.s32.totalorder %s95, %s96
      %p107 = scmp.eq.s32.totalorder %s14, 0
      %p108 = por %p106, %p107
      %p109 = scmp.ne.s32.totalorder %s95, %s96
      %p110 = scmp.eq.s32.totalorder %s15, 32
      %p111 = por %p109, %p110
      %p113 = scmp.ne.s32.totalorder %s96, %s112
      %p114 = scmp.eq.s32.totalorder %s15, 0
      %p115 = por %p113, %p114
      %p116 = scmp.le.s32.totalorder 1, %s9
      %p117 = scmp.lt.s32.totalorder %s9, 34
      %p118 = pnand %p116, %p117
      %p119 = pneg %p118
      // Predicated region
      $region9: #{skin_model1_forward.6} parent=5 // pred_check
        _
      $region10: #{skin_model1_forward.6} parent=5 // pred_check_branch
        %121 = sbr.rel (%p118) target = $region12
      $region11: #{skin_model1_forward.6} parent=5 // pred_region
        %s122 = ssub.s32 %s9, 1
        // Predicated region
        $region13: #{skin_model1_forward.6} parent=11 // pred_check
          %p123 = pneg %p30
        $region14: #{skin_model1_forward.6} parent=11 // pred_check_branch
          %125 = sbr.rel (%p123) target = $region16
        $region15: #{skin_model1_forward.6} parent=11 // pred_region
          _
        $region16: #{skin_model1_forward.6} parent=11 // pred_fallthru
          _
      $region12: #{skin_model1_forward.6} parent=5 // pred_fallthru
        _
      %p126 = scmp.lt.s32.totalorder %s9, 33
      // Predicated region
      $region17: #{skin_model1_forward.6} parent=5 // pred_check
        %p127 = pneg %p126
      $region18: #{skin_model1_forward.6} parent=5 // pred_check_branch
        %129 = sbr.rel (%p127) target = $region20
      $region19: #{skin_model1_forward.6} parent=5 // pred_region
        // Predicated region
        $region21: #{skin_model1_forward.6} parent=19 // pred_check
          %p130 = pneg %p50
        $region22: #{skin_model1_forward.6} parent=19 // pred_check_branch
          %132 = sbr.rel (%p130) target = $region24
        $region23: #{skin_model1_forward.6} parent=19 // pred_region
          %s133 = sand.u32 %s40, 1
          %s134 = sand.u32 %s40, 1
          %s135 = smul.addr %s134, 2048
          %s136 = scalar_lea.vmem [#allocation2], %s135
          %s137 = smul.u32 16, %s9
          %s138 = smul.addr %s137, 8
          %s139 = scalar_lea.vmem %s1, %s138
          // Predicated region
          $region25: #{skin_model1_forward.6} parent=23 // pred_check
            _
          $region26: #{skin_model1_forward.6} parent=23 // pred_check_branch
            %141 = sbr.rel (0) target = $region28
          $region27: #{skin_model1_forward.6} parent=23 // pred_region
            // Predicated region
            $region29: #{skin_model1_forward.6} parent=27 // pred_check
              _
            $region30: #{skin_model1_forward.6} parent=27 // pred_check_branch
              %143 = sbr.rel (0) target = $region32
            $region31: #{skin_model1_forward.6} parent=27 // pred_region
              loop: start=0, step=1, limit=1
              $region33: #{skin_model1_forward.6} parent=31 // loop_pre_header
                _
              $region34: #{skin_model1_forward.6} parent=31 // loop_header
                %s145 = sphi 0, %s149
                %p146 = scmp.ge.s32.totalorder %s145, 1
                %s150 = sphi %s139, %s139
                %s151 = sphi %s136, %s136
              $region35: #{skin_model1_forward.6} parent=31 // loop_header_branch
                %148 = sbr.rel (%p146) target = $region39
              $region36: #{skin_model1_forward.6} parent=31 // loop_body
                %v152 = vld [vmem:[%s150] sm:$0xff]
                %153 = vst [vmem:[%s151] sm:$0xff] %v152
                %v154 = vld [vmem:[%s150 + $0x8] sm:$0xff]
                %155 = vst [vmem:[%s151 + $0x8] sm:$0xff] %v154
                %v156 = vld [vmem:[%s150 + $0x10] sm:$0xff]
                %157 = vst [vmem:[%s151 + $0x10] sm:$0xff] %v156
                %v158 = vld [vmem:[%s150 + $0x18] sm:$0xff]
                %159 = vst [vmem:[%s151 + $0x18] sm:$0xff] %v158
                %v160 = vld [vmem:[%s150 + $0x20] sm:$0xff]
                %161 = vst [vmem:[%s151 + $0x20] sm:$0xff] %v160
                %v162 = vld [vmem:[%s150 + $0x28] sm:$0xff]
                %163 = vst [vmem:[%s151 + $0x28] sm:$0xff] %v162
                %v164 = vld [vmem:[%s150 + $0x30] sm:$0xff]
                %165 = vst [vmem:[%s151 + $0x30] sm:$0xff] %v164
                %v166 = vld [vmem:[%s150 + $0x38] sm:$0xff]
                %167 = vst [vmem:[%s151 + $0x38] sm:$0xff] %v166
                %v168 = vld [vmem:[%s150 + $0x40] sm:$0xff]
                %169 = vst [vmem:[%s151 + $0x40] sm:$0xff] %v168
                %v170 = vld [vmem:[%s150 + $0x48] sm:$0xff]
                %171 = vst [vmem:[%s151 + $0x48] sm:$0xff] %v170
                %v172 = vld [vmem:[%s150 + $0x50] sm:$0xff]
                %173 = vst [vmem:[%s151 + $0x50] sm:$0xff] %v172
                %v174 = vld [vmem:[%s150 + $0x58] sm:$0xff]
                %175 = vst [vmem:[%s151 + $0x58] sm:$0xff] %v174
                %v176 = vld [vmem:[%s150 + $0x60] sm:$0xff]
                %177 = vst [vmem:[%s151 + $0x60] sm:$0xff] %v176
                %v178 = vld [vmem:[%s150 + $0x68] sm:$0xff]
                %179 = vst [vmem:[%s151 + $0x68] sm:$0xff] %v178
                %v180 = vld [vmem:[%s150 + $0x70] sm:$0xff]
                %181 = vst [vmem:[%s151 + $0x70] sm:$0xff] %v180
                %v182 = vld [vmem:[%s150 + $0x78] sm:$0xff]
                %183 = vst [vmem:[%s151 + $0x78] sm:$0xff] %v182
                %v184 = vld [vmem:[%s150 + $0x1080] sm:$0xff]
                %185 = vst [vmem:[%s151 + $0x80] sm:$0xff] %v184
                %v186 = vld [vmem:[%s150 + $0x1088] sm:$0xff]
                %187 = vst [vmem:[%s151 + $0x88] sm:$0xff] %v186
                %v188 = vld [vmem:[%s150 + $0x1090] sm:$0xff]
                %189 = vst [vmem:[%s151 + $0x90] sm:$0xff] %v188
                %v190 = vld [vmem:[%s150 + $0x1098] sm:$0xff]
                %191 = vst [vmem:[%s151 + $0x98] sm:$0xff] %v190
                %v192 = vld [vmem:[%s150 + $0x10a0] sm:$0xff]
                %193 = vst [vmem:[%s151 + $0xa0] sm:$0xff] %v192
                %v194 = vld [vmem:[%s150 + $0x10a8] sm:$0xff]
                %195 = vst [vmem:[%s151 + $0xa8] sm:$0xff] %v194
                %v196 = vld [vmem:[%s150 + $0x10b0] sm:$0xff]
                %197 = vst [vmem:[%s151 + $0xb0] sm:$0xff] %v196
                %v198 = vld [vmem:[%s150 + $0x10b8] sm:$0xff]
                %199 = vst [vmem:[%s151 + $0xb8] sm:$0xff] %v198
                %v200 = vld [vmem:[%s150 + $0x10c0] sm:$0xff]
                %201 = vst [vmem:[%s151 + $0xc0] sm:$0xff] %v200
                %v202 = vld [vmem:[%s150 + $0x10c8] sm:$0xff]
                %203 = vst [vmem:[%s151 + $0xc8] sm:$0xff] %v202
                %v204 = vld [vmem:[%s150 + $0x10d0] sm:$0xff]
                %205 = vst [vmem:[%s151 + $0xd0] sm:$0xff] %v204
                %v206 = vld [vmem:[%s150 + $0x10d8] sm:$0xff]
                %207 = vst [vmem:[%s151 + $0xd8] sm:$0xff] %v206
                %v208 = vld [vmem:[%s150 + $0x10e0] sm:$0xff]
                %209 = vst [vmem:[%s151 + $0xe0] sm:$0xff] %v208
                %v210 = vld [vmem:[%s150 + $0x10e8] sm:$0xff]
                %211 = vst [vmem:[%s151 + $0xe8] sm:$0xff] %v210
                %v212 = vld [vmem:[%s150 + $0x10f0] sm:$0xff]
                %213 = vst [vmem:[%s151 + $0xf0] sm:$0xff] %v212
                %v214 = vld [vmem:[%s150 + $0x10f8] sm:$0xff]
                %215 = vst [vmem:[%s151 + $0xf8] sm:$0xff] %v214
                %v216 = vld [vmem:[%s150 + $0x2100] sm:$0xff]
                %217 = vst [vmem:[%s151 + $0x100] sm:$0xff] %v216
                %v218 = vld [vmem:[%s150 + $0x2108] sm:$0xff]
                %219 = vst [vmem:[%s151 + $0x108] sm:$0xff] %v218
                %v220 = vld [vmem:[%s150 + $0x2110] sm:$0xff]
                %221 = vst [vmem:[%s151 + $0x110] sm:$0xff] %v220
                %v222 = vld [vmem:[%s150 + $0x2118] sm:$0xff]
                %223 = vst [vmem:[%s151 + $0x118] sm:$0xff] %v222
                %v224 = vld [vmem:[%s150 + $0x2120] sm:$0xff]
                %225 = vst [vmem:[%s151 + $0x120] sm:$0xff] %v224
                %v226 = vld [vmem:[%s150 + $0x2128] sm:$0xff]
                %227 = vst [vmem:[%s151 + $0x128] sm:$0xff] %v226
                %v228 = vld [vmem:[%s150 + $0x2130] sm:$0xff]
                %229 = vst [vmem:[%s151 + $0x130] sm:$0xff] %v228
                %v230 = vld [vmem:[%s150 + $0x2138] sm:$0xff]
                %231 = vst [vmem:[%s151 + $0x138] sm:$0xff] %v230
                %v232 = vld [vmem:[%s150 + $0x2140] sm:$0xff]
                %233 = vst [vmem:[%s151 + $0x140] sm:$0xff] %v232
                %v234 = vld [vmem:[%s150 + $0x2148] sm:$0xff]
                %235 = vst [vmem:[%s151 + $0x148] sm:$0xff] %v234
                %v236 = vld [vmem:[%s150 + $0x2150] sm:$0xff]
                %237 = vst [vmem:[%s151 + $0x150] sm:$0xff] %v236
                %v238 = vld [vmem:[%s150 + $0x2158] sm:$0xff]
                %239 = vst [vmem:[%s151 + $0x158] sm:$0xff] %v238
                %v240 = vld [vmem:[%s150 + $0x2160] sm:$0xff]
                %241 = vst [vmem:[%s151 + $0x160] sm:$0xff] %v240
                %v242 = vld [vmem:[%s150 + $0x2168] sm:$0xff]
                %243 = vst [vmem:[%s151 + $0x168] sm:$0xff] %v242
                %v244 = vld [vmem:[%s150 + $0x2170] sm:$0xff]
                %245 = vst [vmem:[%s151 + $0x170] sm:$0xff] %v244
                %v246 = vld [vmem:[%s150 + $0x2178] sm:$0xff]
                %247 = vst [vmem:[%s151 + $0x178] sm:$0xff] %v246
                %v248 = vld [vmem:[%s150 + $0x3180] sm:$0xff]
                %249 = vst [vmem:[%s151 + $0x180] sm:$0xff] %v248
                %v250 = vld [vmem:[%s150 + $0x3188] sm:$0xff]
                %251 = vst [vmem:[%s151 + $0x188] sm:$0xff] %v250
                %v252 = vld [vmem:[%s150 + $0x3190] sm:$0xff]
                %253 = vst [vmem:[%s151 + $0x190] sm:$0xff] %v252
                %v254 = vld [vmem:[%s150 + $0x3198] sm:$0xff]
                %255 = vst [vmem:[%s151 + $0x198] sm:$0xff] %v254
                %v256 = vld [vmem:[%s150 + $0x31a0] sm:$0xff]
                %257 = vst [vmem:[%s151 + $0x1a0] sm:$0xff] %v256
                %v258 = vld [vmem:[%s150 + $0x31a8] sm:$0xff]
                %259 = vst [vmem:[%s151 + $0x1a8] sm:$0xff] %v258
                %v260 = vld [vmem:[%s150 + $0x31b0] sm:$0xff]
                %261 = vst [vmem:[%s151 + $0x1b0] sm:$0xff] %v260
                %v262 = vld [vmem:[%s150 + $0x31b8] sm:$0xff]
                %263 = vst [vmem:[%s151 + $0x1b8] sm:$0xff] %v262
                %v264 = vld [vmem:[%s150 + $0x31c0] sm:$0xff]
                %265 = vst [vmem:[%s151 + $0x1c0] sm:$0xff] %v264
                %v266 = vld [vmem:[%s150 + $0x31c8] sm:$0xff]
                %267 = vst [vmem:[%s151 + $0x1c8] sm:$0xff] %v266
                %v268 = vld [vmem:[%s150 + $0x31d0] sm:$0xff]
                %269 = vst [vmem:[%s151 + $0x1d0] sm:$0xff] %v268
                %v270 = vld [vmem:[%s150 + $0x31d8] sm:$0xff]
                %271 = vst [vmem:[%s151 + $0x1d8] sm:$0xff] %v270
                %v272 = vld [vmem:[%s150 + $0x31e0] sm:$0xff]
                %273 = vst [vmem:[%s151 + $0x1e0] sm:$0xff] %v272
                %v274 = vld [vmem:[%s150 + $0x31e8] sm:$0xff]
                %275 = vst [vmem:[%s151 + $0x1e8] sm:$0xff] %v274
                %v276 = vld [vmem:[%s150 + $0x31f0] sm:$0xff]
                %277 = vst [vmem:[%s151 + $0x1f0] sm:$0xff] %v276
                %v278 = vld [vmem:[%s150 + $0x31f8] sm:$0xff]
                %279 = vst [vmem:[%s151 + $0x1f8] sm:$0xff] %v278
                %v280 = vld [vmem:[%s150 + $0x4200] sm:$0xff]
                %281 = vst [vmem:[%s151 + $0x200] sm:$0xff] %v280
                %v282 = vld [vmem:[%s150 + $0x4208] sm:$0xff]
                %283 = vst [vmem:[%s151 + $0x208] sm:$0xff] %v282
                %v284 = vld [vmem:[%s150 + $0x4210] sm:$0xff]
                %285 = vst [vmem:[%s151 + $0x210] sm:$0xff] %v284
                %v286 = vld [vmem:[%s150 + $0x4218] sm:$0xff]
                %287 = vst [vmem:[%s151 + $0x218] sm:$0xff] %v286
                %v288 = vld [vmem:[%s150 + $0x4220] sm:$0xff]
                %289 = vst [vmem:[%s151 + $0x220] sm:$0xff] %v288
                %v290 = vld [vmem:[%s150 + $0x4228] sm:$0xff]
                %291 = vst [vmem:[%s151 + $0x228] sm:$0xff] %v290
                %v292 = vld [vmem:[%s150 + $0x4230] sm:$0xff]
                %293 = vst [vmem:[%s151 + $0x230] sm:$0xff] %v292
                %v294 = vld [vmem:[%s150 + $0x4238] sm:$0xff]
                %295 = vst [vmem:[%s151 + $0x238] sm:$0xff] %v294
                %v296 = vld [vmem:[%s150 + $0x4240] sm:$0xff]
                %297 = vst [vmem:[%s151 + $0x240] sm:$0xff] %v296
                %v298 = vld [vmem:[%s150 + $0x4248] sm:$0xff]
                %299 = vst [vmem:[%s151 + $0x248] sm:$0xff] %v298
                %v300 = vld [vmem:[%s150 + $0x4250] sm:$0xff]
                %301 = vst [vmem:[%s151 + $0x250] sm:$0xff] %v300
                %v302 = vld [vmem:[%s150 + $0x4258] sm:$0xff]
                %303 = vst [vmem:[%s151 + $0x258] sm:$0xff] %v302
                %v304 = vld [vmem:[%s150 + $0x4260] sm:$0xff]
                %305 = vst [vmem:[%s151 + $0x260] sm:$0xff] %v304
                %v306 = vld [vmem:[%s150 + $0x4268] sm:$0xff]
                %307 = vst [vmem:[%s151 + $0x268] sm:$0xff] %v306
                %v308 = vld [vmem:[%s150 + $0x4270] sm:$0xff]
                %309 = vst [vmem:[%s151 + $0x270] sm:$0xff] %v308
                %v310 = vld [vmem:[%s150 + $0x4278] sm:$0xff]
                %311 = vst [vmem:[%s151 + $0x278] sm:$0xff] %v310
                %v312 = vld [vmem:[%s150 + $0x5280] sm:$0xff]
                %313 = vst [vmem:[%s151 + $0x280] sm:$0xff] %v312
                %v314 = vld [vmem:[%s150 + $0x5288] sm:$0xff]
                %315 = vst [vmem:[%s151 + $0x288] sm:$0xff] %v314
                %v316 = vld [vmem:[%s150 + $0x5290] sm:$0xff]
                %317 = vst [vmem:[%s151 + $0x290] sm:$0xff] %v316
                %v318 = vld [vmem:[%s150 + $0x5298] sm:$0xff]
                %319 = vst [vmem:[%s151 + $0x298] sm:$0xff] %v318
                %v320 = vld [vmem:[%s150 + $0x52a0] sm:$0xff]
                %321 = vst [vmem:[%s151 + $0x2a0] sm:$0xff] %v320
                %v322 = vld [vmem:[%s150 + $0x52a8] sm:$0xff]
                %323 = vst [vmem:[%s151 + $0x2a8] sm:$0xff] %v322
                %v324 = vld [vmem:[%s150 + $0x52b0] sm:$0xff]
                %325 = vst [vmem:[%s151 + $0x2b0] sm:$0xff] %v324
                %v326 = vld [vmem:[%s150 + $0x52b8] sm:$0xff]
                %327 = vst [vmem:[%s151 + $0x2b8] sm:$0xff] %v326
                %v328 = vld [vmem:[%s150 + $0x52c0] sm:$0xff]
                %329 = vst [vmem:[%s151 + $0x2c0] sm:$0xff] %v328
                %v330 = vld [vmem:[%s150 + $0x52c8] sm:$0xff]
                %331 = vst [vmem:[%s151 + $0x2c8] sm:$0xff] %v330
                %v332 = vld [vmem:[%s150 + $0x52d0] sm:$0xff]
                %333 = vst [vmem:[%s151 + $0x2d0] sm:$0xff] %v332
                %v334 = vld [vmem:[%s150 + $0x52d8] sm:$0xff]
                %335 = vst [vmem:[%s151 + $0x2d8] sm:$0xff] %v334
                %v336 = vld [vmem:[%s150 + $0x52e0] sm:$0xff]
                %337 = vst [vmem:[%s151 + $0x2e0] sm:$0xff] %v336
                %v338 = vld [vmem:[%s150 + $0x52e8] sm:$0xff]
                %339 = vst [vmem:[%s151 + $0x2e8] sm:$0xff] %v338
                %v340 = vld [vmem:[%s150 + $0x52f0] sm:$0xff]
                %341 = vst [vmem:[%s151 + $0x2f0] sm:$0xff] %v340
                %v342 = vld [vmem:[%s150 + $0x52f8] sm:$0xff]
                %343 = vst [vmem:[%s151 + $0x2f8] sm:$0xff] %v342
                %v344 = vld [vmem:[%s150 + $0x6300] sm:$0xff]
                %345 = vst [vmem:[%s151 + $0x300] sm:$0xff] %v344
                %v346 = vld [vmem:[%s150 + $0x6308] sm:$0xff]
                %347 = vst [vmem:[%s151 + $0x308] sm:$0xff] %v346
                %v348 = vld [vmem:[%s150 + $0x6310] sm:$0xff]
                %349 = vst [vmem:[%s151 + $0x310] sm:$0xff] %v348
                %v350 = vld [vmem:[%s150 + $0x6318] sm:$0xff]
                %351 = vst [vmem:[%s151 + $0x318] sm:$0xff] %v350
                %v352 = vld [vmem:[%s150 + $0x6320] sm:$0xff]
                %353 = vst [vmem:[%s151 + $0x320] sm:$0xff] %v352
                %v354 = vld [vmem:[%s150 + $0x6328] sm:$0xff]
                %355 = vst [vmem:[%s151 + $0x328] sm:$0xff] %v354
                %v356 = vld [vmem:[%s150 + $0x6330] sm:$0xff]
                %357 = vst [vmem:[%s151 + $0x330] sm:$0xff] %v356
                %v358 = vld [vmem:[%s150 + $0x6338] sm:$0xff]
                %359 = vst [vmem:[%s151 + $0x338] sm:$0xff] %v358
                %v360 = vld [vmem:[%s150 + $0x6340] sm:$0xff]
                %361 = vst [vmem:[%s151 + $0x340] sm:$0xff] %v360
                %v362 = vld [vmem:[%s150 + $0x6348] sm:$0xff]
                %363 = vst [vmem:[%s151 + $0x348] sm:$0xff] %v362
                %v364 = vld [vmem:[%s150 + $0x6350] sm:$0xff]
                %365 = vst [vmem:[%s151 + $0x350] sm:$0xff] %v364
                %v366 = vld [vmem:[%s150 + $0x6358] sm:$0xff]
                %367 = vst [vmem:[%s151 + $0x358] sm:$0xff] %v366
                %v368 = vld [vmem:[%s150 + $0x6360] sm:$0xff]
                %369 = vst [vmem:[%s151 + $0x360] sm:$0xff] %v368
                %v370 = vld [vmem:[%s150 + $0x6368] sm:$0xff]
                %371 = vst [vmem:[%s151 + $0x368] sm:$0xff] %v370
                %v372 = vld [vmem:[%s150 + $0x6370] sm:$0xff]
                %373 = vst [vmem:[%s151 + $0x370] sm:$0xff] %v372
                %v374 = vld [vmem:[%s150 + $0x6378] sm:$0xff]
                %375 = vst [vmem:[%s151 + $0x378] sm:$0xff] %v374
                %v376 = vld [vmem:[%s150 + $0x7380] sm:$0xff]
                %377 = vst [vmem:[%s151 + $0x380] sm:$0xff] %v376
                %v378 = vld [vmem:[%s150 + $0x7388] sm:$0xff]
                %379 = vst [vmem:[%s151 + $0x388] sm:$0xff] %v378
                %v380 = vld [vmem:[%s150 + $0x7390] sm:$0xff]
                %381 = vst [vmem:[%s151 + $0x390] sm:$0xff] %v380
                %v382 = vld [vmem:[%s150 + $0x7398] sm:$0xff]
                %383 = vst [vmem:[%s151 + $0x398] sm:$0xff] %v382
                %v384 = vld [vmem:[%s150 + $0x73a0] sm:$0xff]
                %385 = vst [vmem:[%s151 + $0x3a0] sm:$0xff] %v384
                %v386 = vld [vmem:[%s150 + $0x73a8] sm:$0xff]
                %387 = vst [vmem:[%s151 + $0x3a8] sm:$0xff] %v386
                %v388 = vld [vmem:[%s150 + $0x73b0] sm:$0xff]
                %389 = vst [vmem:[%s151 + $0x3b0] sm:$0xff] %v388
                %v390 = vld [vmem:[%s150 + $0x73b8] sm:$0xff]
                %391 = vst [vmem:[%s151 + $0x3b8] sm:$0xff] %v390
                %v392 = vld [vmem:[%s150 + $0x73c0] sm:$0xff]
                %393 = vst [vmem:[%s151 + $0x3c0] sm:$0xff] %v392
                %v394 = vld [vmem:[%s150 + $0x73c8] sm:$0xff]
                %395 = vst [vmem:[%s151 + $0x3c8] sm:$0xff] %v394
                %v396 = vld [vmem:[%s150 + $0x73d0] sm:$0xff]
                %397 = vst [vmem:[%s151 + $0x3d0] sm:$0xff] %v396
                %v398 = vld [vmem:[%s150 + $0x73d8] sm:$0xff]
                %399 = vst [vmem:[%s151 + $0x3d8] sm:$0xff] %v398
                %v400 = vld [vmem:[%s150 + $0x73e0] sm:$0xff]
                %401 = vst [vmem:[%s151 + $0x3e0] sm:$0xff] %v400
                %v402 = vld [vmem:[%s150 + $0x73e8] sm:$0xff]
                %403 = vst [vmem:[%s151 + $0x3e8] sm:$0xff] %v402
                %v404 = vld [vmem:[%s150 + $0x73f0] sm:$0xff]
                %405 = vst [vmem:[%s151 + $0x3f0] sm:$0xff] %v404
                %v406 = vld [vmem:[%s150 + $0x73f8] sm:$0xff]
                %407 = vst [vmem:[%s151 + $0x3f8] sm:$0xff] %v406
                %v408 = vld [vmem:[%s150 + $0x8400] sm:$0xff]
                %409 = vst [vmem:[%s151 + $0x400] sm:$0xff] %v408
                %v410 = vld [vmem:[%s150 + $0x8408] sm:$0xff]
                %411 = vst [vmem:[%s151 + $0x408] sm:$0xff] %v410
                %v412 = vld [vmem:[%s150 + $0x8410] sm:$0xff]
                %413 = vst [vmem:[%s151 + $0x410] sm:$0xff] %v412
                %v414 = vld [vmem:[%s150 + $0x8418] sm:$0xff]
                %415 = vst [vmem:[%s151 + $0x418] sm:$0xff] %v414
                %v416 = vld [vmem:[%s150 + $0x8420] sm:$0xff]
                %417 = vst [vmem:[%s151 + $0x420] sm:$0xff] %v416
                %v418 = vld [vmem:[%s150 + $0x8428] sm:$0xff]
                %419 = vst [vmem:[%s151 + $0x428] sm:$0xff] %v418
                %v420 = vld [vmem:[%s150 + $0x8430] sm:$0xff]
                %421 = vst [vmem:[%s151 + $0x430] sm:$0xff] %v420
                %v422 = vld [vmem:[%s150 + $0x8438] sm:$0xff]
                %423 = vst [vmem:[%s151 + $0x438] sm:$0xff] %v422
                %v424 = vld [vmem:[%s150 + $0x8440] sm:$0xff]
                %425 = vst [vmem:[%s151 + $0x440] sm:$0xff] %v424
                %v426 = vld [vmem:[%s150 + $0x8448] sm:$0xff]
                %427 = vst [vmem:[%s151 + $0x448] sm:$0xff] %v426
                %v428 = vld [vmem:[%s150 + $0x8450] sm:$0xff]
                %429 = vst [vmem:[%s151 + $0x450] sm:$0xff] %v428
                %v430 = vld [vmem:[%s150 + $0x8458] sm:$0xff]
                %431 = vst [vmem:[%s151 + $0x458] sm:$0xff] %v430
                %v432 = vld [vmem:[%s150 + $0x8460] sm:$0xff]
                %433 = vst [vmem:[%s151 + $0x460] sm:$0xff] %v432
                %v434 = vld [vmem:[%s150 + $0x8468] sm:$0xff]
                %435 = vst [vmem:[%s151 + $0x468] sm:$0xff] %v434
                %v436 = vld [vmem:[%s150 + $0x8470] sm:$0xff]
                %437 = vst [vmem:[%s151 + $0x470] sm:$0xff] %v436
                %v438 = vld [vmem:[%s150 + $0x8478] sm:$0xff]
                %439 = vst [vmem:[%s151 + $0x478] sm:$0xff] %v438
                %v440 = vld [vmem:[%s150 + $0x9480] sm:$0xff]
                %441 = vst [vmem:[%s151 + $0x480] sm:$0xff] %v440
                %v442 = vld [vmem:[%s150 + $0x9488] sm:$0xff]
                %443 = vst [vmem:[%s151 + $0x488] sm:$0xff] %v442
                %v444 = vld [vmem:[%s150 + $0x9490] sm:$0xff]
                %445 = vst [vmem:[%s151 + $0x490] sm:$0xff] %v444
                %v446 = vld [vmem:[%s150 + $0x9498] sm:$0xff]
                %447 = vst [vmem:[%s151 + $0x498] sm:$0xff] %v446
                %v448 = vld [vmem:[%s150 + $0x94a0] sm:$0xff]
                %449 = vst [vmem:[%s151 + $0x4a0] sm:$0xff] %v448
                %v450 = vld [vmem:[%s150 + $0x94a8] sm:$0xff]
                %451 = vst [vmem:[%s151 + $0x4a8] sm:$0xff] %v450
                %v452 = vld [vmem:[%s150 + $0x94b0] sm:$0xff]
                %453 = vst [vmem:[%s151 + $0x4b0] sm:$0xff] %v452
                %v454 = vld [vmem:[%s150 + $0x94b8] sm:$0xff]
                %455 = vst [vmem:[%s151 + $0x4b8] sm:$0xff] %v454
                %v456 = vld [vmem:[%s150 + $0x94c0] sm:$0xff]
                %457 = vst [vmem:[%s151 + $0x4c0] sm:$0xff] %v456
                %v458 = vld [vmem:[%s150 + $0x94c8] sm:$0xff]
                %459 = vst [vmem:[%s151 + $0x4c8] sm:$0xff] %v458
                %v460 = vld [vmem:[%s150 + $0x94d0] sm:$0xff]
                %461 = vst [vmem:[%s151 + $0x4d0] sm:$0xff] %v460
                %v462 = vld [vmem:[%s150 + $0x94d8] sm:$0xff]
                %463 = vst [vmem:[%s151 + $0x4d8] sm:$0xff] %v462
                %v464 = vld [vmem:[%s150 + $0x94e0] sm:$0xff]
                %465 = vst [vmem:[%s151 + $0x4e0] sm:$0xff] %v464
                %v466 = vld [vmem:[%s150 + $0x94e8] sm:$0xff]
                %467 = vst [vmem:[%s151 + $0x4e8] sm:$0xff] %v466
                %v468 = vld [vmem:[%s150 + $0x94f0] sm:$0xff]
                %469 = vst [vmem:[%s151 + $0x4f0] sm:$0xff] %v468
                %v470 = vld [vmem:[%s150 + $0x94f8] sm:$0xff]
                %471 = vst [vmem:[%s151 + $0x4f8] sm:$0xff] %v470
                %v472 = vld [vmem:[%s150 + $0xa500] sm:$0xff]
                %473 = vst [vmem:[%s151 + $0x500] sm:$0xff] %v472
                %v474 = vld [vmem:[%s150 + $0xa508] sm:$0xff]
                %475 = vst [vmem:[%s151 + $0x508] sm:$0xff] %v474
                %v476 = vld [vmem:[%s150 + $0xa510] sm:$0xff]
                %477 = vst [vmem:[%s151 + $0x510] sm:$0xff] %v476
                %v478 = vld [vmem:[%s150 + $0xa518] sm:$0xff]
                %479 = vst [vmem:[%s151 + $0x518] sm:$0xff] %v478
                %v480 = vld [vmem:[%s150 + $0xa520] sm:$0xff]
                %481 = vst [vmem:[%s151 + $0x520] sm:$0xff] %v480
                %v482 = vld [vmem:[%s150 + $0xa528] sm:$0xff]
                %483 = vst [vmem:[%s151 + $0x528] sm:$0xff] %v482
                %v484 = vld [vmem:[%s150 + $0xa530] sm:$0xff]
                %485 = vst [vmem:[%s151 + $0x530] sm:$0xff] %v484
                %v486 = vld [vmem:[%s150 + $0xa538] sm:$0xff]
                %487 = vst [vmem:[%s151 + $0x538] sm:$0xff] %v486
                %v488 = vld [vmem:[%s150 + $0xa540] sm:$0xff]
                %489 = vst [vmem:[%s151 + $0x540] sm:$0xff] %v488
                %v490 = vld [vmem:[%s150 + $0xa548] sm:$0xff]
                %491 = vst [vmem:[%s151 + $0x548] sm:$0xff] %v490
                %v492 = vld [vmem:[%s150 + $0xa550] sm:$0xff]
                %493 = vst [vmem:[%s151 + $0x550] sm:$0xff] %v492
                %v494 = vld [vmem:[%s150 + $0xa558] sm:$0xff]
                %495 = vst [vmem:[%s151 + $0x558] sm:$0xff] %v494
                %v496 = vld [vmem:[%s150 + $0xa560] sm:$0xff]
                %497 = vst [vmem:[%s151 + $0x560] sm:$0xff] %v496
                %v498 = vld [vmem:[%s150 + $0xa568] sm:$0xff]
                %499 = vst [vmem:[%s151 + $0x568] sm:$0xff] %v498
                %v500 = vld [vmem:[%s150 + $0xa570] sm:$0xff]
                %501 = vst [vmem:[%s151 + $0x570] sm:$0xff] %v500
                %v502 = vld [vmem:[%s150 + $0xa578] sm:$0xff]
                %503 = vst [vmem:[%s151 + $0x578] sm:$0xff] %v502
                %v504 = vld [vmem:[%s150 + $0xb580] sm:$0xff]
                %505 = vst [vmem:[%s151 + $0x580] sm:$0xff] %v504
                %v506 = vld [vmem:[%s150 + $0xb588] sm:$0xff]
                %507 = vst [vmem:[%s151 + $0x588] sm:$0xff] %v506
                %v508 = vld [vmem:[%s150 + $0xb590] sm:$0xff]
                %509 = vst [vmem:[%s151 + $0x590] sm:$0xff] %v508
                %v510 = vld [vmem:[%s150 + $0xb598] sm:$0xff]
                %511 = vst [vmem:[%s151 + $0x598] sm:$0xff] %v510
                %v512 = vld [vmem:[%s150 + $0xb5a0] sm:$0xff]
                %513 = vst [vmem:[%s151 + $0x5a0] sm:$0xff] %v512
                %v514 = vld [vmem:[%s150 + $0xb5a8] sm:$0xff]
                %515 = vst [vmem:[%s151 + $0x5a8] sm:$0xff] %v514
                %v516 = vld [vmem:[%s150 + $0xb5b0] sm:$0xff]
                %517 = vst [vmem:[%s151 + $0x5b0] sm:$0xff] %v516
                %v518 = vld [vmem:[%s150 + $0xb5b8] sm:$0xff]
                %519 = vst [vmem:[%s151 + $0x5b8] sm:$0xff] %v518
                %v520 = vld [vmem:[%s150 + $0xb5c0] sm:$0xff]
                %521 = vst [vmem:[%s151 + $0x5c0] sm:$0xff] %v520
                %v522 = vld [vmem:[%s150 + $0xb5c8] sm:$0xff]
                %523 = vst [vmem:[%s151 + $0x5c8] sm:$0xff] %v522
                %v524 = vld [vmem:[%s150 + $0xb5d0] sm:$0xff]
                %525 = vst [vmem:[%s151 + $0x5d0] sm:$0xff] %v524
                %v526 = vld [vmem:[%s150 + $0xb5d8] sm:$0xff]
                %527 = vst [vmem:[%s151 + $0x5d8] sm:$0xff] %v526
                %v528 = vld [vmem:[%s150 + $0xb5e0] sm:$0xff]
                %529 = vst [vmem:[%s151 + $0x5e0] sm:$0xff] %v528
                %v530 = vld [vmem:[%s150 + $0xb5e8] sm:$0xff]
                %531 = vst [vmem:[%s151 + $0x5e8] sm:$0xff] %v530
                %v532 = vld [vmem:[%s150 + $0xb5f0] sm:$0xff]
                %533 = vst [vmem:[%s151 + $0x5f0] sm:$0xff] %v532
                %v534 = vld [vmem:[%s150 + $0xb5f8] sm:$0xff]
                %535 = vst [vmem:[%s151 + $0x5f8] sm:$0xff] %v534
                %v536 = vld [vmem:[%s150 + $0xc600] sm:$0xff]
                %537 = vst [vmem:[%s151 + $0x600] sm:$0xff] %v536
                %v538 = vld [vmem:[%s150 + $0xc608] sm:$0xff]
                %539 = vst [vmem:[%s151 + $0x608] sm:$0xff] %v538
                %v540 = vld [vmem:[%s150 + $0xc610] sm:$0xff]
                %541 = vst [vmem:[%s151 + $0x610] sm:$0xff] %v540
                %v542 = vld [vmem:[%s150 + $0xc618] sm:$0xff]
                %543 = vst [vmem:[%s151 + $0x618] sm:$0xff] %v542
                %v544 = vld [vmem:[%s150 + $0xc620] sm:$0xff]
                %545 = vst [vmem:[%s151 + $0x620] sm:$0xff] %v544
                %v546 = vld [vmem:[%s150 + $0xc628] sm:$0xff]
                %547 = vst [vmem:[%s151 + $0x628] sm:$0xff] %v546
                %v548 = vld [vmem:[%s150 + $0xc630] sm:$0xff]
                %549 = vst [vmem:[%s151 + $0x630] sm:$0xff] %v548
                %v550 = vld [vmem:[%s150 + $0xc638] sm:$0xff]
                %551 = vst [vmem:[%s151 + $0x638] sm:$0xff] %v550
                %v552 = vld [vmem:[%s150 + $0xc640] sm:$0xff]
                %553 = vst [vmem:[%s151 + $0x640] sm:$0xff] %v552
                %v554 = vld [vmem:[%s150 + $0xc648] sm:$0xff]
                %555 = vst [vmem:[%s151 + $0x648] sm:$0xff] %v554
                %v556 = vld [vmem:[%s150 + $0xc650] sm:$0xff]
                %557 = vst [vmem:[%s151 + $0x650] sm:$0xff] %v556
                %v558 = vld [vmem:[%s150 + $0xc658] sm:$0xff]
                %559 = vst [vmem:[%s151 + $0x658] sm:$0xff] %v558
                %v560 = vld [vmem:[%s150 + $0xc660] sm:$0xff]
                %561 = vst [vmem:[%s151 + $0x660] sm:$0xff] %v560
                %v562 = vld [vmem:[%s150 + $0xc668] sm:$0xff]
                %563 = vst [vmem:[%s151 + $0x668] sm:$0xff] %v562
                %v564 = vld [vmem:[%s150 + $0xc670] sm:$0xff]
                %565 = vst [vmem:[%s151 + $0x670] sm:$0xff] %v564
                %v566 = vld [vmem:[%s150 + $0xc678] sm:$0xff]
                %567 = vst [vmem:[%s151 + $0x678] sm:$0xff] %v566
                %v568 = vld [vmem:[%s150 + $0xd680] sm:$0xff]
                %569 = vst [vmem:[%s151 + $0x680] sm:$0xff] %v568
                %v570 = vld [vmem:[%s150 + $0xd688] sm:$0xff]
                %571 = vst [vmem:[%s151 + $0x688] sm:$0xff] %v570
                %v572 = vld [vmem:[%s150 + $0xd690] sm:$0xff]
                %573 = vst [vmem:[%s151 + $0x690] sm:$0xff] %v572
                %v574 = vld [vmem:[%s150 + $0xd698] sm:$0xff]
                %575 = vst [vmem:[%s151 + $0x698] sm:$0xff] %v574
                %v576 = vld [vmem:[%s150 + $0xd6a0] sm:$0xff]
                %577 = vst [vmem:[%s151 + $0x6a0] sm:$0xff] %v576
                %v578 = vld [vmem:[%s150 + $0xd6a8] sm:$0xff]
                %579 = vst [vmem:[%s151 + $0x6a8] sm:$0xff] %v578
                %v580 = vld [vmem:[%s150 + $0xd6b0] sm:$0xff]
                %581 = vst [vmem:[%s151 + $0x6b0] sm:$0xff] %v580
                %v582 = vld [vmem:[%s150 + $0xd6b8] sm:$0xff]
                %583 = vst [vmem:[%s151 + $0x6b8] sm:$0xff] %v582
                %v584 = vld [vmem:[%s150 + $0xd6c0] sm:$0xff]
                %585 = vst [vmem:[%s151 + $0x6c0] sm:$0xff] %v584
                %v586 = vld [vmem:[%s150 + $0xd6c8] sm:$0xff]
                %587 = vst [vmem:[%s151 + $0x6c8] sm:$0xff] %v586
                %v588 = vld [vmem:[%s150 + $0xd6d0] sm:$0xff]
                %589 = vst [vmem:[%s151 + $0x6d0] sm:$0xff] %v588
                %v590 = vld [vmem:[%s150 + $0xd6d8] sm:$0xff]
                %591 = vst [vmem:[%s151 + $0x6d8] sm:$0xff] %v590
                %v592 = vld [vmem:[%s150 + $0xd6e0] sm:$0xff]
                %593 = vst [vmem:[%s151 + $0x6e0] sm:$0xff] %v592
                %v594 = vld [vmem:[%s150 + $0xd6e8] sm:$0xff]
                %595 = vst [vmem:[%s151 + $0x6e8] sm:$0xff] %v594
                %v596 = vld [vmem:[%s150 + $0xd6f0] sm:$0xff]
                %597 = vst [vmem:[%s151 + $0x6f0] sm:$0xff] %v596
                %v598 = vld [vmem:[%s150 + $0xd6f8] sm:$0xff]
                %599 = vst [vmem:[%s151 + $0x6f8] sm:$0xff] %v598
                %v600 = vld [vmem:[%s150 + $0xe700] sm:$0xff]
                %601 = vst [vmem:[%s151 + $0x700] sm:$0xff] %v600
                %v602 = vld [vmem:[%s150 + $0xe708] sm:$0xff]
                %603 = vst [vmem:[%s151 + $0x708] sm:$0xff] %v602
                %v604 = vld [vmem:[%s150 + $0xe710] sm:$0xff]
                %605 = vst [vmem:[%s151 + $0x710] sm:$0xff] %v604
                %v606 = vld [vmem:[%s150 + $0xe718] sm:$0xff]
                %607 = vst [vmem:[%s151 + $0x718] sm:$0xff] %v606
                %v608 = vld [vmem:[%s150 + $0xe720] sm:$0xff]
                %609 = vst [vmem:[%s151 + $0x720] sm:$0xff] %v608
                %v610 = vld [vmem:[%s150 + $0xe728] sm:$0xff]
                %611 = vst [vmem:[%s151 + $0x728] sm:$0xff] %v610
                %v612 = vld [vmem:[%s150 + $0xe730] sm:$0xff]
                %613 = vst [vmem:[%s151 + $0x730] sm:$0xff] %v612
                %v614 = vld [vmem:[%s150 + $0xe738] sm:$0xff]
                %615 = vst [vmem:[%s151 + $0x738] sm:$0xff] %v614
                %v616 = vld [vmem:[%s150 + $0xe740] sm:$0xff]
                %617 = vst [vmem:[%s151 + $0x740] sm:$0xff] %v616
                %v618 = vld [vmem:[%s150 + $0xe748] sm:$0xff]
                %619 = vst [vmem:[%s151 + $0x748] sm:$0xff] %v618
                %v620 = vld [vmem:[%s150 + $0xe750] sm:$0xff]
                %621 = vst [vmem:[%s151 + $0x750] sm:$0xff] %v620
                %v622 = vld [vmem:[%s150 + $0xe758] sm:$0xff]
                %623 = vst [vmem:[%s151 + $0x758] sm:$0xff] %v622
                %v624 = vld [vmem:[%s150 + $0xe760] sm:$0xff]
                %625 = vst [vmem:[%s151 + $0x760] sm:$0xff] %v624
                %v626 = vld [vmem:[%s150 + $0xe768] sm:$0xff]
                %627 = vst [vmem:[%s151 + $0x768] sm:$0xff] %v626
                %v628 = vld [vmem:[%s150 + $0xe770] sm:$0xff]
                %629 = vst [vmem:[%s151 + $0x770] sm:$0xff] %v628
                %v630 = vld [vmem:[%s150 + $0xe778] sm:$0xff]
                %631 = vst [vmem:[%s151 + $0x778] sm:$0xff] %v630
                %v632 = vld [vmem:[%s150 + $0xf780] sm:$0xff]
                %633 = vst [vmem:[%s151 + $0x780] sm:$0xff] %v632
                %v634 = vld [vmem:[%s150 + $0xf788] sm:$0xff]
                %635 = vst [vmem:[%s151 + $0x788] sm:$0xff] %v634
                %v636 = vld [vmem:[%s150 + $0xf790] sm:$0xff]
                %637 = vst [vmem:[%s151 + $0x790] sm:$0xff] %v636
                %v638 = vld [vmem:[%s150 + $0xf798] sm:$0xff]
                %639 = vst [vmem:[%s151 + $0x798] sm:$0xff] %v638
                %v640 = vld [vmem:[%s150 + $0xf7a0] sm:$0xff]
                %641 = vst [vmem:[%s151 + $0x7a0] sm:$0xff] %v640
                %v642 = vld [vmem:[%s150 + $0xf7a8] sm:$0xff]
                %643 = vst [vmem:[%s151 + $0x7a8] sm:$0xff] %v642
                %v644 = vld [vmem:[%s150 + $0xf7b0] sm:$0xff]
                %645 = vst [vmem:[%s151 + $0x7b0] sm:$0xff] %v644
                %v646 = vld [vmem:[%s150 + $0xf7b8] sm:$0xff]
                %647 = vst [vmem:[%s151 + $0x7b8] sm:$0xff] %v646
                %v648 = vld [vmem:[%s150 + $0xf7c0] sm:$0xff]
                %649 = vst [vmem:[%s151 + $0x7c0] sm:$0xff] %v648
                %v650 = vld [vmem:[%s150 + $0xf7c8] sm:$0xff]
                %651 = vst [vmem:[%s151 + $0x7c8] sm:$0xff] %v650
                %v652 = vld [vmem:[%s150 + $0xf7d0] sm:$0xff]
                %653 = vst [vmem:[%s151 + $0x7d0] sm:$0xff] %v652
                %v654 = vld [vmem:[%s150 + $0xf7d8] sm:$0xff]
                %655 = vst [vmem:[%s151 + $0x7d8] sm:$0xff] %v654
                %v656 = vld [vmem:[%s150 + $0xf7e0] sm:$0xff]
                %657 = vst [vmem:[%s151 + $0x7e0] sm:$0xff] %v656
                %v658 = vld [vmem:[%s150 + $0xf7e8] sm:$0xff]
                %659 = vst [vmem:[%s151 + $0x7e8] sm:$0xff] %v658
                %v660 = vld [vmem:[%s150 + $0xf7f0] sm:$0xff]
                %661 = vst [vmem:[%s151 + $0x7f0] sm:$0xff] %v660
                %v662 = vld [vmem:[%s150 + $0xf7f8] sm:$0xff]
                %663 = vst [vmem:[%s151 + $0x7f8] sm:$0xff] %v662
              $region37: #{skin_model1_forward.6} parent=31 // loop_footer
                %s149 = sadd.s32 1, %s145
              $region38: #{skin_model1_forward.6} parent=31 // loop_footer_branch
                %144 = sbr.rel target = $region34
              $region39: #{skin_model1_forward.6} parent=31 // loop_exit
                _
            $region32: #{skin_model1_forward.6} parent=27 // pred_fallthru
              _
            // Predicated region
            $region40: #{skin_model1_forward.6} parent=27 // pred_check
              _
            $region41: #{skin_model1_forward.6} parent=27 // pred_check_branch
              %665 = sbr.rel target = $region43
            $region42: #{skin_model1_forward.6} parent=27 // pred_region
              _
            $region43: #{skin_model1_forward.6} parent=27 // pred_fallthru
              _
          $region28: #{skin_model1_forward.6} parent=23 // pred_fallthru
            _
          %666 = vnop
        $region24: #{skin_model1_forward.6} parent=19 // pred_fallthru
          _
        // Predicated region
        $region44: #{skin_model1_forward.6} parent=19 // pred_check
          %p667 = pneg %p76
        $region45: #{skin_model1_forward.6} parent=19 // pred_check_branch
          %669 = sbr.rel (%p667) target = $region47
        $region46: #{skin_model1_forward.6} parent=19 // pred_region
          %s670 = smul.u32 16, %s9
          %p671 = scmp.lt.s32.totalorder %s670, 527
          %s672 = scalar_select %p671, %s670, 527
          %s673 = scalar_lea.vmem %s2, %s672
          %s674 = smul.u32 16, %s9
        $region47: #{skin_model1_forward.6} parent=19 // pred_fallthru
          _
      $region20: #{skin_model1_forward.6} parent=5 // pred_fallthru
        _
      %p675 = scmp.le.s32.totalorder 1, %s9
      %p676 = scmp.lt.s32.totalorder %s9, 34
      %p677 = pnand %p675, %p676
      %p678 = pneg %p677
      // Predicated region
      $region48: #{skin_model1_forward.6} parent=5 // pred_check
        _
      $region49: #{skin_model1_forward.6} parent=5 // pred_check_branch
        %680 = sbr.rel (%p677) target = $region51
      $region50: #{skin_model1_forward.6} parent=5 // pred_region
        %s681 = ssub.s32 %s9, 1
        %s682 = sand.u32 %s43, 1
        %s683 = sand.u32 %s43, 1
        %s684 = smul.addr %s683, 2048
        %s685 = scalar_lea.vmem [#allocation2], %s684
        // Predicated region
        $region52: #{skin_model1_forward.6} parent=50 // pred_check
          %p686 = pneg %p56
        $region53: #{skin_model1_forward.6} parent=50 // pred_check_branch
          %688 = sbr.rel (%p686) target = $region55
        $region54: #{skin_model1_forward.6} parent=50 // pred_region
          _
        $region55: #{skin_model1_forward.6} parent=50 // pred_fallthru
          _
        %p689 = pneg %p30
        %p690 = pneg %p27
        %s691 = sand.u32 %s43, 1
        %s692 = sand.u32 %s43, 1
        %s693 = smul.addr %s692, 2048
        %s694 = scalar_lea.vmem [#allocation2], %s693
        %p695 = pneg %p56
        %p696 = pneg %p53
        %s697 = smul.u32 16, %s14
        %p698 = scmp.lt.s32.totalorder %s697, 527
        %s699 = scalar_select %p698, %s697, 527
        %s700 = scalar_lea.vmem %s2, %s699
        %p701 = pneg %p82
        %p702 = pneg %p79
        %p703 = pneg %p108
        %p704 = pneg %p105
        %s705 = smul.u32 16, %s14
        %p706 = scmp.lt.s32.totalorder %s705, 527
        %s707 = scalar_select %p706, %s705, 527
        %s708 = scalar_lea.vmem %s3, %s707
        %s709 = smul.u32 16, %s14
        %s710 = smul.u32 16, %s14
        %p711 = scmp.lt.s32.totalorder %s710, 527
        %s712 = scalar_select %p711, %s710, 527
        %s713 = scalar_lea.vmem %s2, %s712
        %s714 = smul.u32 16, %s14
        %s715 = smul.u32 16, %s14
        %p716 = scmp.lt.s32.totalorder %s715, 527
        %s717 = scalar_select %p716, %s715, 527
        %s718 = scalar_lea.vmem %s3, %s717
        %s719 = smul.u32 16, %s14
        %v720 = vld [vmem:[%s0] sm:$0x1]
        %v721 = vld [vmem:[%s685] sm:$0xff]
        %v722 = vld [vmem:[%s685 + $0x8] sm:$0xff]
        %v723 = vld [vmem:[%s685 + $0x10] sm:$0xff]
        %v724 = vld [vmem:[%s685 + $0x18] sm:$0xff]
        %v725 = vld [vmem:[%s685 + $0x20] sm:$0xff]
        %v726 = vld [vmem:[%s685 + $0x28] sm:$0xff]
        %v727 = vld [vmem:[%s685 + $0x30] sm:$0xff]
        %v728 = vld [vmem:[%s685 + $0x38] sm:$0xff]
        %v729 = vld [vmem:[%s685 + $0x40] sm:$0xff]
        %v730 = vld [vmem:[%s685 + $0x48] sm:$0xff]
        %v731 = vld [vmem:[%s685 + $0x50] sm:$0xff]
        %v732 = vld [vmem:[%s685 + $0x58] sm:$0xff]
        %v733 = vld [vmem:[%s685 + $0x60] sm:$0xff]
        %v734 = vld [vmem:[%s685 + $0x68] sm:$0xff]
        %v735 = vld [vmem:[%s685 + $0x70] sm:$0xff]
        %v736 = vld [vmem:[%s685 + $0x78] sm:$0xff]
        %v737 = vld [vmem:[%s685 + $0x80] sm:$0xff]
        %v738 = vld [vmem:[%s685 + $0x88] sm:$0xff]
        %v739 = vld [vmem:[%s685 + $0x90] sm:$0xff]
        %v740 = vld [vmem:[%s685 + $0x98] sm:$0xff]
        %v741 = vld [vmem:[%s685 + $0xa0] sm:$0xff]
        %v742 = vld [vmem:[%s685 + $0xa8] sm:$0xff]
        %v743 = vld [vmem:[%s685 + $0xb0] sm:$0xff]
        %v744 = vld [vmem:[%s685 + $0xb8] sm:$0xff]
        %v745 = vld [vmem:[%s685 + $0xc0] sm:$0xff]
        %v746 = vld [vmem:[%s685 + $0xc8] sm:$0xff]
        %v747 = vld [vmem:[%s685 + $0xd0] sm:$0xff]
        %v748 = vld [vmem:[%s685 + $0xd8] sm:$0xff]
        %v749 = vld [vmem:[%s685 + $0xe0] sm:$0xff]
        %v750 = vld [vmem:[%s685 + $0xe8] sm:$0xff]
        %v751 = vld [vmem:[%s685 + $0xf0] sm:$0xff]
        %v752 = vld [vmem:[%s685 + $0xf8] sm:$0xff]
        %v753 = vld [vmem:[%s685 + $0x100] sm:$0xff]
        %v754 = vld [vmem:[%s685 + $0x108] sm:$0xff]
        %v755 = vld [vmem:[%s685 + $0x110] sm:$0xff]
        %v756 = vld [vmem:[%s685 + $0x118] sm:$0xff]
        %v757 = vld [vmem:[%s685 + $0x120] sm:$0xff]
        %v758 = vld [vmem:[%s685 + $0x128] sm:$0xff]
        %v759 = vld [vmem:[%s685 + $0x130] sm:$0xff]
        %v760 = vld [vmem:[%s685 + $0x138] sm:$0xff]
        %v761 = vld [vmem:[%s685 + $0x140] sm:$0xff]
        %v762 = vld [vmem:[%s685 + $0x148] sm:$0xff]
        %v763 = vld [vmem:[%s685 + $0x150] sm:$0xff]
        %v764 = vld [vmem:[%s685 + $0x158] sm:$0xff]
        %v765 = vld [vmem:[%s685 + $0x160] sm:$0xff]
        %v766 = vld [vmem:[%s685 + $0x168] sm:$0xff]
        %v767 = vld [vmem:[%s685 + $0x170] sm:$0xff]
        %v768 = vld [vmem:[%s685 + $0x178] sm:$0xff]
        %v769 = vld [vmem:[%s685 + $0x180] sm:$0xff]
        %v770 = vld [vmem:[%s685 + $0x188] sm:$0xff]
        %v771 = vld [vmem:[%s685 + $0x190] sm:$0xff]
        %v772 = vld [vmem:[%s685 + $0x198] sm:$0xff]
        %v773 = vld [vmem:[%s685 + $0x1a0] sm:$0xff]
        %v774 = vld [vmem:[%s685 + $0x1a8] sm:$0xff]
        %v775 = vld [vmem:[%s685 + $0x1b0] sm:$0xff]
        %v776 = vld [vmem:[%s685 + $0x1b8] sm:$0xff]
        %v777 = vld [vmem:[%s685 + $0x1c0] sm:$0xff]
        %v778 = vld [vmem:[%s685 + $0x1c8] sm:$0xff]
        %v779 = vld [vmem:[%s685 + $0x1d0] sm:$0xff]
        %v780 = vld [vmem:[%s685 + $0x1d8] sm:$0xff]
        %v781 = vld [vmem:[%s685 + $0x1e0] sm:$0xff]
        %v782 = vld [vmem:[%s685 + $0x1e8] sm:$0xff]
        %v783 = vld [vmem:[%s685 + $0x1f0] sm:$0xff]
        %v784 = vld [vmem:[%s685 + $0x1f8] sm:$0xff]
        %v785 = vld [vmem:[%s685 + $0x200] sm:$0xff]
        %v786 = vld [vmem:[%s685 + $0x208] sm:$0xff]
        %v787 = vld [vmem:[%s685 + $0x210] sm:$0xff]
        %v788 = vld [vmem:[%s685 + $0x218] sm:$0xff]
        %v789 = vld [vmem:[%s685 + $0x220] sm:$0xff]
        %v790 = vld [vmem:[%s685 + $0x228] sm:$0xff]
        %v791 = vld [vmem:[%s685 + $0x230] sm:$0xff]
        %v792 = vld [vmem:[%s685 + $0x238] sm:$0xff]
        %v793 = vld [vmem:[%s685 + $0x240] sm:$0xff]
        %v794 = vld [vmem:[%s685 + $0x248] sm:$0xff]
        %v795 = vld [vmem:[%s685 + $0x250] sm:$0xff]
        %v796 = vld [vmem:[%s685 + $0x258] sm:$0xff]
        %v797 = vld [vmem:[%s685 + $0x260] sm:$0xff]
        %v798 = vld [vmem:[%s685 + $0x268] sm:$0xff]
        %v799 = vld [vmem:[%s685 + $0x270] sm:$0xff]
        %v800 = vld [vmem:[%s685 + $0x278] sm:$0xff]
        %v801 = vld [vmem:[%s685 + $0x280] sm:$0xff]
        %v802 = vld [vmem:[%s685 + $0x288] sm:$0xff]
        %v803 = vld [vmem:[%s685 + $0x290] sm:$0xff]
        %v804 = vld [vmem:[%s685 + $0x298] sm:$0xff]
        %v805 = vld [vmem:[%s685 + $0x2a0] sm:$0xff]
        %v806 = vld [vmem:[%s685 + $0x2a8] sm:$0xff]
        %v807 = vld [vmem:[%s685 + $0x2b0] sm:$0xff]
        %v808 = vld [vmem:[%s685 + $0x2b8] sm:$0xff]
        %v809 = vld [vmem:[%s685 + $0x2c0] sm:$0xff]
        %v810 = vld [vmem:[%s685 + $0x2c8] sm:$0xff]
        %v811 = vld [vmem:[%s685 + $0x2d0] sm:$0xff]
        %v812 = vld [vmem:[%s685 + $0x2d8] sm:$0xff]
        %v813 = vld [vmem:[%s685 + $0x2e0] sm:$0xff]
        %v814 = vld [vmem:[%s685 + $0x2e8] sm:$0xff]
        %v815 = vld [vmem:[%s685 + $0x2f0] sm:$0xff]
        %v816 = vld [vmem:[%s685 + $0x2f8] sm:$0xff]
        %v817 = vld [vmem:[%s685 + $0x300] sm:$0xff]
        %v818 = vld [vmem:[%s685 + $0x308] sm:$0xff]
        %v819 = vld [vmem:[%s685 + $0x310] sm:$0xff]
        %v820 = vld [vmem:[%s685 + $0x318] sm:$0xff]
        %v821 = vld [vmem:[%s685 + $0x320] sm:$0xff]
        %v822 = vld [vmem:[%s685 + $0x328] sm:$0xff]
        %v823 = vld [vmem:[%s685 + $0x330] sm:$0xff]
        %v824 = vld [vmem:[%s685 + $0x338] sm:$0xff]
        %v825 = vld [vmem:[%s685 + $0x340] sm:$0xff]
        %v826 = vld [vmem:[%s685 + $0x348] sm:$0xff]
        %v827 = vld [vmem:[%s685 + $0x350] sm:$0xff]
        %v828 = vld [vmem:[%s685 + $0x358] sm:$0xff]
        %v829 = vld [vmem:[%s685 + $0x360] sm:$0xff]
        %v830 = vld [vmem:[%s685 + $0x368] sm:$0xff]
        %v831 = vld [vmem:[%s685 + $0x370] sm:$0xff]
        %v832 = vld [vmem:[%s685 + $0x378] sm:$0xff]
        %v833 = vld [vmem:[%s685 + $0x380] sm:$0xff]
        %v834 = vld [vmem:[%s685 + $0x388] sm:$0xff]
        %v835 = vld [vmem:[%s685 + $0x390] sm:$0xff]
        %v836 = vld [vmem:[%s685 + $0x398] sm:$0xff]
        %v837 = vld [vmem:[%s685 + $0x3a0] sm:$0xff]
        %v838 = vld [vmem:[%s685 + $0x3a8] sm:$0xff]
        %v839 = vld [vmem:[%s685 + $0x3b0] sm:$0xff]
        %v840 = vld [vmem:[%s685 + $0x3b8] sm:$0xff]
        %v841 = vld [vmem:[%s685 + $0x3c0] sm:$0xff]
        %v842 = vld [vmem:[%s685 + $0x3c8] sm:$0xff]
        %v843 = vld [vmem:[%s685 + $0x3d0] sm:$0xff]
        %v844 = vld [vmem:[%s685 + $0x3d8] sm:$0xff]
        %v845 = vld [vmem:[%s685 + $0x3e0] sm:$0xff]
        %v846 = vld [vmem:[%s685 + $0x3e8] sm:$0xff]
        %v847 = vld [vmem:[%s685 + $0x3f0] sm:$0xff]
        %v848 = vld [vmem:[%s685 + $0x3f8] sm:$0xff]
        %v849 = vld [vmem:[%s685 + $0x400] sm:$0xff]
        %v850 = vld [vmem:[%s685 + $0x408] sm:$0xff]
        %v851 = vld [vmem:[%s685 + $0x410] sm:$0xff]
        %v852 = vld [vmem:[%s685 + $0x418] sm:$0xff]
        %v853 = vld [vmem:[%s685 + $0x420] sm:$0xff]
        %v854 = vld [vmem:[%s685 + $0x428] sm:$0xff]
        %v855 = vld [vmem:[%s685 + $0x430] sm:$0xff]
        %v856 = vld [vmem:[%s685 + $0x438] sm:$0xff]
        %v857 = vld [vmem:[%s685 + $0x440] sm:$0xff]
        %v858 = vld [vmem:[%s685 + $0x448] sm:$0xff]
        %v859 = vld [vmem:[%s685 + $0x450] sm:$0xff]
        %v860 = vld [vmem:[%s685 + $0x458] sm:$0xff]
        %v861 = vld [vmem:[%s685 + $0x460] sm:$0xff]
        %v862 = vld [vmem:[%s685 + $0x468] sm:$0xff]
        %v863 = vld [vmem:[%s685 + $0x470] sm:$0xff]
        %v864 = vld [vmem:[%s685 + $0x478] sm:$0xff]
        %v865 = vld [vmem:[%s685 + $0x480] sm:$0xff]
        %v866 = vld [vmem:[%s685 + $0x488] sm:$0xff]
        %v867 = vld [vmem:[%s685 + $0x490] sm:$0xff]
        %v868 = vld [vmem:[%s685 + $0x498] sm:$0xff]
        %v869 = vld [vmem:[%s685 + $0x4a0] sm:$0xff]
        %v870 = vld [vmem:[%s685 + $0x4a8] sm:$0xff]
        %v871 = vld [vmem:[%s685 + $0x4b0] sm:$0xff]
        %v872 = vld [vmem:[%s685 + $0x4b8] sm:$0xff]
        %v873 = vld [vmem:[%s685 + $0x4c0] sm:$0xff]
        %v874 = vld [vmem:[%s685 + $0x4c8] sm:$0xff]
        %v875 = vld [vmem:[%s685 + $0x4d0] sm:$0xff]
        %v876 = vld [vmem:[%s685 + $0x4d8] sm:$0xff]
        %v877 = vld [vmem:[%s685 + $0x4e0] sm:$0xff]
        %v878 = vld [vmem:[%s685 + $0x4e8] sm:$0xff]
        %v879 = vld [vmem:[%s685 + $0x4f0] sm:$0xff]
        %v880 = vld [vmem:[%s685 + $0x4f8] sm:$0xff]
        %v881 = vld [vmem:[%s685 + $0x500] sm:$0xff]
        %v882 = vld [vmem:[%s685 + $0x508] sm:$0xff]
        %v883 = vld [vmem:[%s685 + $0x510] sm:$0xff]
        %v884 = vld [vmem:[%s685 + $0x518] sm:$0xff]
        %v885 = vld [vmem:[%s685 + $0x520] sm:$0xff]
        %v886 = vld [vmem:[%s685 + $0x528] sm:$0xff]
        %v887 = vld [vmem:[%s685 + $0x530] sm:$0xff]
        %v888 = vld [vmem:[%s685 + $0x538] sm:$0xff]
        %v889 = vld [vmem:[%s685 + $0x540] sm:$0xff]
        %v890 = vld [vmem:[%s685 + $0x548] sm:$0xff]
        %v891 = vld [vmem:[%s685 + $0x550] sm:$0xff]
        %v892 = vld [vmem:[%s685 + $0x558] sm:$0xff]
        %v893 = vld [vmem:[%s685 + $0x560] sm:$0xff]
        %v894 = vld [vmem:[%s685 + $0x568] sm:$0xff]
        %v895 = vld [vmem:[%s685 + $0x570] sm:$0xff]
        %v896 = vld [vmem:[%s685 + $0x578] sm:$0xff]
        %v897 = vld [vmem:[%s685 + $0x580] sm:$0xff]
        %v898 = vld [vmem:[%s685 + $0x588] sm:$0xff]
        %v899 = vld [vmem:[%s685 + $0x590] sm:$0xff]
        %v900 = vld [vmem:[%s685 + $0x598] sm:$0xff]
        %v901 = vld [vmem:[%s685 + $0x5a0] sm:$0xff]
        %v902 = vld [vmem:[%s685 + $0x5a8] sm:$0xff]
        %v903 = vld [vmem:[%s685 + $0x5b0] sm:$0xff]
        %v904 = vld [vmem:[%s685 + $0x5b8] sm:$0xff]
        %v905 = vld [vmem:[%s685 + $0x5c0] sm:$0xff]
        %v906 = vld [vmem:[%s685 + $0x5c8] sm:$0xff]
        %v907 = vld [vmem:[%s685 + $0x5d0] sm:$0xff]
        %v908 = vld [vmem:[%s685 + $0x5d8] sm:$0xff]
        %v909 = vld [vmem:[%s685 + $0x5e0] sm:$0xff]
        %v910 = vld [vmem:[%s685 + $0x5e8] sm:$0xff]
        %v911 = vld [vmem:[%s685 + $0x5f0] sm:$0xff]
        %v912 = vld [vmem:[%s685 + $0x5f8] sm:$0xff]
        %v913 = vld [vmem:[%s685 + $0x600] sm:$0xff]
        %v914 = vld [vmem:[%s685 + $0x608] sm:$0xff]
        %v915 = vld [vmem:[%s685 + $0x610] sm:$0xff]
        %v916 = vld [vmem:[%s685 + $0x618] sm:$0xff]
        %v917 = vld [vmem:[%s685 + $0x620] sm:$0xff]
        %v918 = vld [vmem:[%s685 + $0x628] sm:$0xff]
        %v919 = vld [vmem:[%s685 + $0x630] sm:$0xff]
        %v920 = vld [vmem:[%s685 + $0x638] sm:$0xff]
        %v921 = vld [vmem:[%s685 + $0x640] sm:$0xff]
        %v922 = vld [vmem:[%s685 + $0x648] sm:$0xff]
        %v923 = vld [vmem:[%s685 + $0x650] sm:$0xff]
        %v924 = vld [vmem:[%s685 + $0x658] sm:$0xff]
        %v925 = vld [vmem:[%s685 + $0x660] sm:$0xff]
        %v926 = vld [vmem:[%s685 + $0x668] sm:$0xff]
        %v927 = vld [vmem:[%s685 + $0x670] sm:$0xff]
        %v928 = vld [vmem:[%s685 + $0x678] sm:$0xff]
        %v929 = vld [vmem:[%s685 + $0x680] sm:$0xff]
        %v930 = vld [vmem:[%s685 + $0x688] sm:$0xff]
        %v931 = vld [vmem:[%s685 + $0x690] sm:$0xff]
        %v932 = vld [vmem:[%s685 + $0x698] sm:$0xff]
        %v933 = vld [vmem:[%s685 + $0x6a0] sm:$0xff]
        %v934 = vld [vmem:[%s685 + $0x6a8] sm:$0xff]
        %v935 = vld [vmem:[%s685 + $0x6b0] sm:$0xff]
        %v936 = vld [vmem:[%s685 + $0x6b8] sm:$0xff]
        %v937 = vld [vmem:[%s685 + $0x6c0] sm:$0xff]
        %v938 = vld [vmem:[%s685 + $0x6c8] sm:$0xff]
        %v939 = vld [vmem:[%s685 + $0x6d0] sm:$0xff]
        %v940 = vld [vmem:[%s685 + $0x6d8] sm:$0xff]
        %v941 = vld [vmem:[%s685 + $0x6e0] sm:$0xff]
        %v942 = vld [vmem:[%s685 + $0x6e8] sm:$0xff]
        %v943 = vld [vmem:[%s685 + $0x6f0] sm:$0xff]
        %v944 = vld [vmem:[%s685 + $0x6f8] sm:$0xff]
        %v945 = vld [vmem:[%s685 + $0x700] sm:$0xff]
        %v946 = vld [vmem:[%s685 + $0x708] sm:$0xff]
        %v947 = vld [vmem:[%s685 + $0x710] sm:$0xff]
        %v948 = vld [vmem:[%s685 + $0x718] sm:$0xff]
        %v949 = vld [vmem:[%s685 + $0x720] sm:$0xff]
        %v950 = vld [vmem:[%s685 + $0x728] sm:$0xff]
        %v951 = vld [vmem:[%s685 + $0x730] sm:$0xff]
        %v952 = vld [vmem:[%s685 + $0x738] sm:$0xff]
        %v953 = vld [vmem:[%s685 + $0x740] sm:$0xff]
        %v954 = vld [vmem:[%s685 + $0x748] sm:$0xff]
        %v955 = vld [vmem:[%s685 + $0x750] sm:$0xff]
        %v956 = vld [vmem:[%s685 + $0x758] sm:$0xff]
        %v957 = vld [vmem:[%s685 + $0x760] sm:$0xff]
        %v958 = vld [vmem:[%s685 + $0x768] sm:$0xff]
        %v959 = vld [vmem:[%s685 + $0x770] sm:$0xff]
        %v960 = vld [vmem:[%s685 + $0x778] sm:$0xff]
        %v961 = vld [vmem:[%s685 + $0x780] sm:$0xff]
        %v962 = vld [vmem:[%s685 + $0x788] sm:$0xff]
        %v963 = vld [vmem:[%s685 + $0x790] sm:$0xff]
        %v964 = vld [vmem:[%s685 + $0x798] sm:$0xff]
        %v965 = vld [vmem:[%s685 + $0x7a0] sm:$0xff]
        %v966 = vld [vmem:[%s685 + $0x7a8] sm:$0xff]
        %v967 = vld [vmem:[%s685 + $0x7b0] sm:$0xff]
        %v968 = vld [vmem:[%s685 + $0x7b8] sm:$0xff]
        %v969 = vld [vmem:[%s685 + $0x7c0] sm:$0xff]
        %v970 = vld [vmem:[%s685 + $0x7c8] sm:$0xff]
        %v971 = vld [vmem:[%s685 + $0x7d0] sm:$0xff]
        %v972 = vld [vmem:[%s685 + $0x7d8] sm:$0xff]
        %v973 = vld [vmem:[%s685 + $0x7e0] sm:$0xff]
        %v974 = vld [vmem:[%s685 + $0x7e8] sm:$0xff]
        %v975 = vld [vmem:[%s685 + $0x7f0] sm:$0xff]
        %v976 = vld [vmem:[%s685 + $0x7f8] sm:$0xff]
        %v977 = vld [vmem:[%s713] sm:$0xff]
        %v978 = vld [vmem:[%s713 + $0x8] sm:$0xff]
        %v981 = vperm.slane %v977, 0
        %v982 = vperm.slane %v977, 1
        %v983 = vperm.slane %v977, 2
        %v984 = vperm.slane %v977, 3
        %v985 = vperm.slane %v977, 4
        %v986 = vperm.slane %v977, 5
        %v987 = vperm.slane %v977, 6
        %v988 = vperm.slane %v977, 7
        %v989 = vperm.slane %v978, 0
        %v990 = vperm.slane %v978, 1
        %v991 = vperm.slane %v978, 2
        %v992 = vperm.slane %v978, 3
        %v993 = vperm.slane %v978, 4
        %v994 = vperm.slane %v978, 5
        %v995 = vperm.slane %v978, 6
        %v996 = vperm.slane %v978, 7
        %1013 = vmatpush.msra.mxu0 %v961
        %1014 = vmatpush.msra.mxu0 %v945
        %1015 = vmatpush.msra.mxu0 %v929
        %1016 = vmatpush.msra.mxu0 %v913
        %1017 = vmatpush.msra.mxu0 %v897
        %1018 = vmatpush.msra.mxu0 %v881
        %1019 = vmatpush.msra.mxu0 %v865
        %1020 = vmatpush.msra.mxu0 %v849
        %1021 = vmatpush.msra.mxu0 %v833
        %1022 = vmatpush.msra.mxu0 %v817
        %1023 = vmatpush.msra.mxu0 %v801
        %1024 = vmatpush.msra.mxu0 %v785
        %1025 = vmatpush.msra.mxu0 %v769
        %1026 = vmatpush.msra.mxu0 %v753
        %1027 = vmatpush.msra.mxu0 %v737
        %1028 = vmatpush.msra.mxu0 %v721
        %1029 = vmatmul.f32.gmra.mxu0 %v720
        %v1030 = vpop.f32.mrf.mxu0
        %v1031 = vadd.f32 %v981, %v1030
        %1032 = vdwg.mxu0
        %1033 = vmatpush.msra.mxu0 %v962
        %1034 = vmatpush.msra.mxu0 %v946
        %1035 = vmatpush.msra.mxu0 %v930
        %1036 = vmatpush.msra.mxu0 %v914
        %1037 = vmatpush.msra.mxu0 %v898
        %1038 = vmatpush.msra.mxu0 %v882
        %1039 = vmatpush.msra.mxu0 %v866
        %1040 = vmatpush.msra.mxu0 %v850
        %1041 = vmatpush.msra.mxu0 %v834
        %1042 = vmatpush.msra.mxu0 %v818
        %1043 = vmatpush.msra.mxu0 %v802
        %1044 = vmatpush.msra.mxu0 %v786
        %1045 = vmatpush.msra.mxu0 %v770
        %1046 = vmatpush.msra.mxu0 %v754
        %1047 = vmatpush.msra.mxu0 %v738
        %1048 = vmatpush.msra.mxu0 %v722
        %1049 = vmatmul.f32.gmra.mxu0 %v720
        %v1050 = vpop.f32.mrf.mxu0
        %v1051 = vadd.f32 %v982, %v1050
        %1052 = vdwg.mxu0
        %1053 = vmatpush.msra.mxu0 %v963
        %1054 = vmatpush.msra.mxu0 %v947
        %1055 = vmatpush.msra.mxu0 %v931
        %1056 = vmatpush.msra.mxu0 %v915
        %1057 = vmatpush.msra.mxu0 %v899
        %1058 = vmatpush.msra.mxu0 %v883
        %1059 = vmatpush.msra.mxu0 %v867
        %1060 = vmatpush.msra.mxu0 %v851
        %1061 = vmatpush.msra.mxu0 %v835
        %1062 = vmatpush.msra.mxu0 %v819
        %1063 = vmatpush.msra.mxu0 %v803
        %1064 = vmatpush.msra.mxu0 %v787
        %1065 = vmatpush.msra.mxu0 %v771
        %1066 = vmatpush.msra.mxu0 %v755
        %1067 = vmatpush.msra.mxu0 %v739
        %1068 = vmatpush.msra.mxu0 %v723
        %1069 = vmatmul.f32.gmra.mxu0 %v720
        %v1070 = vpop.f32.mrf.mxu0
        %v1071 = vadd.f32 %v983, %v1070
        %1072 = vdwg.mxu0
        %1073 = vmatpush.msra.mxu0 %v964
        %1074 = vmatpush.msra.mxu0 %v948
        %1075 = vmatpush.msra.mxu0 %v932
        %1076 = vmatpush.msra.mxu0 %v916
        %1077 = vmatpush.msra.mxu0 %v900
        %1078 = vmatpush.msra.mxu0 %v884
        %1079 = vmatpush.msra.mxu0 %v868
        %1080 = vmatpush.msra.mxu0 %v852
        %1081 = vmatpush.msra.mxu0 %v836
        %1082 = vmatpush.msra.mxu0 %v820
        %1083 = vmatpush.msra.mxu0 %v804
        %1084 = vmatpush.msra.mxu0 %v788
        %1085 = vmatpush.msra.mxu0 %v772
        %1086 = vmatpush.msra.mxu0 %v756
        %1087 = vmatpush.msra.mxu0 %v740
        %1088 = vmatpush.msra.mxu0 %v724
        %1089 = vmatmul.f32.gmra.mxu0 %v720
        %v1090 = vpop.f32.mrf.mxu0
        %v1091 = vadd.f32 %v984, %v1090
        %1092 = vdwg.mxu0
        %1093 = vmatpush.msra.mxu0 %v965
        %1094 = vmatpush.msra.mxu0 %v949
        %1095 = vmatpush.msra.mxu0 %v933
        %1096 = vmatpush.msra.mxu0 %v917
        %1097 = vmatpush.msra.mxu0 %v901
        %1098 = vmatpush.msra.mxu0 %v885
        %1099 = vmatpush.msra.mxu0 %v869
        %1100 = vmatpush.msra.mxu0 %v853
        %1101 = vmatpush.msra.mxu0 %v837
        %1102 = vmatpush.msra.mxu0 %v821
        %1103 = vmatpush.msra.mxu0 %v805
        %1104 = vmatpush.msra.mxu0 %v789
        %1105 = vmatpush.msra.mxu0 %v773
        %1106 = vmatpush.msra.mxu0 %v757
        %1107 = vmatpush.msra.mxu0 %v741
        %1108 = vmatpush.msra.mxu0 %v725
        %1109 = vmatmul.f32.gmra.mxu0 %v720
        %v1110 = vpop.f32.mrf.mxu0
        %v1111 = vadd.f32 %v985, %v1110
        %1112 = vdwg.mxu0
        %1113 = vmatpush.msra.mxu0 %v966
        %1114 = vmatpush.msra.mxu0 %v950
        %1115 = vmatpush.msra.mxu0 %v934
        %1116 = vmatpush.msra.mxu0 %v918
        %1117 = vmatpush.msra.mxu0 %v902
        %1118 = vmatpush.msra.mxu0 %v886
        %1119 = vmatpush.msra.mxu0 %v870
        %1120 = vmatpush.msra.mxu0 %v854
        %1121 = vmatpush.msra.mxu0 %v838
        %1122 = vmatpush.msra.mxu0 %v822
        %1123 = vmatpush.msra.mxu0 %v806
        %1124 = vmatpush.msra.mxu0 %v790
        %1125 = vmatpush.msra.mxu0 %v774
        %1126 = vmatpush.msra.mxu0 %v758
        %1127 = vmatpush.msra.mxu0 %v742
        %1128 = vmatpush.msra.mxu0 %v726
        %1129 = vmatmul.f32.gmra.mxu0 %v720
        %v1130 = vpop.f32.mrf.mxu0
        %v1131 = vadd.f32 %v986, %v1130
        %1132 = vdwg.mxu0
        %1133 = vmatpush.msra.mxu0 %v967
        %1134 = vmatpush.msra.mxu0 %v951
        %1135 = vmatpush.msra.mxu0 %v935
        %1136 = vmatpush.msra.mxu0 %v919
        %1137 = vmatpush.msra.mxu0 %v903
        %1138 = vmatpush.msra.mxu0 %v887
        %1139 = vmatpush.msra.mxu0 %v871
        %1140 = vmatpush.msra.mxu0 %v855
        %1141 = vmatpush.msra.mxu0 %v839
        %1142 = vmatpush.msra.mxu0 %v823
        %1143 = vmatpush.msra.mxu0 %v807
        %1144 = vmatpush.msra.mxu0 %v791
        %1145 = vmatpush.msra.mxu0 %v775
        %1146 = vmatpush.msra.mxu0 %v759
        %1147 = vmatpush.msra.mxu0 %v743
        %1148 = vmatpush.msra.mxu0 %v727
        %1149 = vmatmul.f32.gmra.mxu0 %v720
        %v1150 = vpop.f32.mrf.mxu0
        %v1151 = vadd.f32 %v987, %v1150
        %1152 = vdwg.mxu0
        %1153 = vmatpush.msra.mxu0 %v968
        %1154 = vmatpush.msra.mxu0 %v952
        %1155 = vmatpush.msra.mxu0 %v936
        %1156 = vmatpush.msra.mxu0 %v920
        %1157 = vmatpush.msra.mxu0 %v904
        %1158 = vmatpush.msra.mxu0 %v888
        %1159 = vmatpush.msra.mxu0 %v872
        %1160 = vmatpush.msra.mxu0 %v856
        %1161 = vmatpush.msra.mxu0 %v840
        %1162 = vmatpush.msra.mxu0 %v824
        %1163 = vmatpush.msra.mxu0 %v808
        %1164 = vmatpush.msra.mxu0 %v792
        %1165 = vmatpush.msra.mxu0 %v776
        %1166 = vmatpush.msra.mxu0 %v760
        %1167 = vmatpush.msra.mxu0 %v744
        %1168 = vmatpush.msra.mxu0 %v728
        %1169 = vmatmul.f32.gmra.mxu0 %v720
        %v1170 = vpop.f32.mrf.mxu0
        %v1171 = vadd.f32 %v988, %v1170
        %1172 = vdwg.mxu0
        %1173 = vmatpush.msra.mxu0 %v969
        %1174 = vmatpush.msra.mxu0 %v953
        %1175 = vmatpush.msra.mxu0 %v937
        %1176 = vmatpush.msra.mxu0 %v921
        %1177 = vmatpush.msra.mxu0 %v905
        %1178 = vmatpush.msra.mxu0 %v889
        %1179 = vmatpush.msra.mxu0 %v873
        %1180 = vmatpush.msra.mxu0 %v857
        %1181 = vmatpush.msra.mxu0 %v841
        %1182 = vmatpush.msra.mxu0 %v825
        %1183 = vmatpush.msra.mxu0 %v809
        %1184 = vmatpush.msra.mxu0 %v793
        %1185 = vmatpush.msra.mxu0 %v777
        %1186 = vmatpush.msra.mxu0 %v761
        %1187 = vmatpush.msra.mxu0 %v745
        %1188 = vmatpush.msra.mxu0 %v729
        %1189 = vmatmul.f32.gmra.mxu0 %v720
        %v1190 = vpop.f32.mrf.mxu0
        %v1191 = vadd.f32 %v989, %v1190
        %1192 = vdwg.mxu0
        %1193 = vmatpush.msra.mxu0 %v970
        %1194 = vmatpush.msra.mxu0 %v954
        %1195 = vmatpush.msra.mxu0 %v938
        %1196 = vmatpush.msra.mxu0 %v922
        %1197 = vmatpush.msra.mxu0 %v906
        %1198 = vmatpush.msra.mxu0 %v890
        %1199 = vmatpush.msra.mxu0 %v874
        %1200 = vmatpush.msra.mxu0 %v858
        %1201 = vmatpush.msra.mxu0 %v842
        %1202 = vmatpush.msra.mxu0 %v826
        %1203 = vmatpush.msra.mxu0 %v810
        %1204 = vmatpush.msra.mxu0 %v794
        %1205 = vmatpush.msra.mxu0 %v778
        %1206 = vmatpush.msra.mxu0 %v762
        %1207 = vmatpush.msra.mxu0 %v746
        %1208 = vmatpush.msra.mxu0 %v730
        %1209 = vmatmul.f32.gmra.mxu0 %v720
        %v1210 = vpop.f32.mrf.mxu0
        %v1211 = vadd.f32 %v990, %v1210
        %1212 = vdwg.mxu0
        %1213 = vmatpush.msra.mxu0 %v971
        %1214 = vmatpush.msra.mxu0 %v955
        %1215 = vmatpush.msra.mxu0 %v939
        %1216 = vmatpush.msra.mxu0 %v923
        %1217 = vmatpush.msra.mxu0 %v907
        %1218 = vmatpush.msra.mxu0 %v891
        %1219 = vmatpush.msra.mxu0 %v875
        %1220 = vmatpush.msra.mxu0 %v859
        %1221 = vmatpush.msra.mxu0 %v843
        %1222 = vmatpush.msra.mxu0 %v827
        %1223 = vmatpush.msra.mxu0 %v811
        %1224 = vmatpush.msra.mxu0 %v795
        %1225 = vmatpush.msra.mxu0 %v779
        %1226 = vmatpush.msra.mxu0 %v763
        %1227 = vmatpush.msra.mxu0 %v747
        %1228 = vmatpush.msra.mxu0 %v731
        %1229 = vmatmul.f32.gmra.mxu0 %v720
        %v1230 = vpop.f32.mrf.mxu0
        %v1231 = vadd.f32 %v991, %v1230
        %1232 = vdwg.mxu0
        %1233 = vmatpush.msra.mxu0 %v972
        %1234 = vmatpush.msra.mxu0 %v956
        %1235 = vmatpush.msra.mxu0 %v940
        %1236 = vmatpush.msra.mxu0 %v924
        %1237 = vmatpush.msra.mxu0 %v908
        %1238 = vmatpush.msra.mxu0 %v892
        %1239 = vmatpush.msra.mxu0 %v876
        %1240 = vmatpush.msra.mxu0 %v860
        %1241 = vmatpush.msra.mxu0 %v844
        %1242 = vmatpush.msra.mxu0 %v828
        %1243 = vmatpush.msra.mxu0 %v812
        %1244 = vmatpush.msra.mxu0 %v796
        %1245 = vmatpush.msra.mxu0 %v780
        %1246 = vmatpush.msra.mxu0 %v764
        %1247 = vmatpush.msra.mxu0 %v748
        %1248 = vmatpush.msra.mxu0 %v732
        %1249 = vmatmul.f32.gmra.mxu0 %v720
        %v1250 = vpop.f32.mrf.mxu0
        %v1251 = vadd.f32 %v992, %v1250
        %1252 = vdwg.mxu0
        %1253 = vmatpush.msra.mxu0 %v973
        %1254 = vmatpush.msra.mxu0 %v957
        %1255 = vmatpush.msra.mxu0 %v941
        %1256 = vmatpush.msra.mxu0 %v925
        %1257 = vmatpush.msra.mxu0 %v909
        %1258 = vmatpush.msra.mxu0 %v893
        %1259 = vmatpush.msra.mxu0 %v877
        %1260 = vmatpush.msra.mxu0 %v861
        %1261 = vmatpush.msra.mxu0 %v845
        %1262 = vmatpush.msra.mxu0 %v829
        %1263 = vmatpush.msra.mxu0 %v813
        %1264 = vmatpush.msra.mxu0 %v797
        %1265 = vmatpush.msra.mxu0 %v781
        %1266 = vmatpush.msra.mxu0 %v765
        %1267 = vmatpush.msra.mxu0 %v749
        %1268 = vmatpush.msra.mxu0 %v733
        %1269 = vmatmul.f32.gmra.mxu0 %v720
        %v1270 = vpop.f32.mrf.mxu0
        %v1271 = vadd.f32 %v993, %v1270
        %1272 = vdwg.mxu0
        %1273 = vmatpush.msra.mxu0 %v974
        %1274 = vmatpush.msra.mxu0 %v958
        %1275 = vmatpush.msra.mxu0 %v942
        %1276 = vmatpush.msra.mxu0 %v926
        %1277 = vmatpush.msra.mxu0 %v910
        %1278 = vmatpush.msra.mxu0 %v894
        %1279 = vmatpush.msra.mxu0 %v878
        %1280 = vmatpush.msra.mxu0 %v862
        %1281 = vmatpush.msra.mxu0 %v846
        %1282 = vmatpush.msra.mxu0 %v830
        %1283 = vmatpush.msra.mxu0 %v814
        %1284 = vmatpush.msra.mxu0 %v798
        %1285 = vmatpush.msra.mxu0 %v782
        %1286 = vmatpush.msra.mxu0 %v766
        %1287 = vmatpush.msra.mxu0 %v750
        %1288 = vmatpush.msra.mxu0 %v734
        %1289 = vmatmul.f32.gmra.mxu0 %v720
        %v1290 = vpop.f32.mrf.mxu0
        %v1291 = vadd.f32 %v994, %v1290
        %1292 = vdwg.mxu0
        %1293 = vmatpush.msra.mxu0 %v975
        %1294 = vmatpush.msra.mxu0 %v959
        %1295 = vmatpush.msra.mxu0 %v943
        %1296 = vmatpush.msra.mxu0 %v927
        %1297 = vmatpush.msra.mxu0 %v911
        %1298 = vmatpush.msra.mxu0 %v895
        %1299 = vmatpush.msra.mxu0 %v879
        %1300 = vmatpush.msra.mxu0 %v863
        %1301 = vmatpush.msra.mxu0 %v847
        %1302 = vmatpush.msra.mxu0 %v831
        %1303 = vmatpush.msra.mxu0 %v815
        %1304 = vmatpush.msra.mxu0 %v799
        %1305 = vmatpush.msra.mxu0 %v783
        %1306 = vmatpush.msra.mxu0 %v767
        %1307 = vmatpush.msra.mxu0 %v751
        %1308 = vmatpush.msra.mxu0 %v735
        %1309 = vmatmul.f32.gmra.mxu0 %v720
        %v1310 = vpop.f32.mrf.mxu0
        %v1311 = vadd.f32 %v995, %v1310
        %1312 = vdwg.mxu0
        %1313 = vmatpush.msra.mxu0 %v976
        %1314 = vmatpush.msra.mxu0 %v960
        %1315 = vmatpush.msra.mxu0 %v944
        %1316 = vmatpush.msra.mxu0 %v928
        %1317 = vmatpush.msra.mxu0 %v912
        %1318 = vmatpush.msra.mxu0 %v896
        %1319 = vmatpush.msra.mxu0 %v880
        %1320 = vmatpush.msra.mxu0 %v864
        %1321 = vmatpush.msra.mxu0 %v848
        %1322 = vmatpush.msra.mxu0 %v832
        %1323 = vmatpush.msra.mxu0 %v816
        %1324 = vmatpush.msra.mxu0 %v800
        %1325 = vmatpush.msra.mxu0 %v784
        %1326 = vmatpush.msra.mxu0 %v768
        %1327 = vmatpush.msra.mxu0 %v752
        %1328 = vmatpush.msra.mxu0 %v736
        %1329 = vmatmul.f32.gmra.mxu0 %v720
        %v1330 = vpop.f32.mrf.mxu0
        %v1331 = vadd.f32 %v996, %v1330
        %1332 = vdwg.mxu0
        %v1349 = vrot.slane %v1051, 7
        %v1350 = vrot.slane %v1071, 6
        %v1351 = vrot.slane %v1091, 5
        %v1352 = vrot.slane %v1111, 4
        %v1353 = vrot.slane %v1131, 3
        %v1354 = vrot.slane %v1151, 2
        %v1355 = vrot.slane %v1171, 1
        %v1356 = vrot.slane %v1211, 7
        %v1357 = vrot.slane %v1231, 6
        %v1358 = vrot.slane %v1251, 5
        %v1359 = vrot.slane %v1271, 4
        %v1360 = vrot.slane %v1291, 3
        %v1361 = vrot.slane %v1311, 2
        %v1362 = vrot.slane %v1331, 1
        %vm1363 = vcmask 1040384
        %v1364 = vsel %vm1363, %v1031, %v1349
        %vm1365 = vcmask 1042434
        %v1366 = vsel %vm1365, %v1350, %v1351
        %vm1367 = vcmask 1041408
        %v1368 = vsel %vm1367, %v1364, %v1366
        %vm1369 = vcmask 1044484
        %v1370 = vsel %vm1369, %v1352, %v1353
        %vm1371 = vcmask 1046534
        %v1372 = vsel %vm1371, %v1354, %v1355
        %vm1373 = vcmask 1045508
        %v1374 = vsel %vm1373, %v1370, %v1372
        %vm1375 = vcmask 1043456
        %v1376 = vsel %vm1375, %v1368, %v1374
        %v1377 = vsel %vm1363, %v1191, %v1356
        %v1378 = vsel %vm1365, %v1357, %v1358
        %v1379 = vsel %vm1367, %v1377, %v1378
        %v1380 = vsel %vm1369, %v1359, %v1360
        %v1381 = vsel %vm1371, %v1361, %v1362
        %v1382 = vsel %vm1373, %v1380, %v1381
        %v1383 = vsel %vm1375, %v1379, %v1382
        %1386 = vst [vmem:[%s718] sm:$0xff] %v1376
        %1387 = vst [vmem:[%s718 + $0x8] sm:$0xff] %v1383
        %s1388 = smul.u32 16, %s14
        %p1389 = scmp.lt.s32.totalorder %s1388, 527
        %s1390 = scalar_select %p1389, %s1388, 527
        %s1391 = scalar_lea.vmem %s3, %s1390
        // Predicated region
        $region56: #{skin_model1_forward.6} parent=50 // pred_check
          %p1392 = pneg %p105
        $region57: #{skin_model1_forward.6} parent=50 // pred_check_branch
          %1394 = sbr.rel (%p1392) target = $region59
        $region58: #{skin_model1_forward.6} parent=50 // pred_region
          %s1395 = smul.u32 16, %s14
        $region59: #{skin_model1_forward.6} parent=50 // pred_fallthru
          _
      $region51: #{skin_model1_forward.6} parent=5 // pred_fallthru
        _
      %p1396 = scmp.le.s32.totalorder 2, %s9
      // Predicated region
      $region60: #{skin_model1_forward.6} parent=5 // pred_check
        %p1397 = pneg %p1396
      $region61: #{skin_model1_forward.6} parent=5 // pred_check_branch
        %1399 = sbr.rel (%p1397) target = $region63
      $region62: #{skin_model1_forward.6} parent=5 // pred_region
        %s1400 = ssub.s32 %s9, 2
        // Predicated region
        $region64: #{skin_model1_forward.6} parent=62 // pred_check
          %p1401 = pneg %p111
        $region65: #{skin_model1_forward.6} parent=62 // pred_check_branch
          %1403 = sbr.rel (%p1401) target = $region67
        $region66: #{skin_model1_forward.6} parent=62 // pred_region
          %s1404 = smul.u32 16, %s15
          %p1405 = scmp.lt.s32.totalorder %s1404, 527
          %s1406 = scalar_select %p1405, %s1404, 527
          %s1407 = scalar_lea.vmem %s3, %s1406
        $region67: #{skin_model1_forward.6} parent=62 // pred_fallthru
          _
      $region63: #{skin_model1_forward.6} parent=5 // pred_fallthru
        _
    $region6: #{skin_model1_forward.6} parent=1 // loop_footer
      %s13 = sadd.s32 1, %s9
    $region7: #{skin_model1_forward.6} parent=1 // loop_footer_branch
      %8 = sbr.rel target = $region3
    $region8: #{skin_model1_forward.6} parent=1 // loop_exit
      _

// kernel: skin_model1_forward.7
$region0: #{skin_model1_forward.7}
  #allocation0 [shape = 'u32[]', space=smem, size = 0x4, offset = 0x4, fixed_abs, tag = 'smem constant byte address 0x4 - core index']
  #allocation1 [shape = 'u32[72,128]{1,0:T(1,128)}', space=vmem, size = 0x9000, scoped, tag = 'internal scratch']
  %s0 = inlined_call_operand.vmem [shape: f32[9248,147], index: 0, kind: input, shape index: {}]
  %s1 = inlined_call_operand.vmem [shape: f32[147,8], index: 1, kind: input, shape index: {}]
  %s2 = inlined_call_operand.vmem [shape: f32[1,8], index: 2, kind: input, shape index: {}]
  %s3 = inlined_call_operand.vmem [shape: f32[9248,8], index: 3, kind: output, shape index: {}]
  %s4 = sld [smem:[#allocation0]]
  $region45: #{skin_model1_forward.7} parent=0
    _
  %s6 = ssub.s32 1, %s4
  %s7 = scalar_select 0, %s6, %s4
  loop: start=0, step=1, limit=19
  $region2: #{skin_model1_forward.7} parent=0 // loop_pre_header
    _
  $region3: #{skin_model1_forward.7} parent=0 // loop_header
    %s9 = sphi 0, %s13
    %p10 = scmp.ge.s32.totalorder %s9, 19
    %s16 = sphi 0, %s28
    %s17 = sphi 0, %s24
    %s18 = sphi 0, %s16
    %s19 = sphi 0, %s17
    %s20 = sphi 0, %s18
    %s21 = sphi 0, %s19
    %s31 = sphi 0, %s33
    %s34 = sphi 0, %s31
    %s35 = sphi 0, %s34
    %s51 = sphi 0, %s35
    %s57 = sphi 0, %s59
    %s60 = sphi 0, %s57
    %s61 = sphi 0, %s60
    %s77 = sphi 0, %s61
    %s83 = sphi 0, %s85
    %s86 = sphi 0, %s83
    %s87 = sphi 0, %s86
    %s103 = sphi 0, %s87
    %s111 = sphi 0, %s113
    %s114 = sphi 0, %s111
    %s115 = sphi 0, %s114
    %s131 = sphi 0, %s115
  $region4: #{skin_model1_forward.7} parent=0 // loop_header_branch
    %12 = sbr.rel (%p10) target = $region8
  $region5: #{skin_model1_forward.7} parent=0 // loop_body
    %s14 = ssub.s32 %s9, 1
    %s15 = ssub.s32 %s9, 2
    %s22 = sadd.s32 1, %s17
    %p23 = scmp.ge.s32.totalorder %s22, 1
    %s24 = scalar_select %p23, 0, %s22
    %s25 = sadd.s32 1, %s16
    %s26 = scalar_select %p23, %s25, %s16
    %p27 = scmp.ge.s32.totalorder %s26, 17
    %s28 = scalar_select %p27, 0, %s26
    %s29 = ssub.s32 %s16, %s28
    %p30 = scmp.eq.s32.totalorder %s29, 0
    %s32 = sadd.s32 %s31, 1
    %s33 = scalar_select %p30, %s31, %s32
    %p36 = pneg %p30
    %p37 = scmp.eq.s32.totalorder %s9, 16
    %p38 = por %p36, %p37
    %p39 = scmp.ne.s32.totalorder %s31, %s34
    %p40 = scmp.eq.s32.totalorder %s9, 0
    %p41 = por %p39, %p40
    %p42 = scmp.ne.s32.totalorder %s31, %s34
    %p43 = scmp.eq.s32.totalorder %s14, 16
    %p44 = por %p42, %p43
    %p45 = scmp.ne.s32.totalorder %s34, %s35
    %p46 = scmp.eq.s32.totalorder %s14, 0
    %p47 = por %p45, %p46
    %p48 = scmp.ne.s32.totalorder %s34, %s35
    %p49 = scmp.eq.s32.totalorder %s15, 16
    %p50 = por %p48, %p49
    %p52 = scmp.ne.s32.totalorder %s35, %s51
    %p53 = scmp.eq.s32.totalorder %s15, 0
    %p54 = por %p52, %p53
    %s55 = ssub.s32 %s17, %s24
    %p56 = scmp.eq.s32.totalorder %s55, 0
    %s58 = sadd.s32 %s57, 1
    %s59 = scalar_select %p56, %s57, %s58
    %p62 = pneg %p56
    %p63 = scmp.eq.s32.totalorder %s9, 16
    %p64 = por %p62, %p63
    %p65 = scmp.ne.s32.totalorder %s57, %s60
    %p66 = scmp.eq.s32.totalorder %s9, 0
    %p67 = por %p65, %p66
    %p68 = scmp.ne.s32.totalorder %s57, %s60
    %p69 = scmp.eq.s32.totalorder %s14, 16
    %p70 = por %p68, %p69
    %p71 = scmp.ne.s32.totalorder %s60, %s61
    %p72 = scmp.eq.s32.totalorder %s14, 0
    %p73 = por %p71, %p72
    %p74 = scmp.ne.s32.totalorder %s60, %s61
    %p75 = scmp.eq.s32.totalorder %s15, 16
    %p76 = por %p74, %p75
    %p78 = scmp.ne.s32.totalorder %s61, %s77
    %p79 = scmp.eq.s32.totalorder %s15, 0
    %p80 = por %p78, %p79
    %s81 = ssub.s32 %s17, %s24
    %p82 = scmp.eq.s32.totalorder %s81, 0
    %s84 = sadd.s32 %s83, 1
    %s85 = scalar_select %p82, %s83, %s84
    %p88 = pneg %p82
    %p89 = scmp.eq.s32.totalorder %s9, 16
    %p90 = por %p88, %p89
    %p91 = scmp.ne.s32.totalorder %s83, %s86
    %p92 = scmp.eq.s32.totalorder %s9, 0
    %p93 = por %p91, %p92
    %p94 = scmp.ne.s32.totalorder %s83, %s86
    %p95 = scmp.eq.s32.totalorder %s14, 16
    %p96 = por %p94, %p95
    %p97 = scmp.ne.s32.totalorder %s86, %s87
    %p98 = scmp.eq.s32.totalorder %s14, 0
    %p99 = por %p97, %p98
    %p100 = scmp.ne.s32.totalorder %s86, %s87
    %p101 = scmp.eq.s32.totalorder %s15, 16
    %p102 = por %p100, %p101
    %p104 = scmp.ne.s32.totalorder %s87, %s103
    %p105 = scmp.eq.s32.totalorder %s15, 0
    %p106 = por %p104, %p105
    %s107 = ssub.s32 %s16, %s28
    %s108 = ssub.s32 %s17, %s24
    %s109 = sor.u32 %s107, %s108
    %p110 = scmp.eq.s32.totalorder %s109, 0
    %s112 = sadd.s32 %s111, 1
    %s113 = scalar_select %p110, %s111, %s112
    %p116 = pneg %p110
    %p117 = scmp.eq.s32.totalorder %s9, 16
    %p118 = por %p116, %p117
    %p119 = scmp.ne.s32.totalorder %s111, %s114
    %p120 = scmp.eq.s32.totalorder %s9, 0
    %p121 = por %p119, %p120
    %p122 = scmp.ne.s32.totalorder %s111, %s114
    %p123 = scmp.eq.s32.totalorder %s14, 16
    %p124 = por %p122, %p123
    %p125 = scmp.ne.s32.totalorder %s114, %s115
    %p126 = scmp.eq.s32.totalorder %s14, 0
    %p127 = por %p125, %p126
    %p128 = scmp.ne.s32.totalorder %s114, %s115
    %p129 = scmp.eq.s32.totalorder %s15, 16
    %p130 = por %p128, %p129
    %p132 = scmp.ne.s32.totalorder %s115, %s131
    %p133 = scmp.eq.s32.totalorder %s15, 0
    %p134 = por %p132, %p133
    %p135 = scmp.le.s32.totalorder 1, %s9
    %p136 = scmp.lt.s32.totalorder %s9, 18
    %p137 = pnand %p135, %p136
    %p138 = pneg %p137
    // Predicated region
    $region9: #{skin_model1_forward.7} parent=5 // pred_check
      _
    $region10: #{skin_model1_forward.7} parent=5 // pred_check_branch
      %140 = sbr.rel (%p137) target = $region12
    $region11: #{skin_model1_forward.7} parent=5 // pred_region
      %s141 = ssub.s32 %s9, 1
      // Predicated region
      $region13: #{skin_model1_forward.7} parent=11 // pred_check
        %p142 = pneg %p73
      $region14: #{skin_model1_forward.7} parent=11 // pred_check_branch
        %144 = sbr.rel (%p142) target = $region16
      $region15: #{skin_model1_forward.7} parent=11 // pred_region
        %p145 = scmp.lt.s32.totalorder %s19, 0
        %s146 = scalar_select %p145, %s19, 0
        %s147 = smul.addr %s146, 8
        %s148 = scalar_lea.vmem %s1, %s147
      $region16: #{skin_model1_forward.7} parent=11 // pred_fallthru
        _
      // Predicated region
      $region17: #{skin_model1_forward.7} parent=11 // pred_check
        %p149 = pneg %p99
      $region18: #{skin_model1_forward.7} parent=11 // pred_check_branch
        %151 = sbr.rel (%p149) target = $region20
      $region19: #{skin_model1_forward.7} parent=11 // pred_region
        %p152 = scmp.lt.s32.totalorder %s19, 0
        %s153 = scalar_select %p152, %s19, 0
        %s154 = scalar_lea.vmem %s2, %s153
      $region20: #{skin_model1_forward.7} parent=11 // pred_fallthru
        _
    $region12: #{skin_model1_forward.7} parent=5 // pred_fallthru
      _
    %p155 = scmp.lt.s32.totalorder %s9, 17
    // Predicated region
    $region21: #{skin_model1_forward.7} parent=5 // pred_check
      %p156 = pneg %p155
    $region22: #{skin_model1_forward.7} parent=5 // pred_check_branch
      %158 = sbr.rel (%p156) target = $region24
    $region23: #{skin_model1_forward.7} parent=5 // pred_region
      // Predicated region
      $region25: #{skin_model1_forward.7} parent=23 // pred_check
        %p159 = pneg %p41
      $region26: #{skin_model1_forward.7} parent=23 // pred_check_branch
        %161 = sbr.rel (%p159) target = $region28
      $region27: #{skin_model1_forward.7} parent=23 // pred_region
        %s162 = smul.u32 68, %s16
        %p163 = scmp.lt.s32.totalorder %s162, 1155
        %s164 = scalar_select %p163, %s162, 1155
        %s165 = smul.addr %s164, 2
        %s166 = smul.addr %s165, 8
        %s167 = scalar_lea.vmem %s0, %s166
        %s168 = smul.u32 68, %s16
      $region28: #{skin_model1_forward.7} parent=23 // pred_fallthru
        _
    $region24: #{skin_model1_forward.7} parent=5 // pred_fallthru
      _
    %p169 = scmp.le.s32.totalorder 1, %s9
    %p170 = scmp.lt.s32.totalorder %s9, 18
    %p171 = pnand %p169, %p170
    %p172 = pneg %p171
    // Predicated region
    $region29: #{skin_model1_forward.7} parent=5 // pred_check
      _
    $region30: #{skin_model1_forward.7} parent=5 // pred_check_branch
      %174 = sbr.rel (%p171) target = $region32
    $region31: #{skin_model1_forward.7} parent=5 // pred_region
      %s175 = ssub.s32 %s9, 1
      %s176 = smul.u32 68, %s18
      %p177 = scmp.lt.s32.totalorder %s176, 1155
      %s178 = scalar_select %p177, %s176, 1155
      %s179 = smul.addr %s178, 2
      %s180 = smul.addr %s179, 8
      %s181 = scalar_lea.vmem %s0, %s180
      %p182 = pneg %p47
      %p183 = pneg %p44
      %p184 = scmp.lt.s32.totalorder %s19, 0
      %s185 = scalar_select %p184, %s19, 0
      %s186 = smul.addr %s185, 8
      %s187 = scalar_lea.vmem %s1, %s186
      %p188 = pneg %p73
      %p189 = pneg %p70
      %p190 = scmp.lt.s32.totalorder %s19, 0
      %s191 = scalar_select %p190, %s19, 0
      %s192 = scalar_lea.vmem %s2, %s191
      %p193 = pneg %p99
      %p194 = pneg %p96
      %p195 = pneg %p127
      %p196 = pneg %p124
      %s197 = smul.u32 68, %s18
      %p198 = scmp.lt.s32.totalorder %s197, 1155
      %s199 = scalar_select %p198, %s197, 1155
      %p200 = scmp.lt.s32.totalorder %s19, 0
      %s201 = scalar_select %p200, %s19, 0
      %s202 = sadd.s32 %s201, %s199
      %s203 = smul.addr %s202, 8
      %s204 = scalar_lea.vmem %s3, %s203
      %s205 = smul.u32 68, %s18
      %p206 = scmp.lt.s32.totalorder %s205, 1155
      %s207 = scalar_select %p206, %s205, 1155
      %s208 = smul.addr %s207, 2
      %s209 = smul.addr %s208, 8
      %s210 = scalar_lea.vmem %s0, %s209
      %s211 = smul.u32 68, %s18
      %p212 = scmp.lt.s32.totalorder %s19, 0
      %s213 = scalar_select %p212, %s19, 0
      %s214 = smul.addr %s213, 8
      %s215 = scalar_lea.vmem %s1, %s214
      %p216 = scmp.lt.s32.totalorder %s19, 0
      %s217 = scalar_select %p216, %s19, 0
      %s218 = scalar_lea.vmem %s2, %s217
      %s219 = smul.u32 68, %s18
      %p220 = scmp.lt.s32.totalorder %s219, 1155
      %s221 = scalar_select %p220, %s219, 1155
      %p222 = scmp.lt.s32.totalorder %s19, 0
      %s223 = scalar_select %p222, %s19, 0
      %s224 = sadd.s32 %s223, %s221
      %s225 = smul.addr %s224, 8
      %s226 = scalar_lea.vmem %s3, %s225
      %s227 = smul.u32 68, %s18
      %v228 = vld [vmem:[%s210] sm:$0xff]
      %v229 = vld [vmem:[%s210 + $0x8] sm:$0xff]
      %v230 = vld [vmem:[%s210 + $0x10] sm:$0xff]
      %v231 = vld [vmem:[%s210 + $0x18] sm:$0xff]
      %v232 = vld [vmem:[%s210 + $0x20] sm:$0xff]
      %v233 = vld [vmem:[%s210 + $0x28] sm:$0xff]
      %v234 = vld [vmem:[%s210 + $0x30] sm:$0xff]
      %v235 = vld [vmem:[%s210 + $0x38] sm:$0xff]
      %v236 = vld [vmem:[%s210 + $0x40] sm:$0xff]
      %v237 = vld [vmem:[%s210 + $0x48] sm:$0xff]
      %v238 = vld [vmem:[%s210 + $0x50] sm:$0xff]
      %v239 = vld [vmem:[%s210 + $0x58] sm:$0xff]
      %v240 = vld [vmem:[%s210 + $0x60] sm:$0xff]
      %v241 = vld [vmem:[%s210 + $0x68] sm:$0xff]
      %v242 = vld [vmem:[%s210 + $0x70] sm:$0xff]
      %v243 = vld [vmem:[%s210 + $0x78] sm:$0xff]
      %v244 = vld [vmem:[%s210 + $0x80] sm:$0xff]
      %v245 = vld [vmem:[%s210 + $0x88] sm:$0xff]
      %v246 = vld [vmem:[%s210 + $0x90] sm:$0xff]
      %v247 = vld [vmem:[%s210 + $0x98] sm:$0xff]
      %v248 = vld [vmem:[%s210 + $0xa0] sm:$0xff]
      %v249 = vld [vmem:[%s210 + $0xa8] sm:$0xff]
      %v250 = vld [vmem:[%s210 + $0xb0] sm:$0xff]
      %v251 = vld [vmem:[%s210 + $0xb8] sm:$0xff]
      %v252 = vld [vmem:[%s210 + $0xc0] sm:$0xff]
      %v253 = vld [vmem:[%s210 + $0xc8] sm:$0xff]
      %v254 = vld [vmem:[%s210 + $0xd0] sm:$0xff]
      %v255 = vld [vmem:[%s210 + $0xd8] sm:$0xff]
      %v256 = vld [vmem:[%s210 + $0xe0] sm:$0xff]
      %v257 = vld [vmem:[%s210 + $0xe8] sm:$0xff]
      %v258 = vld [vmem:[%s210 + $0xf0] sm:$0xff]
      %v259 = vld [vmem:[%s210 + $0xf8] sm:$0xff]
      %v260 = vld [vmem:[%s210 + $0x100] sm:$0xff]
      %v261 = vld [vmem:[%s210 + $0x108] sm:$0xff]
      %v262 = vld [vmem:[%s210 + $0x110] sm:$0xff]
      %v263 = vld [vmem:[%s210 + $0x118] sm:$0xff]
      %v264 = vld [vmem:[%s210 + $0x120] sm:$0xff]
      %v265 = vld [vmem:[%s210 + $0x128] sm:$0xff]
      %v266 = vld [vmem:[%s210 + $0x130] sm:$0xff]
      %v267 = vld [vmem:[%s210 + $0x138] sm:$0xff]
      %v268 = vld [vmem:[%s210 + $0x140] sm:$0xff]
      %v269 = vld [vmem:[%s210 + $0x148] sm:$0xff]
      %v270 = vld [vmem:[%s210 + $0x150] sm:$0xff]
      %v271 = vld [vmem:[%s210 + $0x158] sm:$0xff]
      %v272 = vld [vmem:[%s210 + $0x160] sm:$0xff]
      %v273 = vld [vmem:[%s210 + $0x168] sm:$0xff]
      %v274 = vld [vmem:[%s210 + $0x170] sm:$0xff]
      %v275 = vld [vmem:[%s210 + $0x178] sm:$0xff]
      %v276 = vld [vmem:[%s210 + $0x180] sm:$0xff]
      %v277 = vld [vmem:[%s210 + $0x188] sm:$0xff]
      %v278 = vld [vmem:[%s210 + $0x190] sm:$0xff]
      %v279 = vld [vmem:[%s210 + $0x198] sm:$0xff]
      %v280 = vld [vmem:[%s210 + $0x1a0] sm:$0xff]
      %v281 = vld [vmem:[%s210 + $0x1a8] sm:$0xff]
      %v282 = vld [vmem:[%s210 + $0x1b0] sm:$0xff]
      %v283 = vld [vmem:[%s210 + $0x1b8] sm:$0xff]
      %v284 = vld [vmem:[%s210 + $0x1c0] sm:$0xff]
      %v285 = vld [vmem:[%s210 + $0x1c8] sm:$0xff]
      %v286 = vld [vmem:[%s210 + $0x1d0] sm:$0xff]
      %v287 = vld [vmem:[%s210 + $0x1d8] sm:$0xff]
      %v288 = vld [vmem:[%s210 + $0x1e0] sm:$0xff]
      %v289 = vld [vmem:[%s210 + $0x1e8] sm:$0xff]
      %v290 = vld [vmem:[%s210 + $0x1f0] sm:$0xff]
      %v291 = vld [vmem:[%s210 + $0x1f8] sm:$0xff]
      %v292 = vld [vmem:[%s210 + $0x200] sm:$0xff]
      %v293 = vld [vmem:[%s210 + $0x208] sm:$0xff]
      %v294 = vld [vmem:[%s210 + $0x210] sm:$0xff]
      %v295 = vld [vmem:[%s210 + $0x218] sm:$0xff]
      %v296 = vld [vmem:[%s210 + $0x220] sm:$0xff]
      %v297 = vld [vmem:[%s210 + $0x228] sm:$0xff]
      %v298 = vld [vmem:[%s210 + $0x230] sm:$0xff]
      %v299 = vld [vmem:[%s210 + $0x238] sm:$0xff]
      %v300 = vld [vmem:[%s210 + $0x240] sm:$0xff]
      %v301 = vld [vmem:[%s210 + $0x248] sm:$0xff]
      %v302 = vld [vmem:[%s210 + $0x250] sm:$0xff]
      %v303 = vld [vmem:[%s210 + $0x258] sm:$0xff]
      %v304 = vld [vmem:[%s210 + $0x260] sm:$0xff]
      %v305 = vld [vmem:[%s210 + $0x268] sm:$0xff]
      %v306 = vld [vmem:[%s210 + $0x270] sm:$0xff]
      %v307 = vld [vmem:[%s210 + $0x278] sm:$0xff]
      %v308 = vld [vmem:[%s210 + $0x280] sm:$0xff]
      %v309 = vld [vmem:[%s210 + $0x288] sm:$0xff]
      %v310 = vld [vmem:[%s210 + $0x290] sm:$0xff]
      %v311 = vld [vmem:[%s210 + $0x298] sm:$0xff]
      %v312 = vld [vmem:[%s210 + $0x2a0] sm:$0xff]
      %v313 = vld [vmem:[%s210 + $0x2a8] sm:$0xff]
      %v314 = vld [vmem:[%s210 + $0x2b0] sm:$0xff]
      %v315 = vld [vmem:[%s210 + $0x2b8] sm:$0xff]
      %v316 = vld [vmem:[%s210 + $0x2c0] sm:$0xff]
      %v317 = vld [vmem:[%s210 + $0x2c8] sm:$0xff]
      %v318 = vld [vmem:[%s210 + $0x2d0] sm:$0xff]
      %v319 = vld [vmem:[%s210 + $0x2d8] sm:$0xff]
      %v320 = vld [vmem:[%s210 + $0x2e0] sm:$0xff]
      %v321 = vld [vmem:[%s210 + $0x2e8] sm:$0xff]
      %v322 = vld [vmem:[%s210 + $0x2f0] sm:$0xff]
      %v323 = vld [vmem:[%s210 + $0x2f8] sm:$0xff]
      %v324 = vld [vmem:[%s210 + $0x300] sm:$0xff]
      %v325 = vld [vmem:[%s210 + $0x308] sm:$0xff]
      %v326 = vld [vmem:[%s210 + $0x310] sm:$0xff]
      %v327 = vld [vmem:[%s210 + $0x318] sm:$0xff]
      %v328 = vld [vmem:[%s210 + $0x320] sm:$0xff]
      %v329 = vld [vmem:[%s210 + $0x328] sm:$0xff]
      %v330 = vld [vmem:[%s210 + $0x330] sm:$0xff]
      %v331 = vld [vmem:[%s210 + $0x338] sm:$0xff]
      %v332 = vld [vmem:[%s210 + $0x340] sm:$0xff]
      %v333 = vld [vmem:[%s210 + $0x348] sm:$0xff]
      %v334 = vld [vmem:[%s210 + $0x350] sm:$0xff]
      %v335 = vld [vmem:[%s210 + $0x358] sm:$0xff]
      %v336 = vld [vmem:[%s210 + $0x360] sm:$0xff]
      %v337 = vld [vmem:[%s210 + $0x368] sm:$0xff]
      %v338 = vld [vmem:[%s210 + $0x370] sm:$0xff]
      %v339 = vld [vmem:[%s210 + $0x378] sm:$0xff]
      %v340 = vld [vmem:[%s210 + $0x380] sm:$0xff]
      %v341 = vld [vmem:[%s210 + $0x388] sm:$0xff]
      %v342 = vld [vmem:[%s210 + $0x390] sm:$0xff]
      %v343 = vld [vmem:[%s210 + $0x398] sm:$0xff]
      %v344 = vld [vmem:[%s210 + $0x3a0] sm:$0xff]
      %v345 = vld [vmem:[%s210 + $0x3a8] sm:$0xff]
      %v346 = vld [vmem:[%s210 + $0x3b0] sm:$0xff]
      %v347 = vld [vmem:[%s210 + $0x3b8] sm:$0xff]
      %v348 = vld [vmem:[%s210 + $0x3c0] sm:$0xff]
      %v349 = vld [vmem:[%s210 + $0x3c8] sm:$0xff]
      %v350 = vld [vmem:[%s210 + $0x3d0] sm:$0xff]
      %v351 = vld [vmem:[%s210 + $0x3d8] sm:$0xff]
      %v352 = vld [vmem:[%s210 + $0x3e0] sm:$0xff]
      %v353 = vld [vmem:[%s210 + $0x3e8] sm:$0xff]
      %v354 = vld [vmem:[%s210 + $0x3f0] sm:$0xff]
      %v355 = vld [vmem:[%s210 + $0x3f8] sm:$0xff]
      %v356 = vld [vmem:[%s210 + $0x400] sm:$0xff]
      %v357 = vld [vmem:[%s210 + $0x408] sm:$0xff]
      %v358 = vld [vmem:[%s210 + $0x410] sm:$0xff]
      %v359 = vld [vmem:[%s210 + $0x418] sm:$0xff]
      %v360 = vld [vmem:[%s210 + $0x420] sm:$0xff]
      %v361 = vld [vmem:[%s210 + $0x428] sm:$0xff]
      %v362 = vld [vmem:[%s210 + $0x430] sm:$0xff]
      %v363 = vld [vmem:[%s210 + $0x438] sm:$0xff]
      %v364 = vld [vmem:[%s215] sm:$0xff]
      %v365 = vld [vmem:[%s215 + $0x8] sm:$0xff]
      %v366 = vld [vmem:[%s215 + $0x10] sm:$0xff]
      %v367 = vld [vmem:[%s215 + $0x18] sm:$0xff]
      %v368 = vld [vmem:[%s215 + $0x20] sm:$0xff]
      %v369 = vld [vmem:[%s215 + $0x28] sm:$0xff]
      %v370 = vld [vmem:[%s215 + $0x30] sm:$0xff]
      %v371 = vld [vmem:[%s215 + $0x38] sm:$0xff]
      %v372 = vld [vmem:[%s215 + $0x40] sm:$0xff]
      %v373 = vld [vmem:[%s215 + $0x48] sm:$0xff]
      %v374 = vld [vmem:[%s215 + $0x50] sm:$0xff]
      %v375 = vld [vmem:[%s215 + $0x58] sm:$0xff]
      %v376 = vld [vmem:[%s215 + $0x60] sm:$0xff]
      %v377 = vld [vmem:[%s215 + $0x68] sm:$0xff]
      %v378 = vld [vmem:[%s215 + $0x70] sm:$0xff]
      %v379 = vld [vmem:[%s215 + $0x78] sm:$0xff]
      %v380 = vld [vmem:[%s215 + $0x80] sm:$0xff]
      %v381 = vld [vmem:[%s215 + $0x88] sm:$0xff]
      %v382 = vld [vmem:[%s215 + $0x90] sm:$0x7]
      %v383 = vld [vmem:[%s218] sm:$0x1]
      %v385 = vperm.slane %v383, 0
      %vm387 = vcmask 154624
      %v389 = vsel %vm387, %v229, 0
      %v392 = vsel %vm387, %v231, 0
      %v395 = vsel %vm387, %v233, 0
      %v398 = vsel %vm387, %v235, 0
      %v401 = vsel %vm387, %v237, 0
      %v404 = vsel %vm387, %v239, 0
      %v407 = vsel %vm387, %v241, 0
      %v410 = vsel %vm387, %v243, 0
      %v413 = vsel %vm387, %v245, 0
      %v416 = vsel %vm387, %v247, 0
      %v419 = vsel %vm387, %v249, 0
      %v422 = vsel %vm387, %v251, 0
      %v425 = vsel %vm387, %v253, 0
      %v428 = vsel %vm387, %v255, 0
      %v431 = vsel %vm387, %v257, 0
      %v434 = vsel %vm387, %v259, 0
      %v437 = vsel %vm387, %v261, 0
      %v440 = vsel %vm387, %v263, 0
      %v443 = vsel %vm387, %v265, 0
      %v446 = vsel %vm387, %v267, 0
      %v449 = vsel %vm387, %v269, 0
      %v452 = vsel %vm387, %v271, 0
      %v455 = vsel %vm387, %v273, 0
      %v458 = vsel %vm387, %v275, 0
      %v461 = vsel %vm387, %v277, 0
      %v464 = vsel %vm387, %v279, 0
      %v467 = vsel %vm387, %v281, 0
      %v470 = vsel %vm387, %v283, 0
      %v473 = vsel %vm387, %v285, 0
      %v476 = vsel %vm387, %v287, 0
      %v479 = vsel %vm387, %v289, 0
      %v482 = vsel %vm387, %v291, 0
      %v485 = vsel %vm387, %v293, 0
      %v488 = vsel %vm387, %v295, 0
      %v491 = vsel %vm387, %v297, 0
      %v494 = vsel %vm387, %v299, 0
      %v497 = vsel %vm387, %v301, 0
      %v500 = vsel %vm387, %v303, 0
      %v503 = vsel %vm387, %v305, 0
      %v506 = vsel %vm387, %v307, 0
      %v509 = vsel %vm387, %v309, 0
      %v512 = vsel %vm387, %v311, 0
      %v515 = vsel %vm387, %v313, 0
      %v518 = vsel %vm387, %v315, 0
      %v521 = vsel %vm387, %v317, 0
      %v524 = vsel %vm387, %v319, 0
      %v527 = vsel %vm387, %v321, 0
      %v530 = vsel %vm387, %v323, 0
      %v533 = vsel %vm387, %v325, 0
      %v536 = vsel %vm387, %v327, 0
      %v539 = vsel %vm387, %v329, 0
      %v542 = vsel %vm387, %v331, 0
      %v545 = vsel %vm387, %v333, 0
      %v548 = vsel %vm387, %v335, 0
      %v551 = vsel %vm387, %v337, 0
      %v554 = vsel %vm387, %v339, 0
      %v557 = vsel %vm387, %v341, 0
      %v560 = vsel %vm387, %v343, 0
      %v563 = vsel %vm387, %v345, 0
      %v566 = vsel %vm387, %v347, 0
      %v569 = vsel %vm387, %v349, 0
      %v572 = vsel %vm387, %v351, 0
      %v575 = vsel %vm387, %v353, 0
      %v578 = vsel %vm387, %v355, 0
      %v581 = vsel %vm387, %v357, 0
      %v584 = vsel %vm387, %v359, 0
      %v587 = vsel %vm387, %v361, 0
      %v590 = vsel %vm387, %v363, 0
      %vm592 = vcmask 1042432
      %v594 = vsel %vm592, %v382, 0
      %596 = vmatpush.msra.mxu0 %v379
      %597 = vmatpush.msra.mxu0 %v378
      %598 = vmatpush.msra.mxu0 %v377
      %599 = vmatpush.msra.mxu0 %v376
      %600 = vmatpush.msra.mxu0 %v375
      %601 = vmatpush.msra.mxu0 %v374
      %602 = vmatpush.msra.mxu0 %v373
      %603 = vmatpush.msra.mxu0 %v372
      %604 = vmatpush.msra.mxu0 %v371
      %605 = vmatpush.msra.mxu0 %v370
      %606 = vmatpush.msra.mxu0 %v369
      %607 = vmatpush.msra.mxu0 %v368
      %608 = vmatpush.msra.mxu0 %v367
      %609 = vmatpush.msra.mxu0 %v366
      %610 = vmatpush.msra.mxu0 %v365
      %611 = vmatpush.msra.mxu0 %v364
      %612 = vmatmul.f32.gmra.mxu0 %v228
      %v613 = vpop.f32.mrf.mxu0
      %v614 = vadd.f32 %v385, %v613
      %615 = vmatmul.f32.gmra.mxu0 %v230
      %v616 = vpop.f32.mrf.mxu0
      %v617 = vadd.f32 %v385, %v616
      %618 = vmatmul.f32.gmra.mxu0 %v232
      %v619 = vpop.f32.mrf.mxu0
      %v620 = vadd.f32 %v385, %v619
      %621 = vmatmul.f32.gmra.mxu0 %v234
      %v622 = vpop.f32.mrf.mxu0
      %v623 = vadd.f32 %v385, %v622
      %624 = vmatmul.f32.gmra.mxu0 %v236
      %v625 = vpop.f32.mrf.mxu0
      %v626 = vadd.f32 %v385, %v625
      %627 = vmatmul.f32.gmra.mxu0 %v238
      %v628 = vpop.f32.mrf.mxu0
      %v629 = vadd.f32 %v385, %v628
      %630 = vmatmul.f32.gmra.mxu0 %v240
      %v631 = vpop.f32.mrf.mxu0
      %v632 = vadd.f32 %v385, %v631
      %633 = vmatmul.f32.gmra.mxu0 %v242
      %v634 = vpop.f32.mrf.mxu0
      %v635 = vadd.f32 %v385, %v634
      %636 = vmatmul.f32.gmra.mxu0 %v244
      %v637 = vpop.f32.mrf.mxu0
      %v638 = vadd.f32 %v385, %v637
      %639 = vmatmul.f32.gmra.mxu0 %v246
      %v640 = vpop.f32.mrf.mxu0
      %v641 = vadd.f32 %v385, %v640
      %642 = vmatmul.f32.gmra.mxu0 %v248
      %v643 = vpop.f32.mrf.mxu0
      %v644 = vadd.f32 %v385, %v643
      %645 = vmatmul.f32.gmra.mxu0 %v250
      %v646 = vpop.f32.mrf.mxu0
      %v647 = vadd.f32 %v385, %v646
      %648 = vmatmul.f32.gmra.mxu0 %v252
      %v649 = vpop.f32.mrf.mxu0
      %v650 = vadd.f32 %v385, %v649
      %651 = vmatmul.f32.gmra.mxu0 %v254
      %v652 = vpop.f32.mrf.mxu0
      %v653 = vadd.f32 %v385, %v652
      %654 = vmatmul.f32.gmra.mxu0 %v256
      %v655 = vpop.f32.mrf.mxu0
      %v656 = vadd.f32 %v385, %v655
      %657 = vmatmul.f32.gmra.mxu0 %v258
      %v658 = vpop.f32.mrf.mxu0
      %v659 = vadd.f32 %v385, %v658
      %660 = vmatmul.f32.gmra.mxu0 %v260
      %v661 = vpop.f32.mrf.mxu0
      %v662 = vadd.f32 %v385, %v661
      %663 = vmatmul.f32.gmra.mxu0 %v262
      %v664 = vpop.f32.mrf.mxu0
      %v665 = vadd.f32 %v385, %v664
      %666 = vmatmul.f32.gmra.mxu0 %v264
      %v667 = vpop.f32.mrf.mxu0
      %v668 = vadd.f32 %v385, %v667
      %669 = vmatmul.f32.gmra.mxu0 %v266
      %v670 = vpop.f32.mrf.mxu0
      %v671 = vadd.f32 %v385, %v670
      %672 = vmatmul.f32.gmra.mxu0 %v268
      %v673 = vpop.f32.mrf.mxu0
      %v674 = vadd.f32 %v385, %v673
      %675 = vmatmul.f32.gmra.mxu0 %v270
      %v676 = vpop.f32.mrf.mxu0
      %v677 = vadd.f32 %v385, %v676
      %678 = vmatmul.f32.gmra.mxu0 %v272
      %v679 = vpop.f32.mrf.mxu0
      %v680 = vadd.f32 %v385, %v679
      %681 = vmatmul.f32.gmra.mxu0 %v274
      %v682 = vpop.f32.mrf.mxu0
      %v683 = vadd.f32 %v385, %v682
      %684 = vmatmul.f32.gmra.mxu0 %v276
      %v685 = vpop.f32.mrf.mxu0
      %v686 = vadd.f32 %v385, %v685
      %687 = vmatmul.f32.gmra.mxu0 %v278
      %v688 = vpop.f32.mrf.mxu0
      %v689 = vadd.f32 %v385, %v688
      %690 = vmatmul.f32.gmra.mxu0 %v280
      %v691 = vpop.f32.mrf.mxu0
      %v692 = vadd.f32 %v385, %v691
      %693 = vmatmul.f32.gmra.mxu0 %v282
      %v694 = vpop.f32.mrf.mxu0
      %v695 = vadd.f32 %v385, %v694
      %696 = vmatmul.f32.gmra.mxu0 %v284
      %v697 = vpop.f32.mrf.mxu0
      %v698 = vadd.f32 %v385, %v697
      %699 = vmatmul.f32.gmra.mxu0 %v286
      %v700 = vpop.f32.mrf.mxu0
      %v701 = vadd.f32 %v385, %v700
      %702 = vmatmul.f32.gmra.mxu0 %v288
      %v703 = vpop.f32.mrf.mxu0
      %v704 = vadd.f32 %v385, %v703
      %705 = vmatmul.f32.gmra.mxu0 %v290
      %v706 = vpop.f32.mrf.mxu0
      %v707 = vadd.f32 %v385, %v706
      %708 = vmatmul.f32.gmra.mxu0 %v292
      %v709 = vpop.f32.mrf.mxu0
      %v710 = vadd.f32 %v385, %v709
      %711 = vmatmul.f32.gmra.mxu0 %v294
      %v712 = vpop.f32.mrf.mxu0
      %v713 = vadd.f32 %v385, %v712
      %714 = vmatmul.f32.gmra.mxu0 %v296
      %v715 = vpop.f32.mrf.mxu0
      %v716 = vadd.f32 %v385, %v715
      %717 = vmatmul.f32.gmra.mxu0 %v298
      %v718 = vpop.f32.mrf.mxu0
      %v719 = vadd.f32 %v385, %v718
      %720 = vmatmul.f32.gmra.mxu0 %v300
      %v721 = vpop.f32.mrf.mxu0
      %v722 = vadd.f32 %v385, %v721
      %723 = vmatmul.f32.gmra.mxu0 %v302
      %v724 = vpop.f32.mrf.mxu0
      %v725 = vadd.f32 %v385, %v724
      %726 = vmatmul.f32.gmra.mxu0 %v304
      %v727 = vpop.f32.mrf.mxu0
      %v728 = vadd.f32 %v385, %v727
      %729 = vmatmul.f32.gmra.mxu0 %v306
      %v730 = vpop.f32.mrf.mxu0
      %v731 = vadd.f32 %v385, %v730
      %732 = vmatmul.f32.gmra.mxu0 %v308
      %v733 = vpop.f32.mrf.mxu0
      %v734 = vadd.f32 %v385, %v733
      %735 = vmatmul.f32.gmra.mxu0 %v310
      %v736 = vpop.f32.mrf.mxu0
      %v737 = vadd.f32 %v385, %v736
      %738 = vmatmul.f32.gmra.mxu0 %v312
      %v739 = vpop.f32.mrf.mxu0
      %v740 = vadd.f32 %v385, %v739
      %741 = vmatmul.f32.gmra.mxu0 %v314
      %v742 = vpop.f32.mrf.mxu0
      %v743 = vadd.f32 %v385, %v742
      %744 = vmatmul.f32.gmra.mxu0 %v316
      %v745 = vpop.f32.mrf.mxu0
      %v746 = vadd.f32 %v385, %v745
      %747 = vmatmul.f32.gmra.mxu0 %v318
      %v748 = vpop.f32.mrf.mxu0
      %v749 = vadd.f32 %v385, %v748
      %750 = vmatmul.f32.gmra.mxu0 %v320
      %v751 = vpop.f32.mrf.mxu0
      %v752 = vadd.f32 %v385, %v751
      %753 = vmatmul.f32.gmra.mxu0 %v322
      %v754 = vpop.f32.mrf.mxu0
      %v755 = vadd.f32 %v385, %v754
      %756 = vmatmul.f32.gmra.mxu0 %v324
      %v757 = vpop.f32.mrf.mxu0
      %v758 = vadd.f32 %v385, %v757
      %759 = vmatmul.f32.gmra.mxu0 %v326
      %v760 = vpop.f32.mrf.mxu0
      %v761 = vadd.f32 %v385, %v760
      %762 = vmatmul.f32.gmra.mxu0 %v328
      %v763 = vpop.f32.mrf.mxu0
      %v764 = vadd.f32 %v385, %v763
      %765 = vmatmul.f32.gmra.mxu0 %v330
      %v766 = vpop.f32.mrf.mxu0
      %v767 = vadd.f32 %v385, %v766
      %768 = vmatmul.f32.gmra.mxu0 %v332
      %v769 = vpop.f32.mrf.mxu0
      %v770 = vadd.f32 %v385, %v769
      %771 = vmatmul.f32.gmra.mxu0 %v334
      %v772 = vpop.f32.mrf.mxu0
      %v773 = vadd.f32 %v385, %v772
      %774 = vmatmul.f32.gmra.mxu0 %v336
      %v775 = vpop.f32.mrf.mxu0
      %v776 = vadd.f32 %v385, %v775
      %777 = vmatmul.f32.gmra.mxu0 %v338
      %v778 = vpop.f32.mrf.mxu0
      %v779 = vadd.f32 %v385, %v778
      %780 = vmatmul.f32.gmra.mxu0 %v340
      %v781 = vpop.f32.mrf.mxu0
      %v782 = vadd.f32 %v385, %v781
      %783 = vmatmul.f32.gmra.mxu0 %v342
      %v784 = vpop.f32.mrf.mxu0
      %v785 = vadd.f32 %v385, %v784
      %786 = vmatmul.f32.gmra.mxu0 %v344
      %v787 = vpop.f32.mrf.mxu0
      %v788 = vadd.f32 %v385, %v787
      %789 = vmatmul.f32.gmra.mxu0 %v346
      %v790 = vpop.f32.mrf.mxu0
      %v791 = vadd.f32 %v385, %v790
      %792 = vmatmul.f32.gmra.mxu0 %v348
      %v793 = vpop.f32.mrf.mxu0
      %v794 = vadd.f32 %v385, %v793
      %795 = vmatmul.f32.gmra.mxu0 %v350
      %v796 = vpop.f32.mrf.mxu0
      %v797 = vadd.f32 %v385, %v796
      %798 = vmatmul.f32.gmra.mxu0 %v352
      %v799 = vpop.f32.mrf.mxu0
      %v800 = vadd.f32 %v385, %v799
      %801 = vmatmul.f32.gmra.mxu0 %v354
      %v802 = vpop.f32.mrf.mxu0
      %v803 = vadd.f32 %v385, %v802
      %804 = vmatmul.f32.gmra.mxu0 %v356
      %v805 = vpop.f32.mrf.mxu0
      %v806 = vadd.f32 %v385, %v805
      %807 = vmatmul.f32.gmra.mxu0 %v358
      %v808 = vpop.f32.mrf.mxu0
      %v809 = vadd.f32 %v385, %v808
      %810 = vmatmul.f32.gmra.mxu0 %v360
      %v811 = vpop.f32.mrf.mxu0
      %v812 = vadd.f32 %v385, %v811
      %813 = vmatmul.f32.gmra.mxu0 %v362
      %v814 = vpop.f32.mrf.mxu0
      %v815 = vadd.f32 %v385, %v814
      %816 = vdwg.mxu0
      %817 = vmatpush.msra.mxu0 0.0
      %818 = vmatpush.msra.mxu0 0.0
      %819 = vmatpush.msra.mxu0 0.0
      %820 = vmatpush.msra.mxu0 0.0
      %821 = vmatpush.msra.mxu0 0.0
      %822 = vmatpush.msra.mxu0 0.0
      %823 = vmatpush.msra.mxu0 0.0
      %824 = vmatpush.msra.mxu0 0.0
      %825 = vmatpush.msra.mxu0 0.0
      %826 = vmatpush.msra.mxu0 0.0
      %827 = vmatpush.msra.mxu0 0.0
      %828 = vmatpush.msra.mxu0 0.0
      %829 = vmatpush.msra.mxu0 0.0
      %830 = vmatpush.msra.mxu0 %v594
      %831 = vmatpush.msra.mxu0 %v381
      %832 = vmatpush.msra.mxu0 %v380
      %833 = vmatmul.f32.gmra.mxu0 %v389
      %v834 = vpop.f32.mrf.mxu0
      %v835 = vadd.f32 %v614, %v834
      %836 = vmatmul.f32.gmra.mxu0 %v392
      %v837 = vpop.f32.mrf.mxu0
      %v838 = vadd.f32 %v617, %v837
      %839 = vmatmul.f32.gmra.mxu0 %v395
      %v840 = vpop.f32.mrf.mxu0
      %v841 = vadd.f32 %v620, %v840
      %842 = vmatmul.f32.gmra.mxu0 %v398
      %v843 = vpop.f32.mrf.mxu0
      %v844 = vadd.f32 %v623, %v843
      %845 = vmatmul.f32.gmra.mxu0 %v401
      %v846 = vpop.f32.mrf.mxu0
      %v847 = vadd.f32 %v626, %v846
      %848 = vmatmul.f32.gmra.mxu0 %v404
      %v849 = vpop.f32.mrf.mxu0
      %v850 = vadd.f32 %v629, %v849
      %851 = vmatmul.f32.gmra.mxu0 %v407
      %v852 = vpop.f32.mrf.mxu0
      %v853 = vadd.f32 %v632, %v852
      %854 = vmatmul.f32.gmra.mxu0 %v410
      %v855 = vpop.f32.mrf.mxu0
      %v856 = vadd.f32 %v635, %v855
      %857 = vmatmul.f32.gmra.mxu0 %v413
      %v858 = vpop.f32.mrf.mxu0
      %v859 = vadd.f32 %v638, %v858
      %860 = vmatmul.f32.gmra.mxu0 %v416
      %v861 = vpop.f32.mrf.mxu0
      %v862 = vadd.f32 %v641, %v861
      %863 = vmatmul.f32.gmra.mxu0 %v419
      %v864 = vpop.f32.mrf.mxu0
      %v865 = vadd.f32 %v644, %v864
      %866 = vmatmul.f32.gmra.mxu0 %v422
      %v867 = vpop.f32.mrf.mxu0
      %v868 = vadd.f32 %v647, %v867
      %869 = vmatmul.f32.gmra.mxu0 %v425
      %v870 = vpop.f32.mrf.mxu0
      %v871 = vadd.f32 %v650, %v870
      %872 = vmatmul.f32.gmra.mxu0 %v428
      %v873 = vpop.f32.mrf.mxu0
      %v874 = vadd.f32 %v653, %v873
      %875 = vmatmul.f32.gmra.mxu0 %v431
      %v876 = vpop.f32.mrf.mxu0
      %v877 = vadd.f32 %v656, %v876
      %878 = vmatmul.f32.gmra.mxu0 %v434
      %v879 = vpop.f32.mrf.mxu0
      %v880 = vadd.f32 %v659, %v879
      %881 = vmatmul.f32.gmra.mxu0 %v437
      %v882 = vpop.f32.mrf.mxu0
      %v883 = vadd.f32 %v662, %v882
      %884 = vmatmul.f32.gmra.mxu0 %v440
      %v885 = vpop.f32.mrf.mxu0
      %v886 = vadd.f32 %v665, %v885
      %887 = vmatmul.f32.gmra.mxu0 %v443
      %v888 = vpop.f32.mrf.mxu0
      %v889 = vadd.f32 %v668, %v888
      %890 = vmatmul.f32.gmra.mxu0 %v446
      %v891 = vpop.f32.mrf.mxu0
      %v892 = vadd.f32 %v671, %v891
      %893 = vmatmul.f32.gmra.mxu0 %v449
      %v894 = vpop.f32.mrf.mxu0
      %v895 = vadd.f32 %v674, %v894
      %896 = vmatmul.f32.gmra.mxu0 %v452
      %v897 = vpop.f32.mrf.mxu0
      %v898 = vadd.f32 %v677, %v897
      %899 = vmatmul.f32.gmra.mxu0 %v455
      %v900 = vpop.f32.mrf.mxu0
      %v901 = vadd.f32 %v680, %v900
      %902 = vmatmul.f32.gmra.mxu0 %v458
      %v903 = vpop.f32.mrf.mxu0
      %v904 = vadd.f32 %v683, %v903
      %905 = vmatmul.f32.gmra.mxu0 %v461
      %v906 = vpop.f32.mrf.mxu0
      %v907 = vadd.f32 %v686, %v906
      %908 = vmatmul.f32.gmra.mxu0 %v464
      %v909 = vpop.f32.mrf.mxu0
      %v910 = vadd.f32 %v689, %v909
      %911 = vmatmul.f32.gmra.mxu0 %v467
      %v912 = vpop.f32.mrf.mxu0
      %v913 = vadd.f32 %v692, %v912
      %914 = vmatmul.f32.gmra.mxu0 %v470
      %v915 = vpop.f32.mrf.mxu0
      %v916 = vadd.f32 %v695, %v915
      %917 = vmatmul.f32.gmra.mxu0 %v473
      %v918 = vpop.f32.mrf.mxu0
      %v919 = vadd.f32 %v698, %v918
      %920 = vmatmul.f32.gmra.mxu0 %v476
      %v921 = vpop.f32.mrf.mxu0
      %v922 = vadd.f32 %v701, %v921
      %923 = vmatmul.f32.gmra.mxu0 %v479
      %v924 = vpop.f32.mrf.mxu0
      %v925 = vadd.f32 %v704, %v924
      %926 = vmatmul.f32.gmra.mxu0 %v482
      %v927 = vpop.f32.mrf.mxu0
      %v928 = vadd.f32 %v707, %v927
      %929 = vmatmul.f32.gmra.mxu0 %v485
      %v930 = vpop.f32.mrf.mxu0
      %v931 = vadd.f32 %v710, %v930
      %932 = vmatmul.f32.gmra.mxu0 %v488
      %v933 = vpop.f32.mrf.mxu0
      %v934 = vadd.f32 %v713, %v933
      %935 = vmatmul.f32.gmra.mxu0 %v491
      %v936 = vpop.f32.mrf.mxu0
      %v937 = vadd.f32 %v716, %v936
      %938 = vmatmul.f32.gmra.mxu0 %v494
      %v939 = vpop.f32.mrf.mxu0
      %v940 = vadd.f32 %v719, %v939
      %941 = vmatmul.f32.gmra.mxu0 %v497
      %v942 = vpop.f32.mrf.mxu0
      %v943 = vadd.f32 %v722, %v942
      %944 = vmatmul.f32.gmra.mxu0 %v500
      %v945 = vpop.f32.mrf.mxu0
      %v946 = vadd.f32 %v725, %v945
      %947 = vmatmul.f32.gmra.mxu0 %v503
      %v948 = vpop.f32.mrf.mxu0
      %v949 = vadd.f32 %v728, %v948
      %950 = vmatmul.f32.gmra.mxu0 %v506
      %v951 = vpop.f32.mrf.mxu0
      %v952 = vadd.f32 %v731, %v951
      %953 = vmatmul.f32.gmra.mxu0 %v509
      %v954 = vpop.f32.mrf.mxu0
      %v955 = vadd.f32 %v734, %v954
      %956 = vmatmul.f32.gmra.mxu0 %v512
      %v957 = vpop.f32.mrf.mxu0
      %v958 = vadd.f32 %v737, %v957
      %959 = vmatmul.f32.gmra.mxu0 %v515
      %v960 = vpop.f32.mrf.mxu0
      %v961 = vadd.f32 %v740, %v960
      %962 = vmatmul.f32.gmra.mxu0 %v518
      %v963 = vpop.f32.mrf.mxu0
      %v964 = vadd.f32 %v743, %v963
      %965 = vmatmul.f32.gmra.mxu0 %v521
      %v966 = vpop.f32.mrf.mxu0
      %v967 = vadd.f32 %v746, %v966
      %968 = vmatmul.f32.gmra.mxu0 %v524
      %v969 = vpop.f32.mrf.mxu0
      %v970 = vadd.f32 %v749, %v969
      %971 = vmatmul.f32.gmra.mxu0 %v527
      %v972 = vpop.f32.mrf.mxu0
      %v973 = vadd.f32 %v752, %v972
      %974 = vmatmul.f32.gmra.mxu0 %v530
      %v975 = vpop.f32.mrf.mxu0
      %v976 = vadd.f32 %v755, %v975
      %977 = vmatmul.f32.gmra.mxu0 %v533
      %v978 = vpop.f32.mrf.mxu0
      %v979 = vadd.f32 %v758, %v978
      %980 = vmatmul.f32.gmra.mxu0 %v536
      %v981 = vpop.f32.mrf.mxu0
      %v982 = vadd.f32 %v761, %v981
      %983 = vmatmul.f32.gmra.mxu0 %v539
      %v984 = vpop.f32.mrf.mxu0
      %v985 = vadd.f32 %v764, %v984
      %986 = vmatmul.f32.gmra.mxu0 %v542
      %v987 = vpop.f32.mrf.mxu0
      %v988 = vadd.f32 %v767, %v987
      %989 = vmatmul.f32.gmra.mxu0 %v545
      %v990 = vpop.f32.mrf.mxu0
      %v991 = vadd.f32 %v770, %v990
      %992 = vmatmul.f32.gmra.mxu0 %v548
      %v993 = vpop.f32.mrf.mxu0
      %v994 = vadd.f32 %v773, %v993
      %995 = vmatmul.f32.gmra.mxu0 %v551
      %v996 = vpop.f32.mrf.mxu0
      %v997 = vadd.f32 %v776, %v996
      %998 = vmatmul.f32.gmra.mxu0 %v554
      %v999 = vpop.f32.mrf.mxu0
      %v1000 = vadd.f32 %v779, %v999
      %1001 = vmatmul.f32.gmra.mxu0 %v557
      %v1002 = vpop.f32.mrf.mxu0
      %v1003 = vadd.f32 %v782, %v1002
      %1004 = vmatmul.f32.gmra.mxu0 %v560
      %v1005 = vpop.f32.mrf.mxu0
      %v1006 = vadd.f32 %v785, %v1005
      %1007 = vmatmul.f32.gmra.mxu0 %v563
      %v1008 = vpop.f32.mrf.mxu0
      %v1009 = vadd.f32 %v788, %v1008
      %1010 = vmatmul.f32.gmra.mxu0 %v566
      %v1011 = vpop.f32.mrf.mxu0
      %v1012 = vadd.f32 %v791, %v1011
      %1013 = vmatmul.f32.gmra.mxu0 %v569
      %v1014 = vpop.f32.mrf.mxu0
      %v1015 = vadd.f32 %v794, %v1014
      %1016 = vmatmul.f32.gmra.mxu0 %v572
      %v1017 = vpop.f32.mrf.mxu0
      %v1018 = vadd.f32 %v797, %v1017
      %1019 = vmatmul.f32.gmra.mxu0 %v575
      %v1020 = vpop.f32.mrf.mxu0
      %v1021 = vadd.f32 %v800, %v1020
      %1022 = vmatmul.f32.gmra.mxu0 %v578
      %v1023 = vpop.f32.mrf.mxu0
      %v1024 = vadd.f32 %v803, %v1023
      %1025 = vmatmul.f32.gmra.mxu0 %v581
      %v1026 = vpop.f32.mrf.mxu0
      %v1027 = vadd.f32 %v806, %v1026
      %1028 = vmatmul.f32.gmra.mxu0 %v584
      %v1029 = vpop.f32.mrf.mxu0
      %v1030 = vadd.f32 %v809, %v1029
      %1031 = vmatmul.f32.gmra.mxu0 %v587
      %v1032 = vpop.f32.mrf.mxu0
      %v1033 = vadd.f32 %v812, %v1032
      %1034 = vmatmul.f32.gmra.mxu0 %v590
      %v1035 = vpop.f32.mrf.mxu0
      %v1036 = vadd.f32 %v815, %v1035
      %1037 = vdwg.mxu0
      %vm1038 = vcmask 64512
      %1039 = vst.msk [vmem:[%s226] sm:$0xff] %vm1038, %v835
      %1040 = vst.msk [vmem:[%s226 + $0x8] sm:$0xff] %vm1038, %v838
      %1041 = vst.msk [vmem:[%s226 + $0x10] sm:$0xff] %vm1038, %v841
      %1042 = vst.msk [vmem:[%s226 + $0x18] sm:$0xff] %vm1038, %v844
      %1043 = vst.msk [vmem:[%s226 + $0x20] sm:$0xff] %vm1038, %v847
      %1044 = vst.msk [vmem:[%s226 + $0x28] sm:$0xff] %vm1038, %v850
      %1045 = vst.msk [vmem:[%s226 + $0x30] sm:$0xff] %vm1038, %v853
      %1046 = vst.msk [vmem:[%s226 + $0x38] sm:$0xff] %vm1038, %v856
      %1047 = vst.msk [vmem:[%s226 + $0x40] sm:$0xff] %vm1038, %v859
      %1048 = vst.msk [vmem:[%s226 + $0x48] sm:$0xff] %vm1038, %v862
      %1049 = vst.msk [vmem:[%s226 + $0x50] sm:$0xff] %vm1038, %v865
      %1050 = vst.msk [vmem:[%s226 + $0x58] sm:$0xff] %vm1038, %v868
      %1051 = vst.msk [vmem:[%s226 + $0x60] sm:$0xff] %vm1038, %v871
      %1052 = vst.msk [vmem:[%s226 + $0x68] sm:$0xff] %vm1038, %v874
      %1053 = vst.msk [vmem:[%s226 + $0x70] sm:$0xff] %vm1038, %v877
      %1054 = vst.msk [vmem:[%s226 + $0x78] sm:$0xff] %vm1038, %v880
      %1055 = vst.msk [vmem:[%s226 + $0x80] sm:$0xff] %vm1038, %v883
      %1056 = vst.msk [vmem:[%s226 + $0x88] sm:$0xff] %vm1038, %v886
      %1057 = vst.msk [vmem:[%s226 + $0x90] sm:$0xff] %vm1038, %v889
      %1058 = vst.msk [vmem:[%s226 + $0x98] sm:$0xff] %vm1038, %v892
      %1059 = vst.msk [vmem:[%s226 + $0xa0] sm:$0xff] %vm1038, %v895
      %1060 = vst.msk [vmem:[%s226 + $0xa8] sm:$0xff] %vm1038, %v898
      %1061 = vst.msk [vmem:[%s226 + $0xb0] sm:$0xff] %vm1038, %v901
      %1062 = vst.msk [vmem:[%s226 + $0xb8] sm:$0xff] %vm1038, %v904
      %1063 = vst.msk [vmem:[%s226 + $0xc0] sm:$0xff] %vm1038, %v907
      %1064 = vst.msk [vmem:[%s226 + $0xc8] sm:$0xff] %vm1038, %v910
      %1065 = vst.msk [vmem:[%s226 + $0xd0] sm:$0xff] %vm1038, %v913
      %1066 = vst.msk [vmem:[%s226 + $0xd8] sm:$0xff] %vm1038, %v916
      %1067 = vst.msk [vmem:[%s226 + $0xe0] sm:$0xff] %vm1038, %v919
      %1068 = vst.msk [vmem:[%s226 + $0xe8] sm:$0xff] %vm1038, %v922
      %1069 = vst.msk [vmem:[%s226 + $0xf0] sm:$0xff] %vm1038, %v925
      %1070 = vst.msk [vmem:[%s226 + $0xf8] sm:$0xff] %vm1038, %v928
      %1071 = vst.msk [vmem:[%s226 + $0x100] sm:$0xff] %vm1038, %v931
      %1072 = vst.msk [vmem:[%s226 + $0x108] sm:$0xff] %vm1038, %v934
      %1073 = vst.msk [vmem:[%s226 + $0x110] sm:$0xff] %vm1038, %v937
      %1074 = vst.msk [vmem:[%s226 + $0x118] sm:$0xff] %vm1038, %v940
      %1075 = vst.msk [vmem:[%s226 + $0x120] sm:$0xff] %vm1038, %v943
      %1076 = vst.msk [vmem:[%s226 + $0x128] sm:$0xff] %vm1038, %v946
      %1077 = vst.msk [vmem:[%s226 + $0x130] sm:$0xff] %vm1038, %v949
      %1078 = vst.msk [vmem:[%s226 + $0x138] sm:$0xff] %vm1038, %v952
      %1079 = vst.msk [vmem:[%s226 + $0x140] sm:$0xff] %vm1038, %v955
      %1080 = vst.msk [vmem:[%s226 + $0x148] sm:$0xff] %vm1038, %v958
      %1081 = vst.msk [vmem:[%s226 + $0x150] sm:$0xff] %vm1038, %v961
      %1082 = vst.msk [vmem:[%s226 + $0x158] sm:$0xff] %vm1038, %v964
      %1083 = vst.msk [vmem:[%s226 + $0x160] sm:$0xff] %vm1038, %v967
      %1084 = vst.msk [vmem:[%s226 + $0x168] sm:$0xff] %vm1038, %v970
      %1085 = vst.msk [vmem:[%s226 + $0x170] sm:$0xff] %vm1038, %v973
      %1086 = vst.msk [vmem:[%s226 + $0x178] sm:$0xff] %vm1038, %v976
      %1087 = vst.msk [vmem:[%s226 + $0x180] sm:$0xff] %vm1038, %v979
      %1088 = vst.msk [vmem:[%s226 + $0x188] sm:$0xff] %vm1038, %v982
      %1089 = vst.msk [vmem:[%s226 + $0x190] sm:$0xff] %vm1038, %v985
      %1090 = vst.msk [vmem:[%s226 + $0x198] sm:$0xff] %vm1038, %v988
      %1091 = vst.msk [vmem:[%s226 + $0x1a0] sm:$0xff] %vm1038, %v991
      %1092 = vst.msk [vmem:[%s226 + $0x1a8] sm:$0xff] %vm1038, %v994
      %1093 = vst.msk [vmem:[%s226 + $0x1b0] sm:$0xff] %vm1038, %v997
      %1094 = vst.msk [vmem:[%s226 + $0x1b8] sm:$0xff] %vm1038, %v1000
      %1095 = vst.msk [vmem:[%s226 + $0x1c0] sm:$0xff] %vm1038, %v1003
      %1096 = vst.msk [vmem:[%s226 + $0x1c8] sm:$0xff] %vm1038, %v1006
      %1097 = vst.msk [vmem:[%s226 + $0x1d0] sm:$0xff] %vm1038, %v1009
      %1098 = vst.msk [vmem:[%s226 + $0x1d8] sm:$0xff] %vm1038, %v1012
      %1099 = vst.msk [vmem:[%s226 + $0x1e0] sm:$0xff] %vm1038, %v1015
      %1100 = vst.msk [vmem:[%s226 + $0x1e8] sm:$0xff] %vm1038, %v1018
      %1101 = vst.msk [vmem:[%s226 + $0x1f0] sm:$0xff] %vm1038, %v1021
      %1102 = vst.msk [vmem:[%s226 + $0x1f8] sm:$0xff] %vm1038, %v1024
      %1103 = vst.msk [vmem:[%s226 + $0x200] sm:$0xff] %vm1038, %v1027
      %1104 = vst.msk [vmem:[%s226 + $0x208] sm:$0xff] %vm1038, %v1030
      %1105 = vst.msk [vmem:[%s226 + $0x210] sm:$0xff] %vm1038, %v1033
      %1106 = vst.msk [vmem:[%s226 + $0x218] sm:$0xff] %vm1038, %v1036
      %s1107 = smul.u32 68, %s18
      %p1108 = scmp.lt.s32.totalorder %s1107, 1155
      %s1109 = scalar_select %p1108, %s1107, 1155
      %p1110 = scmp.lt.s32.totalorder %s19, 0
      %s1111 = scalar_select %p1110, %s19, 0
      %s1112 = sadd.s32 %s1111, %s1109
      %s1113 = smul.addr %s1112, 8
      %s1114 = scalar_lea.vmem %s3, %s1113
      // Predicated region
      $region33: #{skin_model1_forward.7} parent=31 // pred_check
        %p1115 = pneg %p124
      $region34: #{skin_model1_forward.7} parent=31 // pred_check_branch
        %1117 = sbr.rel (%p1115) target = $region36
      $region35: #{skin_model1_forward.7} parent=31 // pred_region
        %s1118 = smul.u32 68, %s18
      $region36: #{skin_model1_forward.7} parent=31 // pred_fallthru
        _
    $region32: #{skin_model1_forward.7} parent=5 // pred_fallthru
      _
    %p1119 = scmp.le.s32.totalorder 2, %s9
    // Predicated region
    $region37: #{skin_model1_forward.7} parent=5 // pred_check
      %p1120 = pneg %p1119
    $region38: #{skin_model1_forward.7} parent=5 // pred_check_branch
      %1122 = sbr.rel (%p1120) target = $region40
    $region39: #{skin_model1_forward.7} parent=5 // pred_region
      %s1123 = ssub.s32 %s9, 2
      // Predicated region
      $region41: #{skin_model1_forward.7} parent=39 // pred_check
        %p1124 = pneg %p130
      $region42: #{skin_model1_forward.7} parent=39 // pred_check_branch
        %1126 = sbr.rel (%p1124) target = $region44
      $region43: #{skin_model1_forward.7} parent=39 // pred_region
        %s1127 = smul.u32 68, %s20
        %p1128 = scmp.lt.s32.totalorder %s1127, 1155
        %s1129 = scalar_select %p1128, %s1127, 1155
        %p1130 = scmp.lt.s32.totalorder %s21, 0
        %s1131 = scalar_select %p1130, %s21, 0
        %s1132 = sadd.s32 %s1131, %s1129
        %s1133 = smul.addr %s1132, 8
        %s1134 = scalar_lea.vmem %s3, %s1133
      $region44: #{skin_model1_forward.7} parent=39 // pred_fallthru
        _
    $region40: #{skin_model1_forward.7} parent=5 // pred_fallthru
      _
  $region6: #{skin_model1_forward.7} parent=0 // loop_footer
    %s13 = sadd.s32 1, %s9
  $region7: #{skin_model1_forward.7} parent=0 // loop_footer_branch
    %8 = sbr.rel target = $region3
  $region8: #{skin_model1_forward.7} parent=0 // loop_exit
    _

// kernel: skin_model1_forward.8
$region0: #{skin_model1_forward.8}
  #allocation0 [shape = 'u32[]', space=smem, size = 0x4, offset = 0x4, fixed_abs, tag = 'smem constant byte address 0x4 - core index']
  #allocation1 [shape = 'u32[72,128]{1,0:T(1,128)}', space=vmem, size = 0x9000, scoped, tag = 'internal scratch']
  %s0 = inlined_call_operand.vmem [shape: f32[200,392], index: 0, kind: input, shape index: {}]
  %s1 = inlined_call_operand.vmem [shape: f32[392,16], index: 1, kind: input, shape index: {}]
  %s2 = inlined_call_operand.vmem [shape: f32[1,16], index: 2, kind: input, shape index: {}]
  %s3 = inlined_call_operand.vmem [shape: f32[200,16], index: 3, kind: output, shape index: {}]
  %s4 = sld [smem:[#allocation0]]
  $region22: #{skin_model1_forward.8} parent=0
    _
  %s6 = ssub.s32 1, %s4
  %s7 = scalar_select 0, %s6, %s4
  // Predicated region
  $region2: #{skin_model1_forward.8} parent=0 // pred_check
    _
  $region3: #{skin_model1_forward.8} parent=0 // pred_check_branch
    %9 = sbr.rel (0) target = $region5
  $region4: #{skin_model1_forward.8} parent=0 // pred_region
    _
  $region5: #{skin_model1_forward.8} parent=0 // pred_fallthru
    _
  // Predicated region
  $region6: #{skin_model1_forward.8} parent=0 // pred_check
    _
  $region7: #{skin_model1_forward.8} parent=0 // pred_check_branch
    %11 = sbr.rel (0) target = $region9
  $region8: #{skin_model1_forward.8} parent=0 // pred_region
    _
  $region9: #{skin_model1_forward.8} parent=0 // pred_fallthru
    _
  // Predicated region
  $region10: #{skin_model1_forward.8} parent=0 // pred_check
    _
  $region11: #{skin_model1_forward.8} parent=0 // pred_check_branch
    %13 = sbr.rel (0) target = $region13
  $region12: #{skin_model1_forward.8} parent=0 // pred_region
    _
  $region13: #{skin_model1_forward.8} parent=0 // pred_fallthru
    _
  %v14 = vld [vmem:[%s0] sm:$0xff]
  %v15 = vld [vmem:[%s0 + $0x8] sm:$0xff]
  %v16 = vld [vmem:[%s0 + $0x10] sm:$0xff]
  %v17 = vld [vmem:[%s0 + $0x18] sm:$0xff]
  %v18 = vld [vmem:[%s0 + $0x20] sm:$0xff]
  %v19 = vld [vmem:[%s0 + $0x28] sm:$0xff]
  %v20 = vld [vmem:[%s0 + $0x30] sm:$0xff]
  %v21 = vld [vmem:[%s0 + $0x38] sm:$0xff]
  %v22 = vld [vmem:[%s0 + $0x40] sm:$0xff]
  %v23 = vld [vmem:[%s0 + $0x48] sm:$0xff]
  %v24 = vld [vmem:[%s0 + $0x50] sm:$0xff]
  %v25 = vld [vmem:[%s0 + $0x58] sm:$0xff]
  %v26 = vld [vmem:[%s0 + $0x60] sm:$0xff]
  %v27 = vld [vmem:[%s0 + $0x68] sm:$0xff]
  %v28 = vld [vmem:[%s0 + $0x70] sm:$0xff]
  %v29 = vld [vmem:[%s0 + $0x78] sm:$0xff]
  %v30 = vld [vmem:[%s0 + $0x80] sm:$0xff]
  %v31 = vld [vmem:[%s0 + $0x88] sm:$0xff]
  %v32 = vld [vmem:[%s0 + $0x90] sm:$0xff]
  %v33 = vld [vmem:[%s0 + $0x98] sm:$0xff]
  %v34 = vld [vmem:[%s0 + $0xa0] sm:$0xff]
  %v35 = vld [vmem:[%s0 + $0xa8] sm:$0xff]
  %v36 = vld [vmem:[%s0 + $0xb0] sm:$0xff]
  %v37 = vld [vmem:[%s0 + $0xb8] sm:$0xff]
  %v38 = vld [vmem:[%s0 + $0xc0] sm:$0xff]
  %v39 = vld [vmem:[%s0 + $0xc8] sm:$0xff]
  %v40 = vld [vmem:[%s0 + $0xd0] sm:$0xff]
  %v41 = vld [vmem:[%s0 + $0xd8] sm:$0xff]
  %v42 = vld [vmem:[%s0 + $0xe0] sm:$0xff]
  %v43 = vld [vmem:[%s0 + $0xe8] sm:$0xff]
  %v44 = vld [vmem:[%s0 + $0xf0] sm:$0xff]
  %v45 = vld [vmem:[%s0 + $0xf8] sm:$0xff]
  %v46 = vld [vmem:[%s0 + $0x100] sm:$0xff]
  %v47 = vld [vmem:[%s0 + $0x108] sm:$0xff]
  %v48 = vld [vmem:[%s0 + $0x110] sm:$0xff]
  %v49 = vld [vmem:[%s0 + $0x118] sm:$0xff]
  %v50 = vld [vmem:[%s0 + $0x120] sm:$0xff]
  %v51 = vld [vmem:[%s0 + $0x128] sm:$0xff]
  %v52 = vld [vmem:[%s0 + $0x130] sm:$0xff]
  %v53 = vld [vmem:[%s0 + $0x138] sm:$0xff]
  %v54 = vld [vmem:[%s0 + $0x140] sm:$0xff]
  %v55 = vld [vmem:[%s0 + $0x148] sm:$0xff]
  %v56 = vld [vmem:[%s0 + $0x150] sm:$0xff]
  %v57 = vld [vmem:[%s0 + $0x158] sm:$0xff]
  %v58 = vld [vmem:[%s0 + $0x160] sm:$0xff]
  %v59 = vld [vmem:[%s0 + $0x168] sm:$0xff]
  %v60 = vld [vmem:[%s0 + $0x170] sm:$0xff]
  %v61 = vld [vmem:[%s0 + $0x178] sm:$0xff]
  %v62 = vld [vmem:[%s0 + $0x180] sm:$0xff]
  %v63 = vld [vmem:[%s0 + $0x188] sm:$0xff]
  %v64 = vld [vmem:[%s0 + $0x190] sm:$0xff]
  %v65 = vld [vmem:[%s0 + $0x198] sm:$0xff]
  %v66 = vld [vmem:[%s0 + $0x1a0] sm:$0xff]
  %v67 = vld [vmem:[%s0 + $0x1a8] sm:$0xff]
  %v68 = vld [vmem:[%s0 + $0x1b0] sm:$0xff]
  %v69 = vld [vmem:[%s0 + $0x1b8] sm:$0xff]
  %v70 = vld [vmem:[%s0 + $0x1c0] sm:$0xff]
  %v71 = vld [vmem:[%s0 + $0x1c8] sm:$0xff]
  %v72 = vld [vmem:[%s0 + $0x1d0] sm:$0xff]
  %v73 = vld [vmem:[%s0 + $0x1d8] sm:$0xff]
  %v74 = vld [vmem:[%s0 + $0x1e0] sm:$0xff]
  %v75 = vld [vmem:[%s0 + $0x1e8] sm:$0xff]
  %v76 = vld [vmem:[%s0 + $0x1f0] sm:$0xff]
  %v77 = vld [vmem:[%s0 + $0x1f8] sm:$0xff]
  %v78 = vld [vmem:[%s0 + $0x200] sm:$0xff]
  %v79 = vld [vmem:[%s0 + $0x208] sm:$0xff]
  %v80 = vld [vmem:[%s0 + $0x210] sm:$0xff]
  %v81 = vld [vmem:[%s0 + $0x218] sm:$0xff]
  %v82 = vld [vmem:[%s0 + $0x220] sm:$0xff]
  %v83 = vld [vmem:[%s0 + $0x228] sm:$0xff]
  %v84 = vld [vmem:[%s0 + $0x230] sm:$0xff]
  %v85 = vld [vmem:[%s0 + $0x238] sm:$0xff]
  %v86 = vld [vmem:[%s0 + $0x240] sm:$0xff]
  %v87 = vld [vmem:[%s0 + $0x248] sm:$0xff]
  %v88 = vld [vmem:[%s0 + $0x250] sm:$0xff]
  %v89 = vld [vmem:[%s0 + $0x258] sm:$0xff]
  %v90 = vld [vmem:[%s0 + $0x260] sm:$0xff]
  %v91 = vld [vmem:[%s0 + $0x268] sm:$0xff]
  %v92 = vld [vmem:[%s0 + $0x270] sm:$0xff]
  %v93 = vld [vmem:[%s0 + $0x278] sm:$0xff]
  %v94 = vld [vmem:[%s0 + $0x280] sm:$0xff]
  %v95 = vld [vmem:[%s0 + $0x288] sm:$0xff]
  %v96 = vld [vmem:[%s0 + $0x290] sm:$0xff]
  %v97 = vld [vmem:[%s0 + $0x298] sm:$0xff]
  %v98 = vld [vmem:[%s0 + $0x2a0] sm:$0xff]
  %v99 = vld [vmem:[%s0 + $0x2a8] sm:$0xff]
  %v100 = vld [vmem:[%s0 + $0x2b0] sm:$0xff]
  %v101 = vld [vmem:[%s0 + $0x2b8] sm:$0xff]
  %v102 = vld [vmem:[%s0 + $0x2c0] sm:$0xff]
  %v103 = vld [vmem:[%s0 + $0x2c8] sm:$0xff]
  %v104 = vld [vmem:[%s0 + $0x2d0] sm:$0xff]
  %v105 = vld [vmem:[%s0 + $0x2d8] sm:$0xff]
  %v106 = vld [vmem:[%s0 + $0x2e0] sm:$0xff]
  %v107 = vld [vmem:[%s0 + $0x2e8] sm:$0xff]
  %v108 = vld [vmem:[%s0 + $0x2f0] sm:$0xff]
  %v109 = vld [vmem:[%s0 + $0x2f8] sm:$0xff]
  %v110 = vld [vmem:[%s0 + $0x300] sm:$0xff]
  %v111 = vld [vmem:[%s0 + $0x308] sm:$0xff]
  %v112 = vld [vmem:[%s0 + $0x310] sm:$0xff]
  %v113 = vld [vmem:[%s0 + $0x318] sm:$0xff]
  %v114 = vld [vmem:[%s1] sm:$0xff]
  %v115 = vld [vmem:[%s1 + $0x8] sm:$0xff]
  %v116 = vld [vmem:[%s1 + $0x10] sm:$0xff]
  %v117 = vld [vmem:[%s1 + $0x18] sm:$0xff]
  %v118 = vld [vmem:[%s1 + $0x20] sm:$0xff]
  %v119 = vld [vmem:[%s1 + $0x28] sm:$0xff]
  %v120 = vld [vmem:[%s1 + $0x30] sm:$0xff]
  %v121 = vld [vmem:[%s1 + $0x38] sm:$0xff]
  %v122 = vld [vmem:[%s1 + $0x40] sm:$0xff]
  %v123 = vld [vmem:[%s1 + $0x48] sm:$0xff]
  %v124 = vld [vmem:[%s1 + $0x50] sm:$0xff]
  %v125 = vld [vmem:[%s1 + $0x58] sm:$0xff]
  %v126 = vld [vmem:[%s1 + $0x60] sm:$0xff]
  %v127 = vld [vmem:[%s1 + $0x68] sm:$0xff]
  %v128 = vld [vmem:[%s1 + $0x70] sm:$0xff]
  %v129 = vld [vmem:[%s1 + $0x78] sm:$0xff]
  %v130 = vld [vmem:[%s1 + $0x80] sm:$0xff]
  %v131 = vld [vmem:[%s1 + $0x88] sm:$0xff]
  %v132 = vld [vmem:[%s1 + $0x90] sm:$0xff]
  %v133 = vld [vmem:[%s1 + $0x98] sm:$0xff]
  %v134 = vld [vmem:[%s1 + $0xa0] sm:$0xff]
  %v135 = vld [vmem:[%s1 + $0xa8] sm:$0xff]
  %v136 = vld [vmem:[%s1 + $0xb0] sm:$0xff]
  %v137 = vld [vmem:[%s1 + $0xb8] sm:$0xff]
  %v138 = vld [vmem:[%s1 + $0xc0] sm:$0xff]
  %v139 = vld [vmem:[%s1 + $0xc8] sm:$0xff]
  %v140 = vld [vmem:[%s1 + $0xd0] sm:$0xff]
  %v141 = vld [vmem:[%s1 + $0xd8] sm:$0xff]
  %v142 = vld [vmem:[%s1 + $0xe0] sm:$0xff]
  %v143 = vld [vmem:[%s1 + $0xe8] sm:$0xff]
  %v144 = vld [vmem:[%s1 + $0xf0] sm:$0xff]
  %v145 = vld [vmem:[%s1 + $0xf8] sm:$0xff]
  %v146 = vld [vmem:[%s1 + $0x100] sm:$0xff]
  %v147 = vld [vmem:[%s1 + $0x108] sm:$0xff]
  %v148 = vld [vmem:[%s1 + $0x110] sm:$0xff]
  %v149 = vld [vmem:[%s1 + $0x118] sm:$0xff]
  %v150 = vld [vmem:[%s1 + $0x120] sm:$0xff]
  %v151 = vld [vmem:[%s1 + $0x128] sm:$0xff]
  %v152 = vld [vmem:[%s1 + $0x130] sm:$0xff]
  %v153 = vld [vmem:[%s1 + $0x138] sm:$0xff]
  %v154 = vld [vmem:[%s1 + $0x140] sm:$0xff]
  %v155 = vld [vmem:[%s1 + $0x148] sm:$0xff]
  %v156 = vld [vmem:[%s1 + $0x150] sm:$0xff]
  %v157 = vld [vmem:[%s1 + $0x158] sm:$0xff]
  %v158 = vld [vmem:[%s1 + $0x160] sm:$0xff]
  %v159 = vld [vmem:[%s1 + $0x168] sm:$0xff]
  %v160 = vld [vmem:[%s1 + $0x170] sm:$0xff]
  %v161 = vld [vmem:[%s1 + $0x178] sm:$0xff]
  %v162 = vld [vmem:[%s1 + $0x180] sm:$0xff]
  %v163 = vld [vmem:[%s2] sm:$0x1]
  %v165 = vperm.slane %v163, 0
  %vm167 = vcmask 64512
  %v169 = vsel %vm167, %v17, 0
  %v172 = vsel %vm167, %v21, 0
  %v175 = vsel %vm167, %v25, 0
  %v178 = vsel %vm167, %v29, 0
  %v181 = vsel %vm167, %v33, 0
  %v184 = vsel %vm167, %v37, 0
  %v187 = vsel %vm167, %v41, 0
  %v190 = vsel %vm167, %v45, 0
  %v193 = vsel %vm167, %v49, 0
  %v196 = vsel %vm167, %v53, 0
  %v199 = vsel %vm167, %v57, 0
  %v202 = vsel %vm167, %v61, 0
  %v205 = vsel %vm167, %v65, 0
  %v208 = vsel %vm167, %v69, 0
  %v211 = vsel %vm167, %v73, 0
  %v214 = vsel %vm167, %v77, 0
  %v217 = vsel %vm167, %v81, 0
  %v220 = vsel %vm167, %v85, 0
  %v223 = vsel %vm167, %v89, 0
  %v226 = vsel %vm167, %v93, 0
  %v229 = vsel %vm167, %v97, 0
  %v232 = vsel %vm167, %v101, 0
  %v235 = vsel %vm167, %v105, 0
  %v238 = vsel %vm167, %v109, 0
  %v241 = vsel %vm167, %v113, 0
  %243 = vmatpush.msra.mxu0 %v129
  %244 = vmatpush.msra.mxu0 %v128
  %245 = vmatpush.msra.mxu0 %v127
  %246 = vmatpush.msra.mxu0 %v126
  %247 = vmatpush.msra.mxu0 %v125
  %248 = vmatpush.msra.mxu0 %v124
  %249 = vmatpush.msra.mxu0 %v123
  %250 = vmatpush.msra.mxu0 %v122
  %251 = vmatpush.msra.mxu0 %v121
  %252 = vmatpush.msra.mxu0 %v120
  %253 = vmatpush.msra.mxu0 %v119
  %254 = vmatpush.msra.mxu0 %v118
  %255 = vmatpush.msra.mxu0 %v117
  %256 = vmatpush.msra.mxu0 %v116
  %257 = vmatpush.msra.mxu0 %v115
  %258 = vmatpush.msra.mxu0 %v114
  %259 = vmatmul.f32.gmra.mxu0 %v14
  %v260 = vpop.f32.mrf.mxu0
  %v261 = vadd.f32 %v165, %v260
  %262 = vmatmul.f32.gmra.mxu0 %v18
  %v263 = vpop.f32.mrf.mxu0
  %v264 = vadd.f32 %v165, %v263
  %265 = vmatmul.f32.gmra.mxu0 %v22
  %v266 = vpop.f32.mrf.mxu0
  %v267 = vadd.f32 %v165, %v266
  %268 = vmatmul.f32.gmra.mxu0 %v26
  %v269 = vpop.f32.mrf.mxu0
  %v270 = vadd.f32 %v165, %v269
  %271 = vmatmul.f32.gmra.mxu0 %v30
  %v272 = vpop.f32.mrf.mxu0
  %v273 = vadd.f32 %v165, %v272
  %274 = vmatmul.f32.gmra.mxu0 %v34
  %v275 = vpop.f32.mrf.mxu0
  %v276 = vadd.f32 %v165, %v275
  %277 = vmatmul.f32.gmra.mxu0 %v38
  %v278 = vpop.f32.mrf.mxu0
  %v279 = vadd.f32 %v165, %v278
  %280 = vmatmul.f32.gmra.mxu0 %v42
  %v281 = vpop.f32.mrf.mxu0
  %v282 = vadd.f32 %v165, %v281
  %283 = vmatmul.f32.gmra.mxu0 %v46
  %v284 = vpop.f32.mrf.mxu0
  %v285 = vadd.f32 %v165, %v284
  %286 = vmatmul.f32.gmra.mxu0 %v50
  %v287 = vpop.f32.mrf.mxu0
  %v288 = vadd.f32 %v165, %v287
  %289 = vmatmul.f32.gmra.mxu0 %v54
  %v290 = vpop.f32.mrf.mxu0
  %v291 = vadd.f32 %v165, %v290
  %292 = vmatmul.f32.gmra.mxu0 %v58
  %v293 = vpop.f32.mrf.mxu0
  %v294 = vadd.f32 %v165, %v293
  %295 = vmatmul.f32.gmra.mxu0 %v62
  %v296 = vpop.f32.mrf.mxu0
  %v297 = vadd.f32 %v165, %v296
  %298 = vmatmul.f32.gmra.mxu0 %v66
  %v299 = vpop.f32.mrf.mxu0
  %v300 = vadd.f32 %v165, %v299
  %301 = vmatmul.f32.gmra.mxu0 %v70
  %v302 = vpop.f32.mrf.mxu0
  %v303 = vadd.f32 %v165, %v302
  %304 = vmatmul.f32.gmra.mxu0 %v74
  %v305 = vpop.f32.mrf.mxu0
  %v306 = vadd.f32 %v165, %v305
  %307 = vmatmul.f32.gmra.mxu0 %v78
  %v308 = vpop.f32.mrf.mxu0
  %v309 = vadd.f32 %v165, %v308
  %310 = vmatmul.f32.gmra.mxu0 %v82
  %v311 = vpop.f32.mrf.mxu0
  %v312 = vadd.f32 %v165, %v311
  %313 = vmatmul.f32.gmra.mxu0 %v86
  %v314 = vpop.f32.mrf.mxu0
  %v315 = vadd.f32 %v165, %v314
  %316 = vmatmul.f32.gmra.mxu0 %v90
  %v317 = vpop.f32.mrf.mxu0
  %v318 = vadd.f32 %v165, %v317
  %319 = vmatmul.f32.gmra.mxu0 %v94
  %v320 = vpop.f32.mrf.mxu0
  %v321 = vadd.f32 %v165, %v320
  %322 = vmatmul.f32.gmra.mxu0 %v98
  %v323 = vpop.f32.mrf.mxu0
  %v324 = vadd.f32 %v165, %v323
  %325 = vmatmul.f32.gmra.mxu0 %v102
  %v326 = vpop.f32.mrf.mxu0
  %v327 = vadd.f32 %v165, %v326
  %328 = vmatmul.f32.gmra.mxu0 %v106
  %v329 = vpop.f32.mrf.mxu0
  %v330 = vadd.f32 %v165, %v329
  %331 = vmatmul.f32.gmra.mxu0 %v110
  %v332 = vpop.f32.mrf.mxu0
  %v333 = vadd.f32 %v165, %v332
  %334 = vdwg.mxu0
  %335 = vmatpush.msra.mxu0 %v145
  %336 = vmatpush.msra.mxu0 %v144
  %337 = vmatpush.msra.mxu0 %v143
  %338 = vmatpush.msra.mxu0 %v142
  %339 = vmatpush.msra.mxu0 %v141
  %340 = vmatpush.msra.mxu0 %v140
  %341 = vmatpush.msra.mxu0 %v139
  %342 = vmatpush.msra.mxu0 %v138
  %343 = vmatpush.msra.mxu0 %v137
  %344 = vmatpush.msra.mxu0 %v136
  %345 = vmatpush.msra.mxu0 %v135
  %346 = vmatpush.msra.mxu0 %v134
  %347 = vmatpush.msra.mxu0 %v133
  %348 = vmatpush.msra.mxu0 %v132
  %349 = vmatpush.msra.mxu0 %v131
  %350 = vmatpush.msra.mxu0 %v130
  %351 = vmatmul.f32.gmra.mxu0 %v15
  %v352 = vpop.f32.mrf.mxu0
  %v353 = vadd.f32 %v261, %v352
  %354 = vmatmul.f32.gmra.mxu0 %v19
  %v355 = vpop.f32.mrf.mxu0
  %v356 = vadd.f32 %v264, %v355
  %357 = vmatmul.f32.gmra.mxu0 %v23
  %v358 = vpop.f32.mrf.mxu0
  %v359 = vadd.f32 %v267, %v358
  %360 = vmatmul.f32.gmra.mxu0 %v27
  %v361 = vpop.f32.mrf.mxu0
  %v362 = vadd.f32 %v270, %v361
  %363 = vmatmul.f32.gmra.mxu0 %v31
  %v364 = vpop.f32.mrf.mxu0
  %v365 = vadd.f32 %v273, %v364
  %366 = vmatmul.f32.gmra.mxu0 %v35
  %v367 = vpop.f32.mrf.mxu0
  %v368 = vadd.f32 %v276, %v367
  %369 = vmatmul.f32.gmra.mxu0 %v39
  %v370 = vpop.f32.mrf.mxu0
  %v371 = vadd.f32 %v279, %v370
  %372 = vmatmul.f32.gmra.mxu0 %v43
  %v373 = vpop.f32.mrf.mxu0
  %v374 = vadd.f32 %v282, %v373
  %375 = vmatmul.f32.gmra.mxu0 %v47
  %v376 = vpop.f32.mrf.mxu0
  %v377 = vadd.f32 %v285, %v376
  %378 = vmatmul.f32.gmra.mxu0 %v51
  %v379 = vpop.f32.mrf.mxu0
  %v380 = vadd.f32 %v288, %v379
  %381 = vmatmul.f32.gmra.mxu0 %v55
  %v382 = vpop.f32.mrf.mxu0
  %v383 = vadd.f32 %v291, %v382
  %384 = vmatmul.f32.gmra.mxu0 %v59
  %v385 = vpop.f32.mrf.mxu0
  %v386 = vadd.f32 %v294, %v385
  %387 = vmatmul.f32.gmra.mxu0 %v63
  %v388 = vpop.f32.mrf.mxu0
  %v389 = vadd.f32 %v297, %v388
  %390 = vmatmul.f32.gmra.mxu0 %v67
  %v391 = vpop.f32.mrf.mxu0
  %v392 = vadd.f32 %v300, %v391
  %393 = vmatmul.f32.gmra.mxu0 %v71
  %v394 = vpop.f32.mrf.mxu0
  %v395 = vadd.f32 %v303, %v394
  %396 = vmatmul.f32.gmra.mxu0 %v75
  %v397 = vpop.f32.mrf.mxu0
  %v398 = vadd.f32 %v306, %v397
  %399 = vmatmul.f32.gmra.mxu0 %v79
  %v400 = vpop.f32.mrf.mxu0
  %v401 = vadd.f32 %v309, %v400
  %402 = vmatmul.f32.gmra.mxu0 %v83
  %v403 = vpop.f32.mrf.mxu0
  %v404 = vadd.f32 %v312, %v403
  %405 = vmatmul.f32.gmra.mxu0 %v87
  %v406 = vpop.f32.mrf.mxu0
  %v407 = vadd.f32 %v315, %v406
  %408 = vmatmul.f32.gmra.mxu0 %v91
  %v409 = vpop.f32.mrf.mxu0
  %v410 = vadd.f32 %v318, %v409
  %411 = vmatmul.f32.gmra.mxu0 %v95
  %v412 = vpop.f32.mrf.mxu0
  %v413 = vadd.f32 %v321, %v412
  %414 = vmatmul.f32.gmra.mxu0 %v99
  %v415 = vpop.f32.mrf.mxu0
  %v416 = vadd.f32 %v324, %v415
  %417 = vmatmul.f32.gmra.mxu0 %v103
  %v418 = vpop.f32.mrf.mxu0
  %v419 = vadd.f32 %v327, %v418
  %420 = vmatmul.f32.gmra.mxu0 %v107
  %v421 = vpop.f32.mrf.mxu0
  %v422 = vadd.f32 %v330, %v421
  %423 = vmatmul.f32.gmra.mxu0 %v111
  %v424 = vpop.f32.mrf.mxu0
  %v425 = vadd.f32 %v333, %v424
  %426 = vdwg.mxu0
  %427 = vmatpush.msra.mxu0 %v161
  %428 = vmatpush.msra.mxu0 %v160
  %429 = vmatpush.msra.mxu0 %v159
  %430 = vmatpush.msra.mxu0 %v158
  %431 = vmatpush.msra.mxu0 %v157
  %432 = vmatpush.msra.mxu0 %v156
  %433 = vmatpush.msra.mxu0 %v155
  %434 = vmatpush.msra.mxu0 %v154
  %435 = vmatpush.msra.mxu0 %v153
  %436 = vmatpush.msra.mxu0 %v152
  %437 = vmatpush.msra.mxu0 %v151
  %438 = vmatpush.msra.mxu0 %v150
  %439 = vmatpush.msra.mxu0 %v149
  %440 = vmatpush.msra.mxu0 %v148
  %441 = vmatpush.msra.mxu0 %v147
  %442 = vmatpush.msra.mxu0 %v146
  %443 = vmatmul.f32.gmra.mxu0 %v16
  %v444 = vpop.f32.mrf.mxu0
  %v445 = vadd.f32 %v353, %v444
  %446 = vmatmul.f32.gmra.mxu0 %v20
  %v447 = vpop.f32.mrf.mxu0
  %v448 = vadd.f32 %v356, %v447
  %449 = vmatmul.f32.gmra.mxu0 %v24
  %v450 = vpop.f32.mrf.mxu0
  %v451 = vadd.f32 %v359, %v450
  %452 = vmatmul.f32.gmra.mxu0 %v28
  %v453 = vpop.f32.mrf.mxu0
  %v454 = vadd.f32 %v362, %v453
  %455 = vmatmul.f32.gmra.mxu0 %v32
  %v456 = vpop.f32.mrf.mxu0
  %v457 = vadd.f32 %v365, %v456
  %458 = vmatmul.f32.gmra.mxu0 %v36
  %v459 = vpop.f32.mrf.mxu0
  %v460 = vadd.f32 %v368, %v459
  %461 = vmatmul.f32.gmra.mxu0 %v40
  %v462 = vpop.f32.mrf.mxu0
  %v463 = vadd.f32 %v371, %v462
  %464 = vmatmul.f32.gmra.mxu0 %v44
  %v465 = vpop.f32.mrf.mxu0
  %v466 = vadd.f32 %v374, %v465
  %467 = vmatmul.f32.gmra.mxu0 %v48
  %v468 = vpop.f32.mrf.mxu0
  %v469 = vadd.f32 %v377, %v468
  %470 = vmatmul.f32.gmra.mxu0 %v52
  %v471 = vpop.f32.mrf.mxu0
  %v472 = vadd.f32 %v380, %v471
  %473 = vmatmul.f32.gmra.mxu0 %v56
  %v474 = vpop.f32.mrf.mxu0
  %v475 = vadd.f32 %v383, %v474
  %476 = vmatmul.f32.gmra.mxu0 %v60
  %v477 = vpop.f32.mrf.mxu0
  %v478 = vadd.f32 %v386, %v477
  %479 = vmatmul.f32.gmra.mxu0 %v64
  %v480 = vpop.f32.mrf.mxu0
  %v481 = vadd.f32 %v389, %v480
  %482 = vmatmul.f32.gmra.mxu0 %v68
  %v483 = vpop.f32.mrf.mxu0
  %v484 = vadd.f32 %v392, %v483
  %485 = vmatmul.f32.gmra.mxu0 %v72
  %v486 = vpop.f32.mrf.mxu0
  %v487 = vadd.f32 %v395, %v486
  %488 = vmatmul.f32.gmra.mxu0 %v76
  %v489 = vpop.f32.mrf.mxu0
  %v490 = vadd.f32 %v398, %v489
  %491 = vmatmul.f32.gmra.mxu0 %v80
  %v492 = vpop.f32.mrf.mxu0
  %v493 = vadd.f32 %v401, %v492
  %494 = vmatmul.f32.gmra.mxu0 %v84
  %v495 = vpop.f32.mrf.mxu0
  %v496 = vadd.f32 %v404, %v495
  %497 = vmatmul.f32.gmra.mxu0 %v88
  %v498 = vpop.f32.mrf.mxu0
  %v499 = vadd.f32 %v407, %v498
  %500 = vmatmul.f32.gmra.mxu0 %v92
  %v501 = vpop.f32.mrf.mxu0
  %v502 = vadd.f32 %v410, %v501
  %503 = vmatmul.f32.gmra.mxu0 %v96
  %v504 = vpop.f32.mrf.mxu0
  %v505 = vadd.f32 %v413, %v504
  %506 = vmatmul.f32.gmra.mxu0 %v100
  %v507 = vpop.f32.mrf.mxu0
  %v508 = vadd.f32 %v416, %v507
  %509 = vmatmul.f32.gmra.mxu0 %v104
  %v510 = vpop.f32.mrf.mxu0
  %v511 = vadd.f32 %v419, %v510
  %512 = vmatmul.f32.gmra.mxu0 %v108
  %v513 = vpop.f32.mrf.mxu0
  %v514 = vadd.f32 %v422, %v513
  %515 = vmatmul.f32.gmra.mxu0 %v112
  %v516 = vpop.f32.mrf.mxu0
  %v517 = vadd.f32 %v425, %v516
  %518 = vdwg.mxu0
  %519 = vmatpush.msra.mxu0 0.0
  %520 = vmatpush.msra.mxu0 0.0
  %521 = vmatpush.msra.mxu0 0.0
  %522 = vmatpush.msra.mxu0 0.0
  %523 = vmatpush.msra.mxu0 0.0
  %524 = vmatpush.msra.mxu0 0.0
  %525 = vmatpush.msra.mxu0 0.0
  %526 = vmatpush.msra.mxu0 0.0
  %527 = vmatpush.msra.mxu0 0.0
  %528 = vmatpush.msra.mxu0 0.0
  %529 = vmatpush.msra.mxu0 0.0
  %530 = vmatpush.msra.mxu0 0.0
  %531 = vmatpush.msra.mxu0 0.0
  %532 = vmatpush.msra.mxu0 0.0
  %533 = vmatpush.msra.mxu0 0.0
  %534 = vmatpush.msra.mxu0 %v162
  %535 = vmatmul.f32.gmra.mxu0 %v169
  %v536 = vpop.f32.mrf.mxu0
  %v537 = vadd.f32 %v445, %v536
  %538 = vmatmul.f32.gmra.mxu0 %v172
  %v539 = vpop.f32.mrf.mxu0
  %v540 = vadd.f32 %v448, %v539
  %541 = vmatmul.f32.gmra.mxu0 %v175
  %v542 = vpop.f32.mrf.mxu0
  %v543 = vadd.f32 %v451, %v542
  %544 = vmatmul.f32.gmra.mxu0 %v178
  %v545 = vpop.f32.mrf.mxu0
  %v546 = vadd.f32 %v454, %v545
  %547 = vmatmul.f32.gmra.mxu0 %v181
  %v548 = vpop.f32.mrf.mxu0
  %v549 = vadd.f32 %v457, %v548
  %550 = vmatmul.f32.gmra.mxu0 %v184
  %v551 = vpop.f32.mrf.mxu0
  %v552 = vadd.f32 %v460, %v551
  %553 = vmatmul.f32.gmra.mxu0 %v187
  %v554 = vpop.f32.mrf.mxu0
  %v555 = vadd.f32 %v463, %v554
  %556 = vmatmul.f32.gmra.mxu0 %v190
  %v557 = vpop.f32.mrf.mxu0
  %v558 = vadd.f32 %v466, %v557
  %559 = vmatmul.f32.gmra.mxu0 %v193
  %v560 = vpop.f32.mrf.mxu0
  %v561 = vadd.f32 %v469, %v560
  %562 = vmatmul.f32.gmra.mxu0 %v196
  %v563 = vpop.f32.mrf.mxu0
  %v564 = vadd.f32 %v472, %v563
  %565 = vmatmul.f32.gmra.mxu0 %v199
  %v566 = vpop.f32.mrf.mxu0
  %v567 = vadd.f32 %v475, %v566
  %568 = vmatmul.f32.gmra.mxu0 %v202
  %v569 = vpop.f32.mrf.mxu0
  %v570 = vadd.f32 %v478, %v569
  %571 = vmatmul.f32.gmra.mxu0 %v205
  %v572 = vpop.f32.mrf.mxu0
  %v573 = vadd.f32 %v481, %v572
  %574 = vmatmul.f32.gmra.mxu0 %v208
  %v575 = vpop.f32.mrf.mxu0
  %v576 = vadd.f32 %v484, %v575
  %577 = vmatmul.f32.gmra.mxu0 %v211
  %v578 = vpop.f32.mrf.mxu0
  %v579 = vadd.f32 %v487, %v578
  %580 = vmatmul.f32.gmra.mxu0 %v214
  %v581 = vpop.f32.mrf.mxu0
  %v582 = vadd.f32 %v490, %v581
  %583 = vmatmul.f32.gmra.mxu0 %v217
  %v584 = vpop.f32.mrf.mxu0
  %v585 = vadd.f32 %v493, %v584
  %586 = vmatmul.f32.gmra.mxu0 %v220
  %v587 = vpop.f32.mrf.mxu0
  %v588 = vadd.f32 %v496, %v587
  %589 = vmatmul.f32.gmra.mxu0 %v223
  %v590 = vpop.f32.mrf.mxu0
  %v591 = vadd.f32 %v499, %v590
  %592 = vmatmul.f32.gmra.mxu0 %v226
  %v593 = vpop.f32.mrf.mxu0
  %v594 = vadd.f32 %v502, %v593
  %595 = vmatmul.f32.gmra.mxu0 %v229
  %v596 = vpop.f32.mrf.mxu0
  %v597 = vadd.f32 %v505, %v596
  %598 = vmatmul.f32.gmra.mxu0 %v232
  %v599 = vpop.f32.mrf.mxu0
  %v600 = vadd.f32 %v508, %v599
  %601 = vmatmul.f32.gmra.mxu0 %v235
  %v602 = vpop.f32.mrf.mxu0
  %v603 = vadd.f32 %v511, %v602
  %604 = vmatmul.f32.gmra.mxu0 %v238
  %v605 = vpop.f32.mrf.mxu0
  %v606 = vadd.f32 %v514, %v605
  %607 = vmatmul.f32.gmra.mxu0 %v241
  %v608 = vpop.f32.mrf.mxu0
  %v609 = vadd.f32 %v517, %v608
  %610 = vdwg.mxu0
  %vm611 = vcmask 130048
  %612 = vst.msk [vmem:[%s3] sm:$0xff] %vm611, %v537
  %613 = vst.msk [vmem:[%s3 + $0x8] sm:$0xff] %vm611, %v540
  %614 = vst.msk [vmem:[%s3 + $0x10] sm:$0xff] %vm611, %v543
  %615 = vst.msk [vmem:[%s3 + $0x18] sm:$0xff] %vm611, %v546
  %616 = vst.msk [vmem:[%s3 + $0x20] sm:$0xff] %vm611, %v549
  %617 = vst.msk [vmem:[%s3 + $0x28] sm:$0xff] %vm611, %v552
  %618 = vst.msk [vmem:[%s3 + $0x30] sm:$0xff] %vm611, %v555
  %619 = vst.msk [vmem:[%s3 + $0x38] sm:$0xff] %vm611, %v558
  %620 = vst.msk [vmem:[%s3 + $0x40] sm:$0xff] %vm611, %v561
  %621 = vst.msk [vmem:[%s3 + $0x48] sm:$0xff] %vm611, %v564
  %622 = vst.msk [vmem:[%s3 + $0x50] sm:$0xff] %vm611, %v567
  %623 = vst.msk [vmem:[%s3 + $0x58] sm:$0xff] %vm611, %v570
  %624 = vst.msk [vmem:[%s3 + $0x60] sm:$0xff] %vm611, %v573
  %625 = vst.msk [vmem:[%s3 + $0x68] sm:$0xff] %vm611, %v576
  %626 = vst.msk [vmem:[%s3 + $0x70] sm:$0xff] %vm611, %v579
  %627 = vst.msk [vmem:[%s3 + $0x78] sm:$0xff] %vm611, %v582
  %628 = vst.msk [vmem:[%s3 + $0x80] sm:$0xff] %vm611, %v585
  %629 = vst.msk [vmem:[%s3 + $0x88] sm:$0xff] %vm611, %v588
  %630 = vst.msk [vmem:[%s3 + $0x90] sm:$0xff] %vm611, %v591
  %631 = vst.msk [vmem:[%s3 + $0x98] sm:$0xff] %vm611, %v594
  %632 = vst.msk [vmem:[%s3 + $0xa0] sm:$0xff] %vm611, %v597
  %633 = vst.msk [vmem:[%s3 + $0xa8] sm:$0xff] %vm611, %v600
  %634 = vst.msk [vmem:[%s3 + $0xb0] sm:$0xff] %vm611, %v603
  %635 = vst.msk [vmem:[%s3 + $0xb8] sm:$0xff] %vm611, %v606
  %636 = vst.msk [vmem:[%s3 + $0xc0] sm:$0xff] %vm611, %v609
  // Predicated region
  $region14: #{skin_model1_forward.8} parent=0 // pred_check
    _
  $region15: #{skin_model1_forward.8} parent=0 // pred_check_branch
    %638 = sbr.rel (0) target = $region17
  $region16: #{skin_model1_forward.8} parent=0 // pred_region
    _
  $region17: #{skin_model1_forward.8} parent=0 // pred_fallthru
    _
  // Predicated region
  $region18: #{skin_model1_forward.8} parent=0 // pred_check
    _
  $region19: #{skin_model1_forward.8} parent=0 // pred_check_branch
    %640 = sbr.rel (0) target = $region21
  $region20: #{skin_model1_forward.8} parent=0 // pred_region
    _
  $region21: #{skin_model1_forward.8} parent=0 // pred_fallthru
    _

// kernel: skin_model1_forward.9
$region0: #{skin_model1_forward.9}
  #allocation0 [shape = 'u32[]', space=smem, size = 0x4, offset = 0x4, fixed_abs, tag = 'smem constant byte address 0x4 - core index']
  #allocation1 [shape = 'u32[72,128]{1,0:T(1,128)}', space=vmem, size = 0x9000, scoped, tag = 'internal scratch']
  %s0 = inlined_call_operand.vmem [shape: f32[2,400], index: 0, kind: input, shape index: {}]
  %s1 = inlined_call_operand.vmem [shape: f32[400,120], index: 1, kind: input, shape index: {}]
  %s2 = inlined_call_operand.vmem [shape: f32[1,120], index: 2, kind: input, shape index: {}]
  %s3 = inlined_call_operand.vmem [shape: f32[120,84], index: 3, kind: input, shape index: {}]
  %s4 = inlined_call_operand.vmem [shape: f32[1,84], index: 4, kind: input, shape index: {}]
  %s5 = inlined_call_operand.vmem [shape: f32[84,10], index: 5, kind: input, shape index: {}]
  %s6 = inlined_call_operand.vmem [shape: f32[1,10], index: 6, kind: input, shape index: {}]
  %s7 = inlined_call_operand.vmem [shape: f32[2,10], index: 7, kind: output, shape index: {}]
  %s8 = sld [smem:[#allocation0]]
  $region38: #{skin_model1_forward.9} parent=0
    _
  %s10 = ssub.s32 1, %s8
  %s11 = scalar_select 0, %s10, %s8
  // Predicated region
  $region2: #{skin_model1_forward.9} parent=0 // pred_check
    _
  $region3: #{skin_model1_forward.9} parent=0 // pred_check_branch
    %13 = sbr.rel (0) target = $region5
  $region4: #{skin_model1_forward.9} parent=0 // pred_region
    _
  $region5: #{skin_model1_forward.9} parent=0 // pred_fallthru
    _
  // Predicated region
  $region6: #{skin_model1_forward.9} parent=0 // pred_check
    _
  $region7: #{skin_model1_forward.9} parent=0 // pred_check_branch
    %15 = sbr.rel (0) target = $region9
  $region8: #{skin_model1_forward.9} parent=0 // pred_region
    _
  $region9: #{skin_model1_forward.9} parent=0 // pred_fallthru
    _
  // Predicated region
  $region10: #{skin_model1_forward.9} parent=0 // pred_check
    _
  $region11: #{skin_model1_forward.9} parent=0 // pred_check_branch
    %17 = sbr.rel (0) target = $region13
  $region12: #{skin_model1_forward.9} parent=0 // pred_region
    _
  $region13: #{skin_model1_forward.9} parent=0 // pred_fallthru
    _
  // Predicated region
  $region14: #{skin_model1_forward.9} parent=0 // pred_check
    _
  $region15: #{skin_model1_forward.9} parent=0 // pred_check_branch
    %19 = sbr.rel (0) target = $region17
  $region16: #{skin_model1_forward.9} parent=0 // pred_region
    _
  $region17: #{skin_model1_forward.9} parent=0 // pred_fallthru
    _
  // Predicated region
  $region18: #{skin_model1_forward.9} parent=0 // pred_check
    _
  $region19: #{skin_model1_forward.9} parent=0 // pred_check_branch
    %21 = sbr.rel (0) target = $region21
  $region20: #{skin_model1_forward.9} parent=0 // pred_region
    _
  $region21: #{skin_model1_forward.9} parent=0 // pred_fallthru
    _
  // Predicated region
  $region22: #{skin_model1_forward.9} parent=0 // pred_check
    _
  $region23: #{skin_model1_forward.9} parent=0 // pred_check_branch
    %23 = sbr.rel (0) target = $region25
  $region24: #{skin_model1_forward.9} parent=0 // pred_region
    _
  $region25: #{skin_model1_forward.9} parent=0 // pred_fallthru
    _
  // Predicated region
  $region26: #{skin_model1_forward.9} parent=0 // pred_check
    _
  $region27: #{skin_model1_forward.9} parent=0 // pred_check_branch
    %25 = sbr.rel (0) target = $region29
  $region28: #{skin_model1_forward.9} parent=0 // pred_region
    _
  $region29: #{skin_model1_forward.9} parent=0 // pred_fallthru
    _
  %v26 = vld [vmem:[%s0] sm:$0xff]
  %v27 = vld [vmem:[%s1] sm:$0xff]
  %v28 = vld [vmem:[%s1 + $0x8] sm:$0xff]
  %v29 = vld [vmem:[%s1 + $0x10] sm:$0xff]
  %v30 = vld [vmem:[%s1 + $0x18] sm:$0xff]
  %v31 = vld [vmem:[%s1 + $0x20] sm:$0xff]
  %v32 = vld [vmem:[%s1 + $0x28] sm:$0xff]
  %v33 = vld [vmem:[%s1 + $0x30] sm:$0xff]
  %v34 = vld [vmem:[%s1 + $0x38] sm:$0xff]
  %v35 = vld [vmem:[%s1 + $0x40] sm:$0xff]
  %v36 = vld [vmem:[%s1 + $0x48] sm:$0xff]
  %v37 = vld [vmem:[%s1 + $0x50] sm:$0xff]
  %v38 = vld [vmem:[%s1 + $0x58] sm:$0xff]
  %v39 = vld [vmem:[%s1 + $0x60] sm:$0xff]
  %v40 = vld [vmem:[%s1 + $0x68] sm:$0xff]
  %v41 = vld [vmem:[%s1 + $0x70] sm:$0xff]
  %v42 = vld [vmem:[%s1 + $0x78] sm:$0xff]
  %v43 = vld [vmem:[%s1 + $0x80] sm:$0xff]
  %v44 = vld [vmem:[%s1 + $0x88] sm:$0xff]
  %v45 = vld [vmem:[%s1 + $0x90] sm:$0xff]
  %v46 = vld [vmem:[%s1 + $0x98] sm:$0xff]
  %v47 = vld [vmem:[%s1 + $0xa0] sm:$0xff]
  %v48 = vld [vmem:[%s1 + $0xa8] sm:$0xff]
  %v49 = vld [vmem:[%s1 + $0xb0] sm:$0xff]
  %v50 = vld [vmem:[%s1 + $0xb8] sm:$0xff]
  %v51 = vld [vmem:[%s1 + $0xc0] sm:$0xff]
  %v52 = vld [vmem:[%s1 + $0xc8] sm:$0xff]
  %v53 = vld [vmem:[%s1 + $0xd0] sm:$0xff]
  %v54 = vld [vmem:[%s1 + $0xd8] sm:$0xff]
  %v55 = vld [vmem:[%s1 + $0xe0] sm:$0xff]
  %v56 = vld [vmem:[%s1 + $0xe8] sm:$0xff]
  %v57 = vld [vmem:[%s1 + $0xf0] sm:$0xff]
  %v58 = vld [vmem:[%s1 + $0xf8] sm:$0xff]
  %v59 = vld [vmem:[%s1 + $0x100] sm:$0xff]
  %v60 = vld [vmem:[%s1 + $0x108] sm:$0xff]
  %v61 = vld [vmem:[%s1 + $0x110] sm:$0xff]
  %v62 = vld [vmem:[%s1 + $0x118] sm:$0xff]
  %v63 = vld [vmem:[%s1 + $0x120] sm:$0xff]
  %v64 = vld [vmem:[%s1 + $0x128] sm:$0xff]
  %v65 = vld [vmem:[%s1 + $0x130] sm:$0xff]
  %v66 = vld [vmem:[%s1 + $0x138] sm:$0xff]
  %v67 = vld [vmem:[%s1 + $0x140] sm:$0xff]
  %v68 = vld [vmem:[%s1 + $0x148] sm:$0xff]
  %v69 = vld [vmem:[%s1 + $0x150] sm:$0xff]
  %v70 = vld [vmem:[%s1 + $0x158] sm:$0xff]
  %v71 = vld [vmem:[%s1 + $0x160] sm:$0xff]
  %v72 = vld [vmem:[%s1 + $0x168] sm:$0xff]
  %v73 = vld [vmem:[%s1 + $0x170] sm:$0xff]
  %v74 = vld [vmem:[%s1 + $0x178] sm:$0xff]
  %v75 = vld [vmem:[%s1 + $0x180] sm:$0xff]
  %v76 = vld [vmem:[%s1 + $0x188] sm:$0xff]
  %v77 = vld [vmem:[%s2] sm:$0x1]
  %v79 = vperm.slane %v77, 0
  %82 = vst [vmem:[#allocation1] ss:$4 sm:$0xff] %v26
  %v83 = vld.sshfl [vmem:[#allocation1] sm:$0xff pattern:$0x73625140]
  %v84 = vld.sshfl [vmem:[#allocation1 + $0x8] sm:$0xff pattern:$0x73625140]
  %v85 = vld.sshfl [vmem:[#allocation1 + $0x10] sm:$0xff pattern:$0x73625140]
  %v86 = vld.sshfl [vmem:[#allocation1 + $0x18] sm:$0xff pattern:$0x73625140]
  %vm90 = vcmask 130048
  %v91 = vsel %vm90, %v86, 0
  %93 = vmatpush.msra.mxu0 %v42
  %94 = vmatpush.msra.mxu0 %v41
  %95 = vmatpush.msra.mxu0 %v40
  %96 = vmatpush.msra.mxu0 %v39
  %97 = vmatpush.msra.mxu0 %v38
  %98 = vmatpush.msra.mxu0 %v37
  %99 = vmatpush.msra.mxu0 %v36
  %100 = vmatpush.msra.mxu0 %v35
  %101 = vmatpush.msra.mxu0 %v34
  %102 = vmatpush.msra.mxu0 %v33
  %103 = vmatpush.msra.mxu0 %v32
  %104 = vmatpush.msra.mxu0 %v31
  %105 = vmatpush.msra.mxu0 %v30
  %106 = vmatpush.msra.mxu0 %v29
  %107 = vmatpush.msra.mxu0 %v28
  %108 = vmatpush.msra.mxu0 %v27
  %109 = vmatmul.f32.gmra.mxu0 %v83
  %v110 = vpop.f32.mrf.mxu0
  %v111 = vadd.f32 %v79, %v110
  %112 = vdwg.mxu0
  %113 = vmatpush.msra.mxu0 %v58
  %114 = vmatpush.msra.mxu0 %v57
  %115 = vmatpush.msra.mxu0 %v56
  %116 = vmatpush.msra.mxu0 %v55
  %117 = vmatpush.msra.mxu0 %v54
  %118 = vmatpush.msra.mxu0 %v53
  %119 = vmatpush.msra.mxu0 %v52
  %120 = vmatpush.msra.mxu0 %v51
  %121 = vmatpush.msra.mxu0 %v50
  %122 = vmatpush.msra.mxu0 %v49
  %123 = vmatpush.msra.mxu0 %v48
  %124 = vmatpush.msra.mxu0 %v47
  %125 = vmatpush.msra.mxu0 %v46
  %126 = vmatpush.msra.mxu0 %v45
  %127 = vmatpush.msra.mxu0 %v44
  %128 = vmatpush.msra.mxu0 %v43
  %129 = vmatmul.f32.gmra.mxu0 %v84
  %v130 = vpop.f32.mrf.mxu0
  %v131 = vadd.f32 %v111, %v130
  %132 = vdwg.mxu0
  %133 = vmatpush.msra.mxu0 %v74
  %134 = vmatpush.msra.mxu0 %v73
  %135 = vmatpush.msra.mxu0 %v72
  %136 = vmatpush.msra.mxu0 %v71
  %137 = vmatpush.msra.mxu0 %v70
  %138 = vmatpush.msra.mxu0 %v69
  %139 = vmatpush.msra.mxu0 %v68
  %140 = vmatpush.msra.mxu0 %v67
  %141 = vmatpush.msra.mxu0 %v66
  %142 = vmatpush.msra.mxu0 %v65
  %143 = vmatpush.msra.mxu0 %v64
  %144 = vmatpush.msra.mxu0 %v63
  %145 = vmatpush.msra.mxu0 %v62
  %146 = vmatpush.msra.mxu0 %v61
  %147 = vmatpush.msra.mxu0 %v60
  %148 = vmatpush.msra.mxu0 %v59
  %149 = vmatmul.f32.gmra.mxu0 %v85
  %v150 = vpop.f32.mrf.mxu0
  %v151 = vadd.f32 %v131, %v150
  %152 = vdwg.mxu0
  %153 = vmatpush.msra.mxu0 0.0
  %154 = vmatpush.msra.mxu0 0.0
  %155 = vmatpush.msra.mxu0 0.0
  %156 = vmatpush.msra.mxu0 0.0
  %157 = vmatpush.msra.mxu0 0.0
  %158 = vmatpush.msra.mxu0 0.0
  %159 = vmatpush.msra.mxu0 0.0
  %160 = vmatpush.msra.mxu0 0.0
  %161 = vmatpush.msra.mxu0 0.0
  %162 = vmatpush.msra.mxu0 0.0
  %163 = vmatpush.msra.mxu0 0.0
  %164 = vmatpush.msra.mxu0 0.0
  %165 = vmatpush.msra.mxu0 0.0
  %166 = vmatpush.msra.mxu0 0.0
  %167 = vmatpush.msra.mxu0 %v76
  %168 = vmatpush.msra.mxu0 %v75
  %169 = vmatmul.f32.gmra.mxu0 %v91
  %v170 = vpop.f32.mrf.mxu0
  %v171 = vadd.f32 %v151, %v170
  %172 = vdwg.mxu0
  %vm173 = vcmp.ge.f32.partialorder %v171, 0.0
  %v174 = vmul.f32 %v171, 0.2
  %v175 = vsel %vm173, %v171, %v174
  %v176 = vld [vmem:[%s3] sm:$0xff]
  %v177 = vld [vmem:[%s3 + $0x8] sm:$0xff]
  %v178 = vld [vmem:[%s3 + $0x10] sm:$0xff]
  %v179 = vld [vmem:[%s3 + $0x18] sm:$0xff]
  %v180 = vld [vmem:[%s3 + $0x20] sm:$0xff]
  %v181 = vld [vmem:[%s3 + $0x28] sm:$0xff]
  %v182 = vld [vmem:[%s3 + $0x30] sm:$0xff]
  %v183 = vld [vmem:[%s3 + $0x38] sm:$0xff]
  %v184 = vld [vmem:[%s3 + $0x40] sm:$0xff]
  %v185 = vld [vmem:[%s3 + $0x48] sm:$0xff]
  %v186 = vld [vmem:[%s3 + $0x50] sm:$0xff]
  %v187 = vld [vmem:[%s3 + $0x58] sm:$0xff]
  %v188 = vld [vmem:[%s3 + $0x60] sm:$0xff]
  %v189 = vld [vmem:[%s3 + $0x68] sm:$0xff]
  %v190 = vld [vmem:[%s3 + $0x70] sm:$0xff]
  %v191 = vld [vmem:[%s4] sm:$0x1]
  %v193 = vperm.slane %v191, 0
  %vm195 = vcmask 982016
  %v197 = vsel %vm195, %v175, 0
  %199 = vmatpush.msra.mxu0 0.0
  %200 = vmatpush.msra.mxu0 %v190
  %201 = vmatpush.msra.mxu0 %v189
  %202 = vmatpush.msra.mxu0 %v188
  %203 = vmatpush.msra.mxu0 %v187
  %204 = vmatpush.msra.mxu0 %v186
  %205 = vmatpush.msra.mxu0 %v185
  %206 = vmatpush.msra.mxu0 %v184
  %207 = vmatpush.msra.mxu0 %v183
  %208 = vmatpush.msra.mxu0 %v182
  %209 = vmatpush.msra.mxu0 %v181
  %210 = vmatpush.msra.mxu0 %v180
  %211 = vmatpush.msra.mxu0 %v179
  %212 = vmatpush.msra.mxu0 %v178
  %213 = vmatpush.msra.mxu0 %v177
  %214 = vmatpush.msra.mxu0 %v176
  %215 = vmatmul.f32.gmra.mxu0 %v197
  %v216 = vpop.f32.mrf.mxu0
  %v217 = vadd.f32 %v193, %v216
  %218 = vdwg.mxu0
  %vm219 = vcmp.ge.f32.partialorder %v217, 0.0
  %v220 = vmul.f32 %v217, 0.2
  %v221 = vsel %vm219, %v217, %v220
  %v222 = vld [vmem:[%s5] sm:$0xff]
  %v223 = vld [vmem:[%s5 + $0x8] sm:$0xff]
  %v224 = vld [vmem:[%s5 + $0x10] sm:$0xff]
  %v225 = vld [vmem:[%s5 + $0x18] sm:$0xff]
  %v226 = vld [vmem:[%s5 + $0x20] sm:$0xff]
  %v227 = vld [vmem:[%s5 + $0x28] sm:$0xff]
  %v228 = vld [vmem:[%s5 + $0x30] sm:$0xff]
  %v229 = vld [vmem:[%s5 + $0x38] sm:$0xff]
  %v230 = vld [vmem:[%s5 + $0x40] sm:$0xff]
  %v231 = vld [vmem:[%s5 + $0x48] sm:$0xff]
  %v232 = vld [vmem:[%s5 + $0x50] sm:$0xf]
  %v233 = vld [vmem:[%s6] sm:$0x1]
  %v235 = vperm.slane %v233, 0
  %vm237 = vcmask 687104
  %v239 = vsel %vm237, %v221, 0
  %vm241 = vcmask 1043456
  %v243 = vsel %vm241, %v232, 0
  %245 = vmatpush.msra.mxu0 0.0
  %246 = vmatpush.msra.mxu0 0.0
  %247 = vmatpush.msra.mxu0 0.0
  %248 = vmatpush.msra.mxu0 0.0
  %249 = vmatpush.msra.mxu0 0.0
  %250 = vmatpush.msra.mxu0 %v243
  %251 = vmatpush.msra.mxu0 %v231
  %252 = vmatpush.msra.mxu0 %v230
  %253 = vmatpush.msra.mxu0 %v229
  %254 = vmatpush.msra.mxu0 %v228
  %255 = vmatpush.msra.mxu0 %v227
  %256 = vmatpush.msra.mxu0 %v226
  %257 = vmatpush.msra.mxu0 %v225
  %258 = vmatpush.msra.mxu0 %v224
  %259 = vmatpush.msra.mxu0 %v223
  %260 = vmatpush.msra.mxu0 %v222
  %261 = vmatmul.f32.gmra.mxu0 %v239
  %v262 = vpop.f32.mrf.mxu0
  %v263 = vadd.f32 %v235, %v262
  %264 = vdwg.mxu0
  %vm265 = vcmask 74752
  %266 = vst.msk [vmem:[%s7] sm:$0x3] %vm265, %v263
  // Predicated region
  $region30: #{skin_model1_forward.9} parent=0 // pred_check
    _
  $region31: #{skin_model1_forward.9} parent=0 // pred_check_branch
    %268 = sbr.rel (0) target = $region33
  $region32: #{skin_model1_forward.9} parent=0 // pred_region
    _
  $region33: #{skin_model1_forward.9} parent=0 // pred_fallthru
    _
  // Predicated region
  $region34: #{skin_model1_forward.9} parent=0 // pred_check
    _
  $region35: #{skin_model1_forward.9} parent=0 // pred_check_branch
    %270 = sbr.rel (0) target = $region37
  $region36: #{skin_model1_forward.9} parent=0 // pred_region
    _
  $region37: #{skin_model1_forward.9} parent=0 // pred_fallthru
    _

</llo_original>
